<compile_context>
chip_gen: v5e
topology: v5e:2x2
jax: 0.10.0
libtpu: 0.0.40
codegen_flags: <defaults>
</compile_context>

<pallas_src>
import math
from functools import partial

import jax
import jax.numpy as jnp
from jax import lax
from jax.experimental import pallas as pl
from jax.experimental.pallas import tpu as pltpu


_DN = (((1,), (1,)), ((), ()))   # contract last dims:  x @ W^T  (W is (out, in))

# Row indices inside the packed per-layer (E,)-vector table.
_SA_BQ, _SA_BK, _SA_BV, _SA_BO = 0, 1, 2, 3
_LN1_W, _LN1_B = 4, 5
_CA_BQ, _CA_BK, _CA_BV, _CA_BO = 6, 7, 8, 9
_LN2_W, _LN2_B = 10, 11
_B2, _LN3_W, _LN3_B = 12, 13, 14
_NUM_VECS = 15


# ----------------------------------------------------------------------------
# In-kernel helpers (operate on f32 values; MXU operands cast to `cdt`)
# ----------------------------------------------------------------------------
def _layernorm_f32(z, g, b, eps):
    mu = jnp.mean(z, axis=-1, keepdims=True)
    var = jnp.mean((z - mu) * (z - mu), axis=-1, keepdims=True)
    return (z - mu) * lax.rsqrt(var + eps) * g + b


def _mha(attn_ref, q_in, k_in, v_in, wq, bq, wk, bk, wv, bv, wo, bo, *,
         B, Lq, Lk, nhead, cdt):
    """Multi-head attention on batch-major rows.

    q_in: (B*Lq, E) f32; k_in, v_in: (B*Lk, E) f32.  Weight matrices are
    already in the MXU compute dtype, biases f32.  The softmax scale is folded
    into wq/bq.  Per-head outputs are written into lane slices of `attn_ref`
    and a single full-E out-projection is applied at the end.
    Returns (B*Lq, E) f32.
    """
    q = lax.dot_general(q_in.astype(cdt), wq, _DN,
                        preferred_element_type=jnp.float32) + bq
    k = lax.dot_general(k_in.astype(cdt), wk, _DN,
                        preferred_element_type=jnp.float32) + bk
    v = lax.dot_general(v_in.astype(cdt), wv, _DN,
                        preferred_element_type=jnp.float32) + bv

    E = q.shape[-1]
    hd = E // nhead
    for b in range(B):                                  # static unrolled
        qb = q[b * Lq:(b + 1) * Lq]
        kb = k[b * Lk:(b + 1) * Lk]
        vb = v[b * Lk:(b + 1) * Lk]
        for h in range(nhead):                          # static unrolled
            lo = h * hd
            s = lax.dot_general(qb[:, lo:lo + hd].astype(cdt),
                                kb[:, lo:lo + hd].astype(cdt), _DN,
                                preferred_element_type=jnp.float32)  # (Lq, Lk)
            m = jnp.max(s, axis=-1, keepdims=True)
            e = jnp.exp(s - m)
            p = e * pl.reciprocal(jnp.sum(e, axis=-1, keepdims=True), approx=True)
            oh = jnp.dot(p.astype(cdt), vb[:, lo:lo + hd].astype(cdt),
                         preferred_element_type=jnp.float32)         # (Lq, hd)
            attn_ref[b * Lq:(b + 1) * Lq, lo:lo + hd] = oh

    # single K=E out-projection over all rows / heads at once
    return lax.dot_general(attn_ref[...].astype(cdt), wo, _DN,
                           preferred_element_type=jnp.float32) + bo


# ----------------------------------------------------------------------------
# Fused whole-decoder kernel: grid axis == layer index (sequential)
# ----------------------------------------------------------------------------
def _decoder_kernel(x_ref, qpos_ref, mem_ref, pos_ref,
                    sa_wq_ref, sa_wk_ref, sa_wv_ref, sa_wo_ref,
                    ca_wq_ref, ca_wk_ref, ca_wv_ref, ca_wo_ref,
                    w1_ref, w2_ref, b1_ref, vecs_ref, nf_w_ref, nf_b_ref,
                    o_ref, act_ref, attn_ref, *,
                    B, Lq, S, nhead, eps, cdt, apply_final_norm,
                    return_intermediate):
    l = pl.program_id(0)

    @pl.when(l == 0)
    def _init():
        act_ref[...] = x_ref[...].astype(jnp.float32)

    vecs = vecs_ref[0].astype(jnp.float32)              # (15, E)

    def vec(i):
        return vecs[i:i + 1, :]                         # (1, E)

    x = act_ref[...]                                    # (B*Lq, E) f32
    qp = qpos_ref[...].astype(jnp.float32)

    # ---- self-attention (q = k = x + query_pos, v = x) + residual + LN1 ----
    q_in = x + qp
    proj = _mha(attn_ref, q_in, q_in, x,
                sa_wq_ref[0], vec(_SA_BQ), sa_wk_ref[0], vec(_SA_BK),
                sa_wv_ref[0], vec(_SA_BV), sa_wo_ref[0], vec(_SA_BO),
                B=B, Lq=Lq, Lk=Lq, nhead=nhead, cdt=cdt)
    x = _layernorm_f32(x + proj, vec(_LN1_W), vec(_LN1_B), eps)

    # ---- cross-attention (q = x + query_pos, k = mem + pos, v = mem) + LN2 --
    memv = mem_ref[...].astype(jnp.float32)
    memk = memv + pos_ref[...].astype(jnp.float32)
    proj = _mha(attn_ref, x + qp, memk, memv,
                ca_wq_ref[0], vec(_CA_BQ), ca_wk_ref[0], vec(_CA_BK),
                ca_wv_ref[0], vec(_CA_BV), ca_wo_ref[0], vec(_CA_BO),
                B=B, Lq=Lq, Lk=S, nhead=nhead, cdt=cdt)
    x = _layernorm_f32(x + proj, vec(_LN2_W), vec(_LN2_B), eps)

    # ---- FFN (relu) + residual + LN3; (rows, dff) never leaves VMEM --------
    h = lax.dot_general(x.astype(cdt), w1_ref[0], _DN,
                        preferred_element_type=jnp.float32)
    h = jnp.maximum(h + b1_ref[0].astype(jnp.float32), 0.0)
    y = lax.dot_general(h.astype(cdt), w2_ref[0], _DN,
                        preferred_element_type=jnp.float32) + vec(_B2)
    x = _layernorm_f32(x + y, vec(_LN3_W), vec(_LN3_B), eps)

    act_ref[...] = x                                    # carry to next layer

    nf_w = nf_w_ref[...].astype(jnp.float32)
    nf_b = nf_b_ref[...].astype(jnp.float32)
    if return_intermediate:
        xo = _layernorm_f32(x, nf_w, nf_b, eps) if apply_final_norm else x
        o_ref[0] = xo.astype(o_ref.dtype)
    else:
        @pl.when(l == pl.num_programs(0) - 1)
        def _finalize():
            xo = _layernorm_f32(x, nf_w, nf_b, eps) if apply_final_norm else x
            o_ref[...] = xo.astype(o_ref.dtype)


# ----------------------------------------------------------------------------
# TransformerDecoder.forward
# ----------------------------------------------------------------------------
def transformer_decoder_forward(params, tgt, memory,
                                tgt_mask=None, memory_mask=None,
                                tgt_key_padding_mask=None,
                                memory_key_padding_mask=None,
                                pos=None, query_pos=None, *,
                                nhead, return_intermediate=False,
                                compute_dtype=jnp.bfloat16, eps=1e-5):
    """tgt: (Lq, B, E), memory: (S, B, E), pos: (S, B, E), query_pos: (Lq, B, E).
    Returns (1, Lq, B, E) (== output.unsqueeze(0)) or stacked intermediates."""
    # TODO(synk): attention masks / key_padding_mask paths not wired (this
    # forward is exercised with all masks == None, matching the reference).
    Lq, B, E = tgt.shape
    S = memory.shape[0]
    layers = params["layers"]
    L = len(layers)
    dff = layers[0]["w1"].shape[0]
    assert E % nhead == 0
    scale = 1.0 / math.sqrt(E // nhead)
    cdt = compute_dtype

    if pos is None:
        pos = jnp.zeros_like(memory)
    if query_pos is None:
        query_pos = jnp.zeros_like(tgt)

    # one-time layout change: (Lseq, B, E) -> batch-major rows (B*Lseq, E)
    def rows(t):
        return jnp.transpose(t, (1, 0, 2)).reshape(t.shape[1] * t.shape[0], E)

    x_rows, qp_rows = rows(tgt), rows(query_pos)
    mem_rows, pos_rows = rows(memory), rows(pos)

    # Stack per-layer params on a leading layer axis.  Matmul weights pre-cast
    # to the MXU compute dtype; softmax scale folded into wq / bq host-side.
    def wstack(get):
        return jnp.stack([get(lp) for lp in layers]).astype(cdt)

    sa_wq = wstack(lambda lp: lp["self_attn"]["wq"] * scale)
    sa_wk = wstack(lambda lp: lp["self_attn"]["wk"])
    sa_wv = wstack(lambda lp: lp["self_attn"]["wv"])
    sa_wo = wstack(lambda lp: lp["self_attn"]["wo"])
    ca_wq = wstack(lambda lp: lp["cross_attn"]["wq"] * scale)
    ca_wk = wstack(lambda lp: lp["cross_attn"]["wk"])
    ca_wv = wstack(lambda lp: lp["cross_attn"]["wv"])
    ca_wo = wstack(lambda lp: lp["cross_attn"]["wo"])
    w1 = wstack(lambda lp: lp["w1"])                         # (L, dff, E)
    w2 = wstack(lambda lp: lp["w2"])                         # (L, E, dff)
    b1 = jnp.stack([lp["b1"] for lp in layers]).reshape(L, 1, dff).astype(jnp.float32)

    def vec_rows(lp):                                        # (15, E) f32
        sa, ca = lp["self_attn"], lp["cross_attn"]
        return jnp.stack([sa["bq"] * scale, sa["bk"], sa["bv"], sa["bo"],
                          lp["norm1_w"], lp["norm1_b"],
                          ca["bq"] * scale, ca["bk"], ca["bv"], ca["bo"],
                          lp["norm2_w"], lp["norm2_b"],
                          lp["b2"], lp["norm3_w"], lp["norm3_b"]])

    vecs = jnp.stack([vec_rows(lp) for lp in layers]).astype(jnp.float32)

    apply_final_norm = params.get("norm_w", None) is not None
    if apply_final_norm:
        nf_w = params["norm_w"].reshape(1, E).astype(jnp.float32)
        nf_b = params["norm_b"].reshape(1, E).astype(jnp.float32)
    else:
        nf_w = jnp.ones((1, E), jnp.float32)
        nf_b = jnp.zeros((1, E), jnp.float32)

    # Activations & final-norm params: constant index_map -> fetched once,
    # resident in VMEM across the whole layer grid.  Per-layer params indexed
    # by the layer id so layer l+1 weights prefetch while layer l computes.
    row_q = pl.BlockSpec((B * Lq, E), lambda l: (0, 0))
    row_k = pl.BlockSpec((B * S, E), lambda l: (0, 0))
    w_ee = pl.BlockSpec((1, E, E), lambda l: (l, 0, 0))
    w_fe = pl.BlockSpec((1, dff, E), lambda l: (l, 0, 0))
    w_ef = pl.BlockSpec((1, E, dff), lambda l: (l, 0, 0))
    b_f = pl.BlockSpec((1, 1, dff), lambda l: (l, 0, 0))
    v_e = pl.BlockSpec((1, _NUM_VECS, E), lambda l: (l, 0, 0))
    nf_s = pl.BlockSpec((1, E), lambda l: (0, 0))

    if return_intermediate:
        out_shape = jax.ShapeDtypeStruct((L, B * Lq, E), tgt.dtype)
        out_spec = pl.BlockSpec((1, B * Lq, E), lambda l: (l, 0, 0))
    else:
        out_shape = jax.ShapeDtypeStruct((B * Lq, E), tgt.dtype)
        out_spec = pl.BlockSpec((B * Lq, E), lambda l: (0, 0))

    out = pl.pallas_call(
        partial(_decoder_kernel, B=B, Lq=Lq, S=S, nhead=nhead, eps=eps,
                cdt=cdt, apply_final_norm=apply_final_norm,
                return_intermediate=return_intermediate),
        out_shape=out_shape,
        grid=(L,),
        in_specs=[row_q, row_q, row_k, row_k,
                  w_ee, w_ee, w_ee, w_ee,
                  w_ee, w_ee, w_ee, w_ee,
                  w_fe, w_ef, b_f, v_e, nf_s, nf_s],
        out_specs=out_spec,
        scratch_shapes=[pltpu.VMEM((B * Lq, E), jnp.float32),   # activation
                        pltpu.VMEM((B * Lq, E), jnp.float32)],  # per-head attn
        compiler_params=pltpu.CompilerParams(
            dimension_semantics=("arbitrary",)),   # layers are sequential
    )(x_rows, qp_rows, mem_rows, pos_rows,
      sa_wq, sa_wk, sa_wv, sa_wo, ca_wq, ca_wk, ca_wv, ca_wo,
      w1, w2, b1, vecs, nf_w, nf_b)

    if return_intermediate:
        out = out.reshape(L, B, Lq, E)
        return jnp.transpose(out, (0, 2, 1, 3))              # (L, Lq, B, E)
    out = out.reshape(B, Lq, E)
    return jnp.transpose(out, (1, 0, 2))[None]               # output.unsqueeze(0)


# ----------------------------------------------------------------------------
# Pure-JAX f32 reference (for the in-script correctness check)
# ----------------------------------------------------------------------------
def _reference_decoder(params, tgt, memory, pos, query_pos, *, nhead, eps=1e-5):
    def ln(x, w, b):
        mu = x.mean(-1, keepdims=True)
        var = ((x - mu) ** 2).mean(-1, keepdims=True)
        return (x - mu) / jnp.sqrt(var + eps) * w + b

    def mha(q_in, k_in, v_in, p):
        E = q_in.shape[-1]
        hd = E // nhead
        q = q_in @ p["wq"].T + p["bq"]
        k = k_in @ p["wk"].T + p["bk"]
        v = v_in @ p["wv"].T + p["bv"]

        def split(t):
            Bb, Ll, _ = t.shape
            return t.reshape(Bb, Ll, nhead, hd).transpose(0, 2, 1, 3)

        qh, kh, vh = split(q), split(k), split(v)
        s = jnp.einsum("bhqd,bhkd->bhqk", qh, kh) / math.sqrt(hd)
        a = jax.nn.softmax(s, axis=-1)
        o = jnp.einsum("bhqk,bhkd->bhqd", a, vh).transpose(0, 2, 1, 3)
        o = o.reshape(q.shape)
        return o @ p["wo"].T + p["bo"]

    x = jnp.transpose(tgt, (1, 0, 2))
    mem = jnp.transpose(memory, (1, 0, 2))
    mpos = jnp.transpose(pos, (1, 0, 2))
    qpos = jnp.transpose(query_pos, (1, 0, 2))
    for lp in params["layers"]:
        q = x + qpos
        x = ln(x + mha(q, q, x, lp["self_attn"]), lp["norm1_w"], lp["norm1_b"])
        x = ln(x + mha(x + qpos, mem + mpos, mem, lp["cross_attn"]),
               lp["norm2_w"], lp["norm2_b"])
        h = jnp.maximum(x @ lp["w1"].T + lp["b1"], 0.0)
        x = ln(x + h @ lp["w2"].T + lp["b2"], lp["norm3_w"], lp["norm3_b"])
    if params.get("norm_w", None) is not None:
        x = ln(x, params["norm_w"], params["norm_b"])
    return jnp.transpose(x, (1, 0, 2))[None]


# ----------------------------------------------------------------------------
# Deterministic parameter init (xavier matrices, zero biases, LN w=1 / b=0)
# ----------------------------------------------------------------------------
def _xavier(key, shape):
    fan_out, fan_in = shape
    limit = math.sqrt(6.0 / (fan_in + fan_out))
    return jax.random.uniform(key, shape, jnp.float32, -limit, limit)


def _init_mha(key, d_model):
    ks = jax.random.split(key, 4)
    z = jnp.zeros((d_model,), jnp.float32)
    return dict(wq=_xavier(ks[0], (d_model, d_model)), bq=z,
                wk=_xavier(ks[1], (d_model, d_model)), bk=z,
                wv=_xavier(ks[2], (d_model, d_model)), bv=z,
                wo=_xavier(ks[3], (d_model, d_model)), bo=z)


def _init_dec_layer(key, d_model, dff):
    ks = jax.random.split(key, 4)
    one = jnp.ones((d_model,), jnp.float32)
    zero = jnp.zeros((d_model,), jnp.float32)
    return dict(
        self_attn=_init_mha(ks[0], d_model),
        cross_attn=_init_mha(ks[1], d_model),
        w1=_xavier(ks[2], (dff, d_model)), b1=jnp.zeros((dff,), jnp.float32),
        w2=_xavier(ks[3], (d_model, dff)), b2=zero,
        norm1_w=one, norm1_b=zero,
        norm2_w=one, norm2_b=zero,
        norm3_w=one, norm3_b=zero,
    )


def init_decoder_params(key, d_model, dff, num_layers):
    keys = jax.random.split(key, num_layers)
    return dict(
        layers=[_init_dec_layer(keys[i], d_model, dff) for i in range(num_layers)],
        norm_w=jnp.ones((d_model,), jnp.float32),
        norm_b=jnp.zeros((d_model,), jnp.float32),
    )


# ----------------------------------------------------------------------------
if __name__ == "__main__":
    d_model, nhead = 32, 4
    num_layers = 2
    dff = 64
    bs = 2
    num_queries = 8        # target sequence length
    mem_len = 16           # memory sequence length

    key = jax.random.PRNGKey(0)
    kp, k1, k2, k3, k4 = jax.random.split(key, 5)
    params = init_decoder_params(kp, d_model, dff, num_layers)

    tgt = jax.random.normal(k1, (num_queries, bs, d_model), jnp.float32)
    memory = jax.random.normal(k2, (mem_len, bs, d_model), jnp.float32)
    pos = jax.random.normal(k3, (mem_len, bs, d_model), jnp.float32)
    query_pos = jax.random.normal(k4, (num_queries, bs, d_model), jnp.float32)

    # default (bf16 MXU operands) path
    fwd = jax.jit(partial(transformer_decoder_forward, nhead=nhead))
    out = fwd(params, tgt, memory, pos=pos, query_pos=query_pos)
    jax.block_until_ready(out)
    assert out.shape == (1, num_queries, bs, d_model), out.shape
    assert bool(jnp.all(jnp.isfinite(out)))

    # correctness check: f32-operand kernel path vs pure-JAX reference (tight),
    # bf16 path vs reference (loose — bf16 MXU rounding + approx reciprocal)
    ref = _reference_decoder(params, tgt, memory, pos, query_pos, nhead=nhead)
    out_f32 = jax.jit(partial(transformer_decoder_forward, nhead=nhead,
                              compute_dtype=jnp.float32))(
        params, tgt, memory, pos=pos, query_pos=query_pos)
    jax.block_until_ready(out_f32)
    err_f32 = float(jnp.max(jnp.abs(out_f32 - ref)))
    err_bf16 = float(jnp.max(jnp.abs(out - ref)))
    assert err_f32 < 5e-2, f"f32-path max abs error vs reference: {err_f32}"
    assert err_bf16 < 3e-1, f"bf16-path max abs error vs reference: {err_bf16}"

    print("KERNEL_OK")
</pallas_src>

<mosaic_0001>
module attributes {stable_mosaic.version = 11 : i64} {
  func.func @_decoder_kernel(%arg0: i32, %arg1: memref<16x32xf32, #tpu.memory_space<vmem>>, %arg2: memref<16x32xf32, #tpu.memory_space<vmem>>, %arg3: memref<32x32xf32, #tpu.memory_space<vmem>>, %arg4: memref<32x32xf32, #tpu.memory_space<vmem>>, %arg5: memref<1x32x32xbf16, #tpu.memory_space<vmem>>, %arg6: memref<1x32x32xbf16, #tpu.memory_space<vmem>>, %arg7: memref<1x32x32xbf16, #tpu.memory_space<vmem>>, %arg8: memref<1x32x32xbf16, #tpu.memory_space<vmem>>, %arg9: memref<1x32x32xbf16, #tpu.memory_space<vmem>>, %arg10: memref<1x32x32xbf16, #tpu.memory_space<vmem>>, %arg11: memref<1x32x32xbf16, #tpu.memory_space<vmem>>, %arg12: memref<1x32x32xbf16, #tpu.memory_space<vmem>>, %arg13: memref<1x64x32xbf16, #tpu.memory_space<vmem>>, %arg14: memref<1x32x64xbf16, #tpu.memory_space<vmem>>, %arg15: memref<1x1x64xf32, #tpu.memory_space<vmem>>, %arg16: memref<1x15x32xf32, #tpu.memory_space<vmem>>, %arg17: memref<1x32xf32, #tpu.memory_space<vmem>>, %arg18: memref<1x32xf32, #tpu.memory_space<vmem>>, %arg19: memref<16x32xf32, #tpu.memory_space<vmem>>, %arg20: memref<16x32xf32, #tpu.memory_space<vmem>>, %arg21: memref<16x32xf32, #tpu.memory_space<vmem>>) attributes {dimension_semantics = [#tpu.dimension_semantics<arbitrary>], iteration_bounds = array<i64: 2>, scalar_prefetch = 0 : i64, scratch_operands = 2 : i64, tpu.core_type = #tpu.core_type<tc>, window_params = [{pipeline_mode = #tpu.pipeline_mode<synchronous>, transform_indices = @transform_0, window_bounds = array<i64: 16, 32>}, {pipeline_mode = #tpu.pipeline_mode<synchronous>, transform_indices = @transform_1, window_bounds = array<i64: 16, 32>}, {pipeline_mode = #tpu.pipeline_mode<synchronous>, transform_indices = @transform_2, window_bounds = array<i64: 32, 32>}, {pipeline_mode = #tpu.pipeline_mode<synchronous>, transform_indices = @transform_3, window_bounds = array<i64: 32, 32>}, {transform_indices = @transform_4, window_bounds = array<i64: 1, 32, 32>}, {transform_indices = @transform_5, window_bounds = array<i64: 1, 32, 32>}, {transform_indices = @transform_6, window_bounds = array<i64: 1, 32, 32>}, {transform_indices = @transform_7, window_bounds = array<i64: 1, 32, 32>}, {transform_indices = @transform_8, window_bounds = array<i64: 1, 32, 32>}, {transform_indices = @transform_9, window_bounds = array<i64: 1, 32, 32>}, {transform_indices = @transform_10, window_bounds = array<i64: 1, 32, 32>}, {transform_indices = @transform_11, window_bounds = array<i64: 1, 32, 32>}, {transform_indices = @transform_12, window_bounds = array<i64: 1, 64, 32>}, {transform_indices = @transform_13, window_bounds = array<i64: 1, 32, 64>}, {transform_indices = @transform_14, window_bounds = array<i64: 1, 1, 64>}, {transform_indices = @transform_15, window_bounds = array<i64: 1, 15, 32>}, {pipeline_mode = #tpu.pipeline_mode<synchronous>, transform_indices = @transform_16, window_bounds = array<i64: 1, 32>}, {pipeline_mode = #tpu.pipeline_mode<synchronous>, transform_indices = @transform_17, window_bounds = array<i64: 1, 32>}, {pipeline_mode = #tpu.pipeline_mode<synchronous>, transform_indices = @transform_18, window_bounds = array<i64: 16, 32>}]} {
    %c0_i32 = arith.constant 0 : i32
    %0 = arith.cmpi eq, %arg0, %c0_i32 : i32
    %1 = arith.extui %0 : i1 to i32
    %c0_i32_0 = arith.constant 0 : i32
    %2 = arith.cmpi ne, %1, %c0_i32_0 : i32
    scf.if %2 {
      %c0_173 = arith.constant 0 : index
      %c0_174 = arith.constant 0 : index
      %506 = vector.load %arg1[%c0_173, %c0_174] : memref<16x32xf32, #tpu.memory_space<vmem>>, vector<16x32xf32>
      %c0_175 = arith.constant 0 : index
      %c0_176 = arith.constant 0 : index
      %507 = vector.load %arg20[%c0_175, %c0_176] : memref<16x32xf32, #tpu.memory_space<vmem>>, vector<16x32xf32>
      tpu.vector_store %arg20[%c0_175, %c0_176], %506 {strides = array<i32>} : memref<16x32xf32, #tpu.memory_space<vmem>>, vector<16x32xf32>,
    } else {
    }
    %c0 = arith.constant 0 : index
    %c0_1 = arith.constant 0 : index
    %c0_2 = arith.constant 0 : index
    %3 = vector.load %arg16[%c0, %c0_1, %c0_2] : memref<1x15x32xf32, #tpu.memory_space<vmem>>, vector<1x15x32xf32>
    %4 = vector.shape_cast %3 : vector<1x15x32xf32> to vector<15x32xf32>
    %c0_3 = arith.constant 0 : index
    %c0_4 = arith.constant 0 : index
    %5 = vector.load %arg20[%c0_3, %c0_4] : memref<16x32xf32, #tpu.memory_space<vmem>>, vector<16x32xf32>
    %c0_5 = arith.constant 0 : index
    %c0_6 = arith.constant 0 : index
    %6 = vector.load %arg2[%c0_5, %c0_6] : memref<16x32xf32, #tpu.memory_space<vmem>>, vector<16x32xf32>
    %7 = arith.addf %5, %6 : vector<16x32xf32>
    %c0_7 = arith.constant 0 : index
    %c0_8 = arith.constant 0 : index
    %c0_9 = arith.constant 0 : index
    %8 = vector.load %arg5[%c0_7, %c0_8, %c0_9] : memref<1x32x32xbf16, #tpu.memory_space<vmem>>, vector<1x32x32xbf16>
    %9 = vector.shape_cast %8 : vector<1x32x32xbf16> to vector<32x32xbf16>
    %10 = vector.extract_strided_slice %4 {offsets = [0, 0], sizes = [1, 32], strides = [1, 1]} : vector<15x32xf32> to vector<1x32xf32>
    %c0_10 = arith.constant 0 : index
    %c0_11 = arith.constant 0 : index
    %c0_12 = arith.constant 0 : index
    %11 = vector.load %arg6[%c0_10, %c0_11, %c0_12] : memref<1x32x32xbf16, #tpu.memory_space<vmem>>, vector<1x32x32xbf16>
    %12 = vector.shape_cast %11 : vector<1x32x32xbf16> to vector<32x32xbf16>
    %13 = vector.extract_strided_slice %4 {offsets = [1, 0], sizes = [1, 32], strides = [1, 1]} : vector<15x32xf32> to vector<1x32xf32>
    %c0_13 = arith.constant 0 : index
    %c0_14 = arith.constant 0 : index
    %c0_15 = arith.constant 0 : index
    %14 = vector.load %arg7[%c0_13, %c0_14, %c0_15] : memref<1x32x32xbf16, #tpu.memory_space<vmem>>, vector<1x32x32xbf16>
    %15 = vector.shape_cast %14 : vector<1x32x32xbf16> to vector<32x32xbf16>
    %16 = vector.extract_strided_slice %4 {offsets = [2, 0], sizes = [1, 32], strides = [1, 1]} : vector<15x32xf32> to vector<1x32xf32>
    %c0_16 = arith.constant 0 : index
    %c0_17 = arith.constant 0 : index
    %c0_18 = arith.constant 0 : index
    %17 = vector.load %arg8[%c0_16, %c0_17, %c0_18] : memref<1x32x32xbf16, #tpu.memory_space<vmem>>, vector<1x32x32xbf16>
    %18 = vector.shape_cast %17 : vector<1x32x32xbf16> to vector<32x32xbf16>
    %19 = vector.extract_strided_slice %4 {offsets = [3, 0], sizes = [1, 32], strides = [1, 1]} : vector<15x32xf32> to vector<1x32xf32>
    %20 = arith.truncf %7 : vector<16x32xf32> to vector<16x32xbf16>
    %cst = arith.constant dense<0.000000e+00> : vector<16x32xf32>
    %21 = tpu.matmul %20, %9, %cst {dimension_numbers = #tpu.dot_dimension_numbers<[1], [1], [0], [0], [0, 0, 1, 0], [], []>} : vector<16x32xbf16>, vector<32x32xbf16>, vector<16x32xf32> -> vector<16x32xf32>
    %22 = vector.broadcast %10 : vector<1x32xf32> to vector<16x32xf32>
    %23 = arith.addf %21, %22 : vector<16x32xf32>
    %24 = arith.truncf %7 : vector<16x32xf32> to vector<16x32xbf16>
    %cst_19 = arith.constant dense<0.000000e+00> : vector<16x32xf32>
    %25 = tpu.matmul %24, %12, %cst_19 {dimension_numbers = #tpu.dot_dimension_numbers<[1], [1], [0], [0], [0, 0, 1, 0], [], []>} : vector<16x32xbf16>, vector<32x32xbf16>, vector<16x32xf32> -> vector<16x32xf32>
    %26 = vector.broadcast %13 : vector<1x32xf32> to vector<16x32xf32>
    %27 = arith.addf %25, %26 : vector<16x32xf32>
    %28 = arith.truncf %5 : vector<16x32xf32> to vector<16x32xbf16>
    %cst_20 = arith.constant dense<0.000000e+00> : vector<16x32xf32>
    %29 = tpu.matmul %28, %15, %cst_20 {dimension_numbers = #tpu.dot_dimension_numbers<[1], [1], [0], [0], [0, 0, 1, 0], [], []>} : vector<16x32xbf16>, vector<32x32xbf16>, vector<16x32xf32> -> vector<16x32xf32>
    %30 = vector.broadcast %16 : vector<1x32xf32> to vector<16x32xf32>
    %31 = arith.addf %29, %30 : vector<16x32xf32>
    %32 = vector.extract_strided_slice %23 {offsets = [0, 0], sizes = [8, 32], strides = [1, 1]} : vector<16x32xf32> to vector<8x32xf32>
    %33 = vector.extract_strided_slice %27 {offsets = [0, 0], sizes = [8, 32], strides = [1, 1]} : vector<16x32xf32> to vector<8x32xf32>
    %34 = vector.extract_strided_slice %31 {offsets = [0, 0], sizes = [8, 32], strides = [1, 1]} : vector<16x32xf32> to vector<8x32xf32>
    %35 = vector.extract_strided_slice %32 {offsets = [0, 0], sizes = [8, 8], strides = [1, 1]} : vector<8x32xf32> to vector<8x8xf32>
    %36 = arith.truncf %35 : vector<8x8xf32> to vector<8x8xbf16>
    %37 = vector.extract_strided_slice %33 {offsets = [0, 0], sizes = [8, 8], strides = [1, 1]} : vector<8x32xf32> to vector<8x8xf32>
    %38 = arith.truncf %37 : vector<8x8xf32> to vector<8x8xbf16>
    %cst_21 = arith.constant dense<0.000000e+00> : vector<8x8xf32>
    %39 = tpu.matmul %36, %38, %cst_21 {dimension_numbers = #tpu.dot_dimension_numbers<[1], [1], [0], [0], [0, 0, 1, 0], [], []>} : vector<8x8xbf16>, vector<8x8xbf16>, vector<8x8xf32> -> vector<8x8xf32>
    %cst_22 = arith.constant dense<0xFF800000> : vector<8xf32>
    %40 = vector.multi_reduction <maximumf>, %39, %cst_22 [1] : vector<8x8xf32> to vector<8xf32>
    %41 = vector.shape_cast %40 : vector<8xf32> to vector<8x1xf32>
    %42 = vector.broadcast %41 : vector<8x1xf32> to vector<8x8xf32>
    %43 = arith.subf %39, %42 : vector<8x8xf32>
    %44 = math.exp %43 : vector<8x8xf32>
    %cst_23 = arith.constant dense<0.000000e+00> : vector<8xf32>
    %45 = vector.multi_reduction <add>, %44, %cst_23 [1] : vector<8x8xf32> to vector<8xf32>
    %46 = vector.shape_cast %45 : vector<8xf32> to vector<8x1xf32>
    %47 = tpu.reciprocal %46 {approx = true} : vector<8x1xf32> -> vector<8x1xf32>
    %48 = vector.broadcast %47 : vector<8x1xf32> to vector<8x8xf32>
    %49 = arith.mulf %44, %48 : vector<8x8xf32>
    %50 = arith.truncf %49 : vector<8x8xf32> to vector<8x8xbf16>
    %51 = vector.extract_strided_slice %34 {offsets = [0, 0], sizes = [8, 8], strides = [1, 1]} : vector<8x32xf32> to vector<8x8xf32>
    %52 = arith.truncf %51 : vector<8x8xf32> to vector<8x8xbf16>
    %cst_24 = arith.constant dense<0.000000e+00> : vector<8x8xf32>
    %53 = tpu.matmul %50, %52, %cst_24 {dimension_numbers = #tpu.dot_dimension_numbers<[1], [0], [0], [1], [0, 0, 1, 1], [], []>} : vector<8x8xbf16>, vector<8x8xbf16>, vector<8x8xf32> -> vector<8x8xf32>
    %c0_25 = arith.constant 0 : index
    %c0_26 = arith.constant 0 : index
    %54 = vector.load %arg21[%c0_25, %c0_26] : memref<16x32xf32, #tpu.memory_space<vmem>>, vector<8x8xf32>
    tpu.vector_store %arg21[%c0_25, %c0_26], %53 {strides = array<i32>} : memref<16x32xf32, #tpu.memory_space<vmem>>, vector<8x8xf32>,
    %55 = vector.extract_strided_slice %32 {offsets = [0, 8], sizes = [8, 8], strides = [1, 1]} : vector<8x32xf32> to vector<8x8xf32>
    %56 = arith.truncf %55 : vector<8x8xf32> to vector<8x8xbf16>
    %57 = vector.extract_strided_slice %33 {offsets = [0, 8], sizes = [8, 8], strides = [1, 1]} : vector<8x32xf32> to vector<8x8xf32>
    %58 = arith.truncf %57 : vector<8x8xf32> to vector<8x8xbf16>
    %cst_27 = arith.constant dense<0.000000e+00> : vector<8x8xf32>
    %59 = tpu.matmul %56, %58, %cst_27 {dimension_numbers = #tpu.dot_dimension_numbers<[1], [1], [0], [0], [0, 0, 1, 0], [], []>} : vector<8x8xbf16>, vector<8x8xbf16>, vector<8x8xf32> -> vector<8x8xf32>
    %cst_28 = arith.constant dense<0xFF800000> : vector<8xf32>
    %60 = vector.multi_reduction <maximumf>, %59, %cst_28 [1] : vector<8x8xf32> to vector<8xf32>
    %61 = vector.shape_cast %60 : vector<8xf32> to vector<8x1xf32>
    %62 = vector.broadcast %61 : vector<8x1xf32> to vector<8x8xf32>
    %63 = arith.subf %59, %62 : vector<8x8xf32>
    %64 = math.exp %63 : vector<8x8xf32>
    %cst_29 = arith.constant dense<0.000000e+00> : vector<8xf32>
    %65 = vector.multi_reduction <add>, %64, %cst_29 [1] : vector<8x8xf32> to vector<8xf32>
    %66 = vector.shape_cast %65 : vector<8xf32> to vector<8x1xf32>
    %67 = tpu.reciprocal %66 {approx = true} : vector<8x1xf32> -> vector<8x1xf32>
    %68 = vector.broadcast %67 : vector<8x1xf32> to vector<8x8xf32>
    %69 = arith.mulf %64, %68 : vector<8x8xf32>
    %70 = arith.truncf %69 : vector<8x8xf32> to vector<8x8xbf16>
    %71 = vector.extract_strided_slice %34 {offsets = [0, 8], sizes = [8, 8], strides = [1, 1]} : vector<8x32xf32> to vector<8x8xf32>
    %72 = arith.truncf %71 : vector<8x8xf32> to vector<8x8xbf16>
    %cst_30 = arith.constant dense<0.000000e+00> : vector<8x8xf32>
    %73 = tpu.matmul %70, %72, %cst_30 {dimension_numbers = #tpu.dot_dimension_numbers<[1], [0], [0], [1], [0, 0, 1, 1], [], []>} : vector<8x8xbf16>, vector<8x8xbf16>, vector<8x8xf32> -> vector<8x8xf32>
    %c0_31 = arith.constant 0 : index
    %c8 = arith.constant 8 : index
    %74 = vector.load %arg21[%c0_31, %c8] : memref<16x32xf32, #tpu.memory_space<vmem>>, vector<8x8xf32>
    tpu.vector_store %arg21[%c0_31, %c8], %73 {strides = array<i32>} : memref<16x32xf32, #tpu.memory_space<vmem>>, vector<8x8xf32>,
    %75 = vector.extract_strided_slice %32 {offsets = [0, 16], sizes = [8, 8], strides = [1, 1]} : vector<8x32xf32> to vector<8x8xf32>
    %76 = arith.truncf %75 : vector<8x8xf32> to vector<8x8xbf16>
    %77 = vector.extract_strided_slice %33 {offsets = [0, 16], sizes = [8, 8], strides = [1, 1]} : vector<8x32xf32> to vector<8x8xf32>
    %78 = arith.truncf %77 : vector<8x8xf32> to vector<8x8xbf16>
    %cst_32 = arith.constant dense<0.000000e+00> : vector<8x8xf32>
    %79 = tpu.matmul %76, %78, %cst_32 {dimension_numbers = #tpu.dot_dimension_numbers<[1], [1], [0], [0], [0, 0, 1, 0], [], []>} : vector<8x8xbf16>, vector<8x8xbf16>, vector<8x8xf32> -> vector<8x8xf32>
    %cst_33 = arith.constant dense<0xFF800000> : vector<8xf32>
    %80 = vector.multi_reduction <maximumf>, %79, %cst_33 [1] : vector<8x8xf32> to vector<8xf32>
    %81 = vector.shape_cast %80 : vector<8xf32> to vector<8x1xf32>
    %82 = vector.broadcast %81 : vector<8x1xf32> to vector<8x8xf32>
    %83 = arith.subf %79, %82 : vector<8x8xf32>
    %84 = math.exp %83 : vector<8x8xf32>
    %cst_34 = arith.constant dense<0.000000e+00> : vector<8xf32>
    %85 = vector.multi_reduction <add>, %84, %cst_34 [1] : vector<8x8xf32> to vector<8xf32>
    %86 = vector.shape_cast %85 : vector<8xf32> to vector<8x1xf32>
    %87 = tpu.reciprocal %86 {approx = true} : vector<8x1xf32> -> vector<8x1xf32>
    %88 = vector.broadcast %87 : vector<8x1xf32> to vector<8x8xf32>
    %89 = arith.mulf %84, %88 : vector<8x8xf32>
    %90 = arith.truncf %89 : vector<8x8xf32> to vector<8x8xbf16>
    %91 = vector.extract_strided_slice %34 {offsets = [0, 16], sizes = [8, 8], strides = [1, 1]} : vector<8x32xf32> to vector<8x8xf32>
    %92 = arith.truncf %91 : vector<8x8xf32> to vector<8x8xbf16>
    %cst_35 = arith.constant dense<0.000000e+00> : vector<8x8xf32>
    %93 = tpu.matmul %90, %92, %cst_35 {dimension_numbers = #tpu.dot_dimension_numbers<[1], [0], [0], [1], [0, 0, 1, 1], [], []>} : vector<8x8xbf16>, vector<8x8xbf16>, vector<8x8xf32> -> vector<8x8xf32>
    %c0_36 = arith.constant 0 : index
    %c16 = arith.constant 16 : index
    %94 = vector.load %arg21[%c0_36, %c16] : memref<16x32xf32, #tpu.memory_space<vmem>>, vector<8x8xf32>
    tpu.vector_store %arg21[%c0_36, %c16], %93 {strides = array<i32>} : memref<16x32xf32, #tpu.memory_space<vmem>>, vector<8x8xf32>,
    %95 = vector.extract_strided_slice %32 {offsets = [0, 24], sizes = [8, 8], strides = [1, 1]} : vector<8x32xf32> to vector<8x8xf32>
    %96 = arith.truncf %95 : vector<8x8xf32> to vector<8x8xbf16>
    %97 = vector.extract_strided_slice %33 {offsets = [0, 24], sizes = [8, 8], strides = [1, 1]} : vector<8x32xf32> to vector<8x8xf32>
    %98 = arith.truncf %97 : vector<8x8xf32> to vector<8x8xbf16>
    %cst_37 = arith.constant dense<0.000000e+00> : vector<8x8xf32>
    %99 = tpu.matmul %96, %98, %cst_37 {dimension_numbers = #tpu.dot_dimension_numbers<[1], [1], [0], [0], [0, 0, 1, 0], [], []>} : vector<8x8xbf16>, vector<8x8xbf16>, vector<8x8xf32> -> vector<8x8xf32>
    %cst_38 = arith.constant dense<0xFF800000> : vector<8xf32>
    %100 = vector.multi_reduction <maximumf>, %99, %cst_38 [1] : vector<8x8xf32> to vector<8xf32>
    %101 = vector.shape_cast %100 : vector<8xf32> to vector<8x1xf32>
    %102 = vector.broadcast %101 : vector<8x1xf32> to vector<8x8xf32>
    %103 = arith.subf %99, %102 : vector<8x8xf32>
    %104 = math.exp %103 : vector<8x8xf32>
    %cst_39 = arith.constant dense<0.000000e+00> : vector<8xf32>
    %105 = vector.multi_reduction <add>, %104, %cst_39 [1] : vector<8x8xf32> to vector<8xf32>
    %106 = vector.shape_cast %105 : vector<8xf32> to vector<8x1xf32>
    %107 = tpu.reciprocal %106 {approx = true} : vector<8x1xf32> -> vector<8x1xf32>
    %108 = vector.broadcast %107 : vector<8x1xf32> to vector<8x8xf32>
    %109 = arith.mulf %104, %108 : vector<8x8xf32>
    %110 = arith.truncf %109 : vector<8x8xf32> to vector<8x8xbf16>
    %111 = vector.extract_strided_slice %34 {offsets = [0, 24], sizes = [8, 8], strides = [1, 1]} : vector<8x32xf32> to vector<8x8xf32>
    %112 = arith.truncf %111 : vector<8x8xf32> to vector<8x8xbf16>
    %cst_40 = arith.constant dense<0.000000e+00> : vector<8x8xf32>
    %113 = tpu.matmul %110, %112, %cst_40 {dimension_numbers = #tpu.dot_dimension_numbers<[1], [0], [0], [1], [0, 0, 1, 1], [], []>} : vector<8x8xbf16>, vector<8x8xbf16>, vector<8x8xf32> -> vector<8x8xf32>
    %c0_41 = arith.constant 0 : index
    %c24 = arith.constant 24 : index
    %114 = vector.load %arg21[%c0_41, %c24] : memref<16x32xf32, #tpu.memory_space<vmem>>, vector<8x8xf32>
    tpu.vector_store %arg21[%c0_41, %c24], %113 {strides = array<i32>} : memref<16x32xf32, #tpu.memory_space<vmem>>, vector<8x8xf32>,
    %115 = vector.extract_strided_slice %23 {offsets = [8, 0], sizes = [8, 32], strides = [1, 1]} : vector<16x32xf32> to vector<8x32xf32>
    %116 = vector.extract_strided_slice %27 {offsets = [8, 0], sizes = [8, 32], strides = [1, 1]} : vector<16x32xf32> to vector<8x32xf32>
    %117 = vector.extract_strided_slice %31 {offsets = [8, 0], sizes = [8, 32], strides = [1, 1]} : vector<16x32xf32> to vector<8x32xf32>
    %118 = vector.extract_strided_slice %115 {offsets = [0, 0], sizes = [8, 8], strides = [1, 1]} : vector<8x32xf32> to vector<8x8xf32>
    %119 = arith.truncf %118 : vector<8x8xf32> to vector<8x8xbf16>
    %120 = vector.extract_strided_slice %116 {offsets = [0, 0], sizes = [8, 8], strides = [1, 1]} : vector<8x32xf32> to vector<8x8xf32>
    %121 = arith.truncf %120 : vector<8x8xf32> to vector<8x8xbf16>
    %cst_42 = arith.constant dense<0.000000e+00> : vector<8x8xf32>
    %122 = tpu.matmul %119, %121, %cst_42 {dimension_numbers = #tpu.dot_dimension_numbers<[1], [1], [0], [0], [0, 0, 1, 0], [], []>} : vector<8x8xbf16>, vector<8x8xbf16>, vector<8x8xf32> -> vector<8x8xf32>
    %cst_43 = arith.constant dense<0xFF800000> : vector<8xf32>
    %123 = vector.multi_reduction <maximumf>, %122, %cst_43 [1] : vector<8x8xf32> to vector<8xf32>
    %124 = vector.shape_cast %123 : vector<8xf32> to vector<8x1xf32>
    %125 = vector.broadcast %124 : vector<8x1xf32> to vector<8x8xf32>
    %126 = arith.subf %122, %125 : vector<8x8xf32>
    %127 = math.exp %126 : vector<8x8xf32>
    %cst_44 = arith.constant dense<0.000000e+00> : vector<8xf32>
    %128 = vector.multi_reduction <add>, %127, %cst_44 [1] : vector<8x8xf32> to vector<8xf32>
    %129 = vector.shape_cast %128 : vector<8xf32> to vector<8x1xf32>
    %130 = tpu.reciprocal %129 {approx = true} : vector<8x1xf32> -> vector<8x1xf32>
    %131 = vector.broadcast %130 : vector<8x1xf32> to vector<8x8xf32>
    %132 = arith.mulf %127, %131 : vector<8x8xf32>
    %133 = arith.truncf %132 : vector<8x8xf32> to vector<8x8xbf16>
    %134 = vector.extract_strided_slice %117 {offsets = [0, 0], sizes = [8, 8], strides = [1, 1]} : vector<8x32xf32> to vector<8x8xf32>
    %135 = arith.truncf %134 : vector<8x8xf32> to vector<8x8xbf16>
    %cst_45 = arith.constant dense<0.000000e+00> : vector<8x8xf32>
    %136 = tpu.matmul %133, %135, %cst_45 {dimension_numbers = #tpu.dot_dimension_numbers<[1], [0], [0], [1], [0, 0, 1, 1], [], []>} : vector<8x8xbf16>, vector<8x8xbf16>, vector<8x8xf32> -> vector<8x8xf32>
    %c8_46 = arith.constant 8 : index
    %c0_47 = arith.constant 0 : index
    %137 = vector.load %arg21[%c8_46, %c0_47] : memref<16x32xf32, #tpu.memory_space<vmem>>, vector<8x8xf32>
    tpu.vector_store %arg21[%c8_46, %c0_47], %136 {strides = array<i32>} : memref<16x32xf32, #tpu.memory_space<vmem>>, vector<8x8xf32>,
    %138 = vector.extract_strided_slice %115 {offsets = [0, 8], sizes = [8, 8], strides = [1, 1]} : vector<8x32xf32> to vector<8x8xf32>
    %139 = arith.truncf %138 : vector<8x8xf32> to vector<8x8xbf16>
    %140 = vector.extract_strided_slice %116 {offsets = [0, 8], sizes = [8, 8], strides = [1, 1]} : vector<8x32xf32> to vector<8x8xf32>
    %141 = arith.truncf %140 : vector<8x8xf32> to vector<8x8xbf16>
    %cst_48 = arith.constant dense<0.000000e+00> : vector<8x8xf32>
    %142 = tpu.matmul %139, %141, %cst_48 {dimension_numbers = #tpu.dot_dimension_numbers<[1], [1], [0], [0], [0, 0, 1, 0], [], []>} : vector<8x8xbf16>, vector<8x8xbf16>, vector<8x8xf32> -> vector<8x8xf32>
    %cst_49 = arith.constant dense<0xFF800000> : vector<8xf32>
    %143 = vector.multi_reduction <maximumf>, %142, %cst_49 [1] : vector<8x8xf32> to vector<8xf32>
    %144 = vector.shape_cast %143 : vector<8xf32> to vector<8x1xf32>
    %145 = vector.broadcast %144 : vector<8x1xf32> to vector<8x8xf32>
    %146 = arith.subf %142, %145 : vector<8x8xf32>
    %147 = math.exp %146 : vector<8x8xf32>
    %cst_50 = arith.constant dense<0.000000e+00> : vector<8xf32>
    %148 = vector.multi_reduction <add>, %147, %cst_50 [1] : vector<8x8xf32> to vector<8xf32>
    %149 = vector.shape_cast %148 : vector<8xf32> to vector<8x1xf32>
    %150 = tpu.reciprocal %149 {approx = true} : vector<8x1xf32> -> vector<8x1xf32>
    %151 = vector.broadcast %150 : vector<8x1xf32> to vector<8x8xf32>
    %152 = arith.mulf %147, %151 : vector<8x8xf32>
    %153 = arith.truncf %152 : vector<8x8xf32> to vector<8x8xbf16>
    %154 = vector.extract_strided_slice %117 {offsets = [0, 8], sizes = [8, 8], strides = [1, 1]} : vector<8x32xf32> to vector<8x8xf32>
    %155 = arith.truncf %154 : vector<8x8xf32> to vector<8x8xbf16>
    %cst_51 = arith.constant dense<0.000000e+00> : vector<8x8xf32>
    %156 = tpu.matmul %153, %155, %cst_51 {dimension_numbers = #tpu.dot_dimension_numbers<[1], [0], [0], [1], [0, 0, 1, 1], [], []>} : vector<8x8xbf16>, vector<8x8xbf16>, vector<8x8xf32> -> vector<8x8xf32>
    %c8_52 = arith.constant 8 : index
    %c8_53 = arith.constant 8 : index
    %157 = vector.load %arg21[%c8_52, %c8_53] : memref<16x32xf32, #tpu.memory_space<vmem>>, vector<8x8xf32>
    tpu.vector_store %arg21[%c8_52, %c8_53], %156 {strides = array<i32>} : memref<16x32xf32, #tpu.memory_space<vmem>>, vector<8x8xf32>,
    %158 = vector.extract_strided_slice %115 {offsets = [0, 16], sizes = [8, 8], strides = [1, 1]} : vector<8x32xf32> to vector<8x8xf32>
    %159 = arith.truncf %158 : vector<8x8xf32> to vector<8x8xbf16>
    %160 = vector.extract_strided_slice %116 {offsets = [0, 16], sizes = [8, 8], strides = [1, 1]} : vector<8x32xf32> to vector<8x8xf32>
    %161 = arith.truncf %160 : vector<8x8xf32> to vector<8x8xbf16>
    %cst_54 = arith.constant dense<0.000000e+00> : vector<8x8xf32>
    %162 = tpu.matmul %159, %161, %cst_54 {dimension_numbers = #tpu.dot_dimension_numbers<[1], [1], [0], [0], [0, 0, 1, 0], [], []>} : vector<8x8xbf16>, vector<8x8xbf16>, vector<8x8xf32> -> vector<8x8xf32>
    %cst_55 = arith.constant dense<0xFF800000> : vector<8xf32>
    %163 = vector.multi_reduction <maximumf>, %162, %cst_55 [1] : vector<8x8xf32> to vector<8xf32>
    %164 = vector.shape_cast %163 : vector<8xf32> to vector<8x1xf32>
    %165 = vector.broadcast %164 : vector<8x1xf32> to vector<8x8xf32>
    %166 = arith.subf %162, %165 : vector<8x8xf32>
    %167 = math.exp %166 : vector<8x8xf32>
    %cst_56 = arith.constant dense<0.000000e+00> : vector<8xf32>
    %168 = vector.multi_reduction <add>, %167, %cst_56 [1] : vector<8x8xf32> to vector<8xf32>
    %169 = vector.shape_cast %168 : vector<8xf32> to vector<8x1xf32>
    %170 = tpu.reciprocal %169 {approx = true} : vector<8x1xf32> -> vector<8x1xf32>
    %171 = vector.broadcast %170 : vector<8x1xf32> to vector<8x8xf32>
    %172 = arith.mulf %167, %171 : vector<8x8xf32>
    %173 = arith.truncf %172 : vector<8x8xf32> to vector<8x8xbf16>
    %174 = vector.extract_strided_slice %117 {offsets = [0, 16], sizes = [8, 8], strides = [1, 1]} : vector<8x32xf32> to vector<8x8xf32>
    %175 = arith.truncf %174 : vector<8x8xf32> to vector<8x8xbf16>
    %cst_57 = arith.constant dense<0.000000e+00> : vector<8x8xf32>
    %176 = tpu.matmul %173, %175, %cst_57 {dimension_numbers = #tpu.dot_dimension_numbers<[1], [0], [0], [1], [0, 0, 1, 1], [], []>} : vector<8x8xbf16>, vector<8x8xbf16>, vector<8x8xf32> -> vector<8x8xf32>
    %c8_58 = arith.constant 8 : index
    %c16_59 = arith.constant 16 : index
    %177 = vector.load %arg21[%c8_58, %c16_59] : memref<16x32xf32, #tpu.memory_space<vmem>>, vector<8x8xf32>
    tpu.vector_store %arg21[%c8_58, %c16_59], %176 {strides = array<i32>} : memref<16x32xf32, #tpu.memory_space<vmem>>, vector<8x8xf32>,
    %178 = vector.extract_strided_slice %115 {offsets = [0, 24], sizes = [8, 8], strides = [1, 1]} : vector<8x32xf32> to vector<8x8xf32>
    %179 = arith.truncf %178 : vector<8x8xf32> to vector<8x8xbf16>
    %180 = vector.extract_strided_slice %116 {offsets = [0, 24], sizes = [8, 8], strides = [1, 1]} : vector<8x32xf32> to vector<8x8xf32>
    %181 = arith.truncf %180 : vector<8x8xf32> to vector<8x8xbf16>
    %cst_60 = arith.constant dense<0.000000e+00> : vector<8x8xf32>
    %182 = tpu.matmul %179, %181, %cst_60 {dimension_numbers = #tpu.dot_dimension_numbers<[1], [1], [0], [0], [0, 0, 1, 0], [], []>} : vector<8x8xbf16>, vector<8x8xbf16>, vector<8x8xf32> -> vector<8x8xf32>
    %cst_61 = arith.constant dense<0xFF800000> : vector<8xf32>
    %183 = vector.multi_reduction <maximumf>, %182, %cst_61 [1] : vector<8x8xf32> to vector<8xf32>
    %184 = vector.shape_cast %183 : vector<8xf32> to vector<8x1xf32>
    %185 = vector.broadcast %184 : vector<8x1xf32> to vector<8x8xf32>
    %186 = arith.subf %182, %185 : vector<8x8xf32>
    %187 = math.exp %186 : vector<8x8xf32>
    %cst_62 = arith.constant dense<0.000000e+00> : vector<8xf32>
    %188 = vector.multi_reduction <add>, %187, %cst_62 [1] : vector<8x8xf32> to vector<8xf32>
    %189 = vector.shape_cast %188 : vector<8xf32> to vector<8x1xf32>
    %190 = tpu.reciprocal %189 {approx = true} : vector<8x1xf32> -> vector<8x1xf32>
    %191 = vector.broadcast %190 : vector<8x1xf32> to vector<8x8xf32>
    %192 = arith.mulf %187, %191 : vector<8x8xf32>
    %193 = arith.truncf %192 : vector<8x8xf32> to vector<8x8xbf16>
    %194 = vector.extract_strided_slice %117 {offsets = [0, 24], sizes = [8, 8], strides = [1, 1]} : vector<8x32xf32> to vector<8x8xf32>
    %195 = arith.truncf %194 : vector<8x8xf32> to vector<8x8xbf16>
    %cst_63 = arith.constant dense<0.000000e+00> : vector<8x8xf32>
    %196 = tpu.matmul %193, %195, %cst_63 {dimension_numbers = #tpu.dot_dimension_numbers<[1], [0], [0], [1], [0, 0, 1, 1], [], []>} : vector<8x8xbf16>, vector<8x8xbf16>, vector<8x8xf32> -> vector<8x8xf32>
    %c8_64 = arith.constant 8 : index
    %c24_65 = arith.constant 24 : index
    %197 = vector.load %arg21[%c8_64, %c24_65] : memref<16x32xf32, #tpu.memory_space<vmem>>, vector<8x8xf32>
    tpu.vector_store %arg21[%c8_64, %c24_65], %196 {strides = array<i32>} : memref<16x32xf32, #tpu.memory_space<vmem>>, vector<8x8xf32>,
    %c0_66 = arith.constant 0 : index
    %c0_67 = arith.constant 0 : index
    %198 = vector.load %arg21[%c0_66, %c0_67] : memref<16x32xf32, #tpu.memory_space<vmem>>, vector<16x32xf32>
    %199 = arith.truncf %198 : vector<16x32xf32> to vector<16x32xbf16>
    %cst_68 = arith.constant dense<0.000000e+00> : vector<16x32xf32>
    %200 = tpu.matmul %199, %18, %cst_68 {dimension_numbers = #tpu.dot_dimension_numbers<[1], [1], [0], [0], [0, 0, 1, 0], [], []>} : vector<16x32xbf16>, vector<32x32xbf16>, vector<16x32xf32> -> vector<16x32xf32>
    %201 = vector.broadcast %19 : vector<1x32xf32> to vector<16x32xf32>
    %202 = arith.addf %200, %201 : vector<16x32xf32>
    %203 = arith.addf %5, %202 : vector<16x32xf32>
    %204 = vector.extract_strided_slice %4 {offsets = [4, 0], sizes = [1, 32], strides = [1, 1]} : vector<15x32xf32> to vector<1x32xf32>
    %205 = vector.extract_strided_slice %4 {offsets = [5, 0], sizes = [1, 32], strides = [1, 1]} : vector<15x32xf32> to vector<1x32xf32>
    %cst_69 = arith.constant dense<0.000000e+00> : vector<16xf32>
    %206 = vector.multi_reduction <add>, %203, %cst_69 [1] : vector<16x32xf32> to vector<16xf32>
    %207 = vector.shape_cast %206 : vector<16xf32> to vector<16x1xf32>
    %cst_70 = arith.constant 3.200000e+01 : f32
    %208 = vector.broadcast %cst_70 : f32 to vector<16x1xf32>
    %209 = arith.divf %207, %208 : vector<16x1xf32>
    %210 = vector.broadcast %209 : vector<16x1xf32> to vector<16x32xf32>
    %211 = arith.subf %203, %210 : vector<16x32xf32>
    %212 = vector.broadcast %209 : vector<16x1xf32> to vector<16x32xf32>
    %213 = arith.subf %203, %212 : vector<16x32xf32>
    %214 = arith.mulf %211, %213 : vector<16x32xf32>
    %cst_71 = arith.constant dense<0.000000e+00> : vector<16xf32>
    %215 = vector.multi_reduction <add>, %214, %cst_71 [1] : vector<16x32xf32> to vector<16xf32>
    %216 = vector.shape_cast %215 : vector<16xf32> to vector<16x1xf32>
    %cst_72 = arith.constant 3.200000e+01 : f32
    %217 = vector.broadcast %cst_72 : f32 to vector<16x1xf32>
    %218 = arith.divf %216, %217 : vector<16x1xf32>
    %219 = vector.broadcast %209 : vector<16x1xf32> to vector<16x32xf32>
    %220 = arith.subf %203, %219 : vector<16x32xf32>
    %cst_73 = arith.constant 9.99999974E-6 : f32
    %221 = vector.broadcast %cst_73 : f32 to vector<16x1xf32>
    %222 = arith.addf %218, %221 : vector<16x1xf32>
    %223 = math.rsqrt %222 : vector<16x1xf32>
    %224 = vector.broadcast %223 : vector<16x1xf32> to vector<16x32xf32>
    %225 = arith.mulf %220, %224 : vector<16x32xf32>
    %226 = vector.broadcast %204 : vector<1x32xf32> to vector<16x32xf32>
    %227 = arith.mulf %225, %226 : vector<16x32xf32>
    %228 = vector.broadcast %205 : vector<1x32xf32> to vector<16x32xf32>
    %229 = arith.addf %227, %228 : vector<16x32xf32>
    %c0_74 = arith.constant 0 : index
    %c0_75 = arith.constant 0 : index
    %230 = vector.load %arg3[%c0_74, %c0_75] : memref<32x32xf32, #tpu.memory_space<vmem>>, vector<32x32xf32>
    %c0_76 = arith.constant 0 : index
    %c0_77 = arith.constant 0 : index
    %231 = vector.load %arg4[%c0_76, %c0_77] : memref<32x32xf32, #tpu.memory_space<vmem>>, vector<32x32xf32>
    %232 = arith.addf %230, %231 : vector<32x32xf32>
    %233 = arith.addf %229, %6 : vector<16x32xf32>
    %c0_78 = arith.constant 0 : index
    %c0_79 = arith.constant 0 : index
    %c0_80 = arith.constant 0 : index
    %234 = vector.load %arg9[%c0_78, %c0_79, %c0_80] : memref<1x32x32xbf16, #tpu.memory_space<vmem>>, vector<1x32x32xbf16>
    %235 = vector.shape_cast %234 : vector<1x32x32xbf16> to vector<32x32xbf16>
    %236 = vector.extract_strided_slice %4 {offsets = [6, 0], sizes = [1, 32], strides = [1, 1]} : vector<15x32xf32> to vector<1x32xf32>
    %c0_81 = arith.constant 0 : index
    %c0_82 = arith.constant 0 : index
    %c0_83 = arith.constant 0 : index
    %237 = vector.load %arg10[%c0_81, %c0_82, %c0_83] : memref<1x32x32xbf16, #tpu.memory_space<vmem>>, vector<1x32x32xbf16>
    %238 = vector.shape_cast %237 : vector<1x32x32xbf16> to vector<32x32xbf16>
    %239 = vector.extract_strided_slice %4 {offsets = [7, 0], sizes = [1, 32], strides = [1, 1]} : vector<15x32xf32> to vector<1x32xf32>
    %c0_84 = arith.constant 0 : index
    %c0_85 = arith.constant 0 : index
    %c0_86 = arith.constant 0 : index
    %240 = vector.load %arg11[%c0_84, %c0_85, %c0_86] : memref<1x32x32xbf16, #tpu.memory_space<vmem>>, vector<1x32x32xbf16>
    %241 = vector.shape_cast %240 : vector<1x32x32xbf16> to vector<32x32xbf16>
    %242 = vector.extract_strided_slice %4 {offsets = [8, 0], sizes = [1, 32], strides = [1, 1]} : vector<15x32xf32> to vector<1x32xf32>
    %c0_87 = arith.constant 0 : index
    %c0_88 = arith.constant 0 : index
    %c0_89 = arith.constant 0 : index
    %243 = vector.load %arg12[%c0_87, %c0_88, %c0_89] : memref<1x32x32xbf16, #tpu.memory_space<vmem>>, vector<1x32x32xbf16>
    %244 = vector.shape_cast %243 : vector<1x32x32xbf16> to vector<32x32xbf16>
    %245 = vector.extract_strided_slice %4 {offsets = [9, 0], sizes = [1, 32], strides = [1, 1]} : vector<15x32xf32> to vector<1x32xf32>
    %246 = arith.truncf %233 : vector<16x32xf32> to vector<16x32xbf16>
    %cst_90 = arith.constant dense<0.000000e+00> : vector<16x32xf32>
    %247 = tpu.matmul %246, %235, %cst_90 {dimension_numbers = #tpu.dot_dimension_numbers<[1], [1], [0], [0], [0, 0, 1, 0], [], []>} : vector<16x32xbf16>, vector<32x32xbf16>, vector<16x32xf32> -> vector<16x32xf32>
    %248 = vector.broadcast %236 : vector<1x32xf32> to vector<16x32xf32>
    %249 = arith.addf %247, %248 : vector<16x32xf32>
    %250 = arith.truncf %232 : vector<32x32xf32> to vector<32x32xbf16>
    %cst_91 = arith.constant dense<0.000000e+00> : vector<32x32xf32>
    %251 = tpu.matmul %250, %238, %cst_91 {dimension_numbers = #tpu.dot_dimension_numbers<[1], [1], [0], [0], [0, 0, 1, 0], [], []>} : vector<32x32xbf16>, vector<32x32xbf16>, vector<32x32xf32> -> vector<32x32xf32>
    %252 = vector.broadcast %239 : vector<1x32xf32> to vector<32x32xf32>
    %253 = arith.addf %251, %252 : vector<32x32xf32>
    %254 = arith.truncf %230 : vector<32x32xf32> to vector<32x32xbf16>
    %cst_92 = arith.constant dense<0.000000e+00> : vector<32x32xf32>
    %255 = tpu.matmul %254, %241, %cst_92 {dimension_numbers = #tpu.dot_dimension_numbers<[1], [1], [0], [0], [0, 0, 1, 0], [], []>} : vector<32x32xbf16>, vector<32x32xbf16>, vector<32x32xf32> -> vector<32x32xf32>
    %256 = vector.broadcast %242 : vector<1x32xf32> to vector<32x32xf32>
    %257 = arith.addf %255, %256 : vector<32x32xf32>
    %258 = vector.extract_strided_slice %249 {offsets = [0, 0], sizes = [8, 32], strides = [1, 1]} : vector<16x32xf32> to vector<8x32xf32>
    %259 = vector.extract_strided_slice %253 {offsets = [0, 0], sizes = [16, 32], strides = [1, 1]} : vector<32x32xf32> to vector<16x32xf32>
    %260 = vector.extract_strided_slice %257 {offsets = [0, 0], sizes = [16, 32], strides = [1, 1]} : vector<32x32xf32> to vector<16x32xf32>
    %261 = vector.extract_strided_slice %258 {offsets = [0, 0], sizes = [8, 8], strides = [1, 1]} : vector<8x32xf32> to vector<8x8xf32>
    %262 = arith.truncf %261 : vector<8x8xf32> to vector<8x8xbf16>
    %263 = vector.extract_strided_slice %259 {offsets = [0, 0], sizes = [16, 8], strides = [1, 1]} : vector<16x32xf32> to vector<16x8xf32>
    %264 = arith.truncf %263 : vector<16x8xf32> to vector<16x8xbf16>
    %cst_93 = arith.constant dense<0.000000e+00> : vector<8x16xf32>
    %265 = tpu.matmul %262, %264, %cst_93 {dimension_numbers = #tpu.dot_dimension_numbers<[1], [1], [0], [0], [0, 0, 1, 0], [], []>} : vector<8x8xbf16>, vector<16x8xbf16>, vector<8x16xf32> -> vector<8x16xf32>
    %cst_94 = arith.constant dense<0xFF800000> : vector<8xf32>
    %266 = vector.multi_reduction <maximumf>, %265, %cst_94 [1] : vector<8x16xf32> to vector<8xf32>
    %267 = vector.shape_cast %266 : vector<8xf32> to vector<8x1xf32>
    %268 = vector.broadcast %267 : vector<8x1xf32> to vector<8x16xf32>
    %269 = arith.subf %265, %268 : vector<8x16xf32>
    %270 = math.exp %269 : vector<8x16xf32>
    %cst_95 = arith.constant dense<0.000000e+00> : vector<8xf32>
    %271 = vector.multi_reduction <add>, %270, %cst_95 [1] : vector<8x16xf32> to vector<8xf32>
    %272 = vector.shape_cast %271 : vector<8xf32> to vector<8x1xf32>
    %273 = tpu.reciprocal %272 {approx = true} : vector<8x1xf32> -> vector<8x1xf32>
    %274 = vector.broadcast %273 : vector<8x1xf32> to vector<8x16xf32>
    %275 = arith.mulf %270, %274 : vector<8x16xf32>
    %276 = arith.truncf %275 : vector<8x16xf32> to vector<8x16xbf16>
    %277 = vector.extract_strided_slice %260 {offsets = [0, 0], sizes = [16, 8], strides = [1, 1]} : vector<16x32xf32> to vector<16x8xf32>
    %278 = arith.truncf %277 : vector<16x8xf32> to vector<16x8xbf16>
    %cst_96 = arith.constant dense<0.000000e+00> : vector<8x8xf32>
    %279 = tpu.matmul %276, %278, %cst_96 {dimension_numbers = #tpu.dot_dimension_numbers<[1], [0], [0], [1], [0, 0, 1, 1], [], []>} : vector<8x16xbf16>, vector<16x8xbf16>, vector<8x8xf32> -> vector<8x8xf32>
    %c0_97 = arith.constant 0 : index
    %c0_98 = arith.constant 0 : index
    %280 = vector.load %arg21[%c0_97, %c0_98] : memref<16x32xf32, #tpu.memory_space<vmem>>, vector<8x8xf32>
    tpu.vector_store %arg21[%c0_97, %c0_98], %279 {strides = array<i32>} : memref<16x32xf32, #tpu.memory_space<vmem>>, vector<8x8xf32>,
    %281 = vector.extract_strided_slice %258 {offsets = [0, 8], sizes = [8, 8], strides = [1, 1]} : vector<8x32xf32> to vector<8x8xf32>
    %282 = arith.truncf %281 : vector<8x8xf32> to vector<8x8xbf16>
    %283 = vector.extract_strided_slice %259 {offsets = [0, 8], sizes = [16, 8], strides = [1, 1]} : vector<16x32xf32> to vector<16x8xf32>
    %284 = arith.truncf %283 : vector<16x8xf32> to vector<16x8xbf16>
    %cst_99 = arith.constant dense<0.000000e+00> : vector<8x16xf32>
    %285 = tpu.matmul %282, %284, %cst_99 {dimension_numbers = #tpu.dot_dimension_numbers<[1], [1], [0], [0], [0, 0, 1, 0], [], []>} : vector<8x8xbf16>, vector<16x8xbf16>, vector<8x16xf32> -> vector<8x16xf32>
    %cst_100 = arith.constant dense<0xFF800000> : vector<8xf32>
    %286 = vector.multi_reduction <maximumf>, %285, %cst_100 [1] : vector<8x16xf32> to vector<8xf32>
    %287 = vector.shape_cast %286 : vector<8xf32> to vector<8x1xf32>
    %288 = vector.broadcast %287 : vector<8x1xf32> to vector<8x16xf32>
    %289 = arith.subf %285, %288 : vector<8x16xf32>
    %290 = math.exp %289 : vector<8x16xf32>
    %cst_101 = arith.constant dense<0.000000e+00> : vector<8xf32>
    %291 = vector.multi_reduction <add>, %290, %cst_101 [1] : vector<8x16xf32> to vector<8xf32>
    %292 = vector.shape_cast %291 : vector<8xf32> to vector<8x1xf32>
    %293 = tpu.reciprocal %292 {approx = true} : vector<8x1xf32> -> vector<8x1xf32>
    %294 = vector.broadcast %293 : vector<8x1xf32> to vector<8x16xf32>
    %295 = arith.mulf %290, %294 : vector<8x16xf32>
    %296 = arith.truncf %295 : vector<8x16xf32> to vector<8x16xbf16>
    %297 = vector.extract_strided_slice %260 {offsets = [0, 8], sizes = [16, 8], strides = [1, 1]} : vector<16x32xf32> to vector<16x8xf32>
    %298 = arith.truncf %297 : vector<16x8xf32> to vector<16x8xbf16>
    %cst_102 = arith.constant dense<0.000000e+00> : vector<8x8xf32>
    %299 = tpu.matmul %296, %298, %cst_102 {dimension_numbers = #tpu.dot_dimension_numbers<[1], [0], [0], [1], [0, 0, 1, 1], [], []>} : vector<8x16xbf16>, vector<16x8xbf16>, vector<8x8xf32> -> vector<8x8xf32>
    %c0_103 = arith.constant 0 : index
    %c8_104 = arith.constant 8 : index
    %300 = vector.load %arg21[%c0_103, %c8_104] : memref<16x32xf32, #tpu.memory_space<vmem>>, vector<8x8xf32>
    tpu.vector_store %arg21[%c0_103, %c8_104], %299 {strides = array<i32>} : memref<16x32xf32, #tpu.memory_space<vmem>>, vector<8x8xf32>,
    %301 = vector.extract_strided_slice %258 {offsets = [0, 16], sizes = [8, 8], strides = [1, 1]} : vector<8x32xf32> to vector<8x8xf32>
    %302 = arith.truncf %301 : vector<8x8xf32> to vector<8x8xbf16>
    %303 = vector.extract_strided_slice %259 {offsets = [0, 16], sizes = [16, 8], strides = [1, 1]} : vector<16x32xf32> to vector<16x8xf32>
    %304 = arith.truncf %303 : vector<16x8xf32> to vector<16x8xbf16>
    %cst_105 = arith.constant dense<0.000000e+00> : vector<8x16xf32>
    %305 = tpu.matmul %302, %304, %cst_105 {dimension_numbers = #tpu.dot_dimension_numbers<[1], [1], [0], [0], [0, 0, 1, 0], [], []>} : vector<8x8xbf16>, vector<16x8xbf16>, vector<8x16xf32> -> vector<8x16xf32>
    %cst_106 = arith.constant dense<0xFF800000> : vector<8xf32>
    %306 = vector.multi_reduction <maximumf>, %305, %cst_106 [1] : vector<8x16xf32> to vector<8xf32>
    %307 = vector.shape_cast %306 : vector<8xf32> to vector<8x1xf32>
    %308 = vector.broadcast %307 : vector<8x1xf32> to vector<8x16xf32>
    %309 = arith.subf %305, %308 : vector<8x16xf32>
    %310 = math.exp %309 : vector<8x16xf32>
    %cst_107 = arith.constant dense<0.000000e+00> : vector<8xf32>
    %311 = vector.multi_reduction <add>, %310, %cst_107 [1] : vector<8x16xf32> to vector<8xf32>
    %312 = vector.shape_cast %311 : vector<8xf32> to vector<8x1xf32>
    %313 = tpu.reciprocal %312 {approx = true} : vector<8x1xf32> -> vector<8x1xf32>
    %314 = vector.broadcast %313 : vector<8x1xf32> to vector<8x16xf32>
    %315 = arith.mulf %310, %314 : vector<8x16xf32>
    %316 = arith.truncf %315 : vector<8x16xf32> to vector<8x16xbf16>
    %317 = vector.extract_strided_slice %260 {offsets = [0, 16], sizes = [16, 8], strides = [1, 1]} : vector<16x32xf32> to vector<16x8xf32>
    %318 = arith.truncf %317 : vector<16x8xf32> to vector<16x8xbf16>
    %cst_108 = arith.constant dense<0.000000e+00> : vector<8x8xf32>
    %319 = tpu.matmul %316, %318, %cst_108 {dimension_numbers = #tpu.dot_dimension_numbers<[1], [0], [0], [1], [0, 0, 1, 1], [], []>} : vector<8x16xbf16>, vector<16x8xbf16>, vector<8x8xf32> -> vector<8x8xf32>
    %c0_109 = arith.constant 0 : index
    %c16_110 = arith.constant 16 : index
    %320 = vector.load %arg21[%c0_109, %c16_110] : memref<16x32xf32, #tpu.memory_space<vmem>>, vector<8x8xf32>
    tpu.vector_store %arg21[%c0_109, %c16_110], %319 {strides = array<i32>} : memref<16x32xf32, #tpu.memory_space<vmem>>, vector<8x8xf32>,
    %321 = vector.extract_strided_slice %258 {offsets = [0, 24], sizes = [8, 8], strides = [1, 1]} : vector<8x32xf32> to vector<8x8xf32>
    %322 = arith.truncf %321 : vector<8x8xf32> to vector<8x8xbf16>
    %323 = vector.extract_strided_slice %259 {offsets = [0, 24], sizes = [16, 8], strides = [1, 1]} : vector<16x32xf32> to vector<16x8xf32>
    %324 = arith.truncf %323 : vector<16x8xf32> to vector<16x8xbf16>
    %cst_111 = arith.constant dense<0.000000e+00> : vector<8x16xf32>
    %325 = tpu.matmul %322, %324, %cst_111 {dimension_numbers = #tpu.dot_dimension_numbers<[1], [1], [0], [0], [0, 0, 1, 0], [], []>} : vector<8x8xbf16>, vector<16x8xbf16>, vector<8x16xf32> -> vector<8x16xf32>
    %cst_112 = arith.constant dense<0xFF800000> : vector<8xf32>
    %326 = vector.multi_reduction <maximumf>, %325, %cst_112 [1] : vector<8x16xf32> to vector<8xf32>
    %327 = vector.shape_cast %326 : vector<8xf32> to vector<8x1xf32>
    %328 = vector.broadcast %327 : vector<8x1xf32> to vector<8x16xf32>
    %329 = arith.subf %325, %328 : vector<8x16xf32>
    %330 = math.exp %329 : vector<8x16xf32>
    %cst_113 = arith.constant dense<0.000000e+00> : vector<8xf32>
    %331 = vector.multi_reduction <add>, %330, %cst_113 [1] : vector<8x16xf32> to vector<8xf32>
    %332 = vector.shape_cast %331 : vector<8xf32> to vector<8x1xf32>
    %333 = tpu.reciprocal %332 {approx = true} : vector<8x1xf32> -> vector<8x1xf32>
    %334 = vector.broadcast %333 : vector<8x1xf32> to vector<8x16xf32>
    %335 = arith.mulf %330, %334 : vector<8x16xf32>
    %336 = arith.truncf %335 : vector<8x16xf32> to vector<8x16xbf16>
    %337 = vector.extract_strided_slice %260 {offsets = [0, 24], sizes = [16, 8], strides = [1, 1]} : vector<16x32xf32> to vector<16x8xf32>
    %338 = arith.truncf %337 : vector<16x8xf32> to vector<16x8xbf16>
    %cst_114 = arith.constant dense<0.000000e+00> : vector<8x8xf32>
    %339 = tpu.matmul %336, %338, %cst_114 {dimension_numbers = #tpu.dot_dimension_numbers<[1], [0], [0], [1], [0, 0, 1, 1], [], []>} : vector<8x16xbf16>, vector<16x8xbf16>, vector<8x8xf32> -> vector<8x8xf32>
    %c0_115 = arith.constant 0 : index
    %c24_116 = arith.constant 24 : index
    %340 = vector.load %arg21[%c0_115, %c24_116] : memref<16x32xf32, #tpu.memory_space<vmem>>, vector<8x8xf32>
    tpu.vector_store %arg21[%c0_115, %c24_116], %339 {strides = array<i32>} : memref<16x32xf32, #tpu.memory_space<vmem>>, vector<8x8xf32>,
    %341 = vector.extract_strided_slice %249 {offsets = [8, 0], sizes = [8, 32], strides = [1, 1]} : vector<16x32xf32> to vector<8x32xf32>
    %342 = vector.extract_strided_slice %253 {offsets = [16, 0], sizes = [16, 32], strides = [1, 1]} : vector<32x32xf32> to vector<16x32xf32>
    %343 = vector.extract_strided_slice %257 {offsets = [16, 0], sizes = [16, 32], strides = [1, 1]} : vector<32x32xf32> to vector<16x32xf32>
    %344 = vector.extract_strided_slice %341 {offsets = [0, 0], sizes = [8, 8], strides = [1, 1]} : vector<8x32xf32> to vector<8x8xf32>
    %345 = arith.truncf %344 : vector<8x8xf32> to vector<8x8xbf16>
    %346 = vector.extract_strided_slice %342 {offsets = [0, 0], sizes = [16, 8], strides = [1, 1]} : vector<16x32xf32> to vector<16x8xf32>
    %347 = arith.truncf %346 : vector<16x8xf32> to vector<16x8xbf16>
    %cst_117 = arith.constant dense<0.000000e+00> : vector<8x16xf32>
    %348 = tpu.matmul %345, %347, %cst_117 {dimension_numbers = #tpu.dot_dimension_numbers<[1], [1], [0], [0], [0, 0, 1, 0], [], []>} : vector<8x8xbf16>, vector<16x8xbf16>, vector<8x16xf32> -> vector<8x16xf32>
    %cst_118 = arith.constant dense<0xFF800000> : vector<8xf32>
    %349 = vector.multi_reduction <maximumf>, %348, %cst_118 [1] : vector<8x16xf32> to vector<8xf32>
    %350 = vector.shape_cast %349 : vector<8xf32> to vector<8x1xf32>
    %351 = vector.broadcast %350 : vector<8x1xf32> to vector<8x16xf32>
    %352 = arith.subf %348, %351 : vector<8x16xf32>
    %353 = math.exp %352 : vector<8x16xf32>
    %cst_119 = arith.constant dense<0.000000e+00> : vector<8xf32>
    %354 = vector.multi_reduction <add>, %353, %cst_119 [1] : vector<8x16xf32> to vector<8xf32>
    %355 = vector.shape_cast %354 : vector<8xf32> to vector<8x1xf32>
    %356 = tpu.reciprocal %355 {approx = true} : vector<8x1xf32> -> vector<8x1xf32>
    %357 = vector.broadcast %356 : vector<8x1xf32> to vector<8x16xf32>
    %358 = arith.mulf %353, %357 : vector<8x16xf32>
    %359 = arith.truncf %358 : vector<8x16xf32> to vector<8x16xbf16>
    %360 = vector.extract_strided_slice %343 {offsets = [0, 0], sizes = [16, 8], strides = [1, 1]} : vector<16x32xf32> to vector<16x8xf32>
    %361 = arith.truncf %360 : vector<16x8xf32> to vector<16x8xbf16>
    %cst_120 = arith.constant dense<0.000000e+00> : vector<8x8xf32>
    %362 = tpu.matmul %359, %361, %cst_120 {dimension_numbers = #tpu.dot_dimension_numbers<[1], [0], [0], [1], [0, 0, 1, 1], [], []>} : vector<8x16xbf16>, vector<16x8xbf16>, vector<8x8xf32> -> vector<8x8xf32>
    %c8_121 = arith.constant 8 : index
    %c0_122 = arith.constant 0 : index
    %363 = vector.load %arg21[%c8_121, %c0_122] : memref<16x32xf32, #tpu.memory_space<vmem>>, vector<8x8xf32>
    tpu.vector_store %arg21[%c8_121, %c0_122], %362 {strides = array<i32>} : memref<16x32xf32, #tpu.memory_space<vmem>>, vector<8x8xf32>,
    %364 = vector.extract_strided_slice %341 {offsets = [0, 8], sizes = [8, 8], strides = [1, 1]} : vector<8x32xf32> to vector<8x8xf32>
    %365 = arith.truncf %364 : vector<8x8xf32> to vector<8x8xbf16>
    %366 = vector.extract_strided_slice %342 {offsets = [0, 8], sizes = [16, 8], strides = [1, 1]} : vector<16x32xf32> to vector<16x8xf32>
    %367 = arith.truncf %366 : vector<16x8xf32> to vector<16x8xbf16>
    %cst_123 = arith.constant dense<0.000000e+00> : vector<8x16xf32>
    %368 = tpu.matmul %365, %367, %cst_123 {dimension_numbers = #tpu.dot_dimension_numbers<[1], [1], [0], [0], [0, 0, 1, 0], [], []>} : vector<8x8xbf16>, vector<16x8xbf16>, vector<8x16xf32> -> vector<8x16xf32>
    %cst_124 = arith.constant dense<0xFF800000> : vector<8xf32>
    %369 = vector.multi_reduction <maximumf>, %368, %cst_124 [1] : vector<8x16xf32> to vector<8xf32>
    %370 = vector.shape_cast %369 : vector<8xf32> to vector<8x1xf32>
    %371 = vector.broadcast %370 : vector<8x1xf32> to vector<8x16xf32>
    %372 = arith.subf %368, %371 : vector<8x16xf32>
    %373 = math.exp %372 : vector<8x16xf32>
    %cst_125 = arith.constant dense<0.000000e+00> : vector<8xf32>
    %374 = vector.multi_reduction <add>, %373, %cst_125 [1] : vector<8x16xf32> to vector<8xf32>
    %375 = vector.shape_cast %374 : vector<8xf32> to vector<8x1xf32>
    %376 = tpu.reciprocal %375 {approx = true} : vector<8x1xf32> -> vector<8x1xf32>
    %377 = vector.broadcast %376 : vector<8x1xf32> to vector<8x16xf32>
    %378 = arith.mulf %373, %377 : vector<8x16xf32>
    %379 = arith.truncf %378 : vector<8x16xf32> to vector<8x16xbf16>
    %380 = vector.extract_strided_slice %343 {offsets = [0, 8], sizes = [16, 8], strides = [1, 1]} : vector<16x32xf32> to vector<16x8xf32>
    %381 = arith.truncf %380 : vector<16x8xf32> to vector<16x8xbf16>
    %cst_126 = arith.constant dense<0.000000e+00> : vector<8x8xf32>
    %382 = tpu.matmul %379, %381, %cst_126 {dimension_numbers = #tpu.dot_dimension_numbers<[1], [0], [0], [1], [0, 0, 1, 1], [], []>} : vector<8x16xbf16>, vector<16x8xbf16>, vector<8x8xf32> -> vector<8x8xf32>
    %c8_127 = arith.constant 8 : index
    %c8_128 = arith.constant 8 : index
    %383 = vector.load %arg21[%c8_127, %c8_128] : memref<16x32xf32, #tpu.memory_space<vmem>>, vector<8x8xf32>
    tpu.vector_store %arg21[%c8_127, %c8_128], %382 {strides = array<i32>} : memref<16x32xf32, #tpu.memory_space<vmem>>, vector<8x8xf32>,
    %384 = vector.extract_strided_slice %341 {offsets = [0, 16], sizes = [8, 8], strides = [1, 1]} : vector<8x32xf32> to vector<8x8xf32>
    %385 = arith.truncf %384 : vector<8x8xf32> to vector<8x8xbf16>
    %386 = vector.extract_strided_slice %342 {offsets = [0, 16], sizes = [16, 8], strides = [1, 1]} : vector<16x32xf32> to vector<16x8xf32>
    %387 = arith.truncf %386 : vector<16x8xf32> to vector<16x8xbf16>
    %cst_129 = arith.constant dense<0.000000e+00> : vector<8x16xf32>
    %388 = tpu.matmul %385, %387, %cst_129 {dimension_numbers = #tpu.dot_dimension_numbers<[1], [1], [0], [0], [0, 0, 1, 0], [], []>} : vector<8x8xbf16>, vector<16x8xbf16>, vector<8x16xf32> -> vector<8x16xf32>
    %cst_130 = arith.constant dense<0xFF800000> : vector<8xf32>
    %389 = vector.multi_reduction <maximumf>, %388, %cst_130 [1] : vector<8x16xf32> to vector<8xf32>
    %390 = vector.shape_cast %389 : vector<8xf32> to vector<8x1xf32>
    %391 = vector.broadcast %390 : vector<8x1xf32> to vector<8x16xf32>
    %392 = arith.subf %388, %391 : vector<8x16xf32>
    %393 = math.exp %392 : vector<8x16xf32>
    %cst_131 = arith.constant dense<0.000000e+00> : vector<8xf32>
    %394 = vector.multi_reduction <add>, %393, %cst_131 [1] : vector<8x16xf32> to vector<8xf32>
    %395 = vector.shape_cast %394 : vector<8xf32> to vector<8x1xf32>
    %396 = tpu.reciprocal %395 {approx = true} : vector<8x1xf32> -> vector<8x1xf32>
    %397 = vector.broadcast %396 : vector<8x1xf32> to vector<8x16xf32>
    %398 = arith.mulf %393, %397 : vector<8x16xf32>
    %399 = arith.truncf %398 : vector<8x16xf32> to vector<8x16xbf16>
    %400 = vector.extract_strided_slice %343 {offsets = [0, 16], sizes = [16, 8], strides = [1, 1]} : vector<16x32xf32> to vector<16x8xf32>
    %401 = arith.truncf %400 : vector<16x8xf32> to vector<16x8xbf16>
    %cst_132 = arith.constant dense<0.000000e+00> : vector<8x8xf32>
    %402 = tpu.matmul %399, %401, %cst_132 {dimension_numbers = #tpu.dot_dimension_numbers<[1], [0], [0], [1], [0, 0, 1, 1], [], []>} : vector<8x16xbf16>, vector<16x8xbf16>, vector<8x8xf32> -> vector<8x8xf32>
    %c8_133 = arith.constant 8 : index
    %c16_134 = arith.constant 16 : index
    %403 = vector.load %arg21[%c8_133, %c16_134] : memref<16x32xf32, #tpu.memory_space<vmem>>, vector<8x8xf32>
    tpu.vector_store %arg21[%c8_133, %c16_134], %402 {strides = array<i32>} : memref<16x32xf32, #tpu.memory_space<vmem>>, vector<8x8xf32>,
    %404 = vector.extract_strided_slice %341 {offsets = [0, 24], sizes = [8, 8], strides = [1, 1]} : vector<8x32xf32> to vector<8x8xf32>
    %405 = arith.truncf %404 : vector<8x8xf32> to vector<8x8xbf16>
    %406 = vector.extract_strided_slice %342 {offsets = [0, 24], sizes = [16, 8], strides = [1, 1]} : vector<16x32xf32> to vector<16x8xf32>
    %407 = arith.truncf %406 : vector<16x8xf32> to vector<16x8xbf16>
    %cst_135 = arith.constant dense<0.000000e+00> : vector<8x16xf32>
    %408 = tpu.matmul %405, %407, %cst_135 {dimension_numbers = #tpu.dot_dimension_numbers<[1], [1], [0], [0], [0, 0, 1, 0], [], []>} : vector<8x8xbf16>, vector<16x8xbf16>, vector<8x16xf32> -> vector<8x16xf32>
    %cst_136 = arith.constant dense<0xFF800000> : vector<8xf32>
    %409 = vector.multi_reduction <maximumf>, %408, %cst_136 [1] : vector<8x16xf32> to vector<8xf32>
    %410 = vector.shape_cast %409 : vector<8xf32> to vector<8x1xf32>
    %411 = vector.broadcast %410 : vector<8x1xf32> to vector<8x16xf32>
    %412 = arith.subf %408, %411 : vector<8x16xf32>
    %413 = math.exp %412 : vector<8x16xf32>
    %cst_137 = arith.constant dense<0.000000e+00> : vector<8xf32>
    %414 = vector.multi_reduction <add>, %413, %cst_137 [1] : vector<8x16xf32> to vector<8xf32>
    %415 = vector.shape_cast %414 : vector<8xf32> to vector<8x1xf32>
    %416 = tpu.reciprocal %415 {approx = true} : vector<8x1xf32> -> vector<8x1xf32>
    %417 = vector.broadcast %416 : vector<8x1xf32> to vector<8x16xf32>
    %418 = arith.mulf %413, %417 : vector<8x16xf32>
    %419 = arith.truncf %418 : vector<8x16xf32> to vector<8x16xbf16>
    %420 = vector.extract_strided_slice %343 {offsets = [0, 24], sizes = [16, 8], strides = [1, 1]} : vector<16x32xf32> to vector<16x8xf32>
    %421 = arith.truncf %420 : vector<16x8xf32> to vector<16x8xbf16>
    %cst_138 = arith.constant dense<0.000000e+00> : vector<8x8xf32>
    %422 = tpu.matmul %419, %421, %cst_138 {dimension_numbers = #tpu.dot_dimension_numbers<[1], [0], [0], [1], [0, 0, 1, 1], [], []>} : vector<8x16xbf16>, vector<16x8xbf16>, vector<8x8xf32> -> vector<8x8xf32>
    %c8_139 = arith.constant 8 : index
    %c24_140 = arith.constant 24 : index
    %423 = vector.load %arg21[%c8_139, %c24_140] : memref<16x32xf32, #tpu.memory_space<vmem>>, vector<8x8xf32>
    tpu.vector_store %arg21[%c8_139, %c24_140], %422 {strides = array<i32>} : memref<16x32xf32, #tpu.memory_space<vmem>>, vector<8x8xf32>,
    %c0_141 = arith.constant 0 : index
    %c0_142 = arith.constant 0 : index
    %424 = vector.load %arg21[%c0_141, %c0_142] : memref<16x32xf32, #tpu.memory_space<vmem>>, vector<16x32xf32>
    %425 = arith.truncf %424 : vector<16x32xf32> to vector<16x32xbf16>
    %cst_143 = arith.constant dense<0.000000e+00> : vector<16x32xf32>
    %426 = tpu.matmul %425, %244, %cst_143 {dimension_numbers = #tpu.dot_dimension_numbers<[1], [1], [0], [0], [0, 0, 1, 0], [], []>} : vector<16x32xbf16>, vector<32x32xbf16>, vector<16x32xf32> -> vector<16x32xf32>
    %427 = vector.broadcast %245 : vector<1x32xf32> to vector<16x32xf32>
    %428 = arith.addf %426, %427 : vector<16x32xf32>
    %429 = arith.addf %229, %428 : vector<16x32xf32>
    %430 = vector.extract_strided_slice %4 {offsets = [10, 0], sizes = [1, 32], strides = [1, 1]} : vector<15x32xf32> to vector<1x32xf32>
    %431 = vector.extract_strided_slice %4 {offsets = [11, 0], sizes = [1, 32], strides = [1, 1]} : vector<15x32xf32> to vector<1x32xf32>
    %cst_144 = arith.constant dense<0.000000e+00> : vector<16xf32>
    %432 = vector.multi_reduction <add>, %429, %cst_144 [1] : vector<16x32xf32> to vector<16xf32>
    %433 = vector.shape_cast %432 : vector<16xf32> to vector<16x1xf32>
    %cst_145 = arith.constant 3.200000e+01 : f32
    %434 = vector.broadcast %cst_145 : f32 to vector<16x1xf32>
    %435 = arith.divf %433, %434 : vector<16x1xf32>
    %436 = vector.broadcast %435 : vector<16x1xf32> to vector<16x32xf32>
    %437 = arith.subf %429, %436 : vector<16x32xf32>
    %438 = vector.broadcast %435 : vector<16x1xf32> to vector<16x32xf32>
    %439 = arith.subf %429, %438 : vector<16x32xf32>
    %440 = arith.mulf %437, %439 : vector<16x32xf32>
    %cst_146 = arith.constant dense<0.000000e+00> : vector<16xf32>
    %441 = vector.multi_reduction <add>, %440, %cst_146 [1] : vector<16x32xf32> to vector<16xf32>
    %442 = vector.shape_cast %441 : vector<16xf32> to vector<16x1xf32>
    %cst_147 = arith.constant 3.200000e+01 : f32
    %443 = vector.broadcast %cst_147 : f32 to vector<16x1xf32>
    %444 = arith.divf %442, %443 : vector<16x1xf32>
    %445 = vector.broadcast %435 : vector<16x1xf32> to vector<16x32xf32>
    %446 = arith.subf %429, %445 : vector<16x32xf32>
    %cst_148 = arith.constant 9.99999974E-6 : f32
    %447 = vector.broadcast %cst_148 : f32 to vector<16x1xf32>
    %448 = arith.addf %444, %447 : vector<16x1xf32>
    %449 = math.rsqrt %448 : vector<16x1xf32>
    %450 = vector.broadcast %449 : vector<16x1xf32> to vector<16x32xf32>
    %451 = arith.mulf %446, %450 : vector<16x32xf32>
    %452 = vector.broadcast %430 : vector<1x32xf32> to vector<16x32xf32>
    %453 = arith.mulf %451, %452 : vector<16x32xf32>
    %454 = vector.broadcast %431 : vector<1x32xf32> to vector<16x32xf32>
    %455 = arith.addf %453, %454 : vector<16x32xf32>
    %456 = arith.truncf %455 : vector<16x32xf32> to vector<16x32xbf16>
    %c0_149 = arith.constant 0 : index
    %c0_150 = arith.constant 0 : index
    %c0_151 = arith.constant 0 : index
    %457 = vector.load %arg13[%c0_149, %c0_150, %c0_151] : memref<1x64x32xbf16, #tpu.memory_space<vmem>>, vector<1x64x32xbf16>
    %458 = vector.shape_cast %457 : vector<1x64x32xbf16> to vector<64x32xbf16>
    %cst_152 = arith.constant dense<0.000000e+00> : vector<16x64xf32>
    %459 = tpu.matmul %456, %458, %cst_152 {dimension_numbers = #tpu.dot_dimension_numbers<[1], [1], [0], [0], [0, 0, 1, 0], [], []>} : vector<16x32xbf16>, vector<64x32xbf16>, vector<16x64xf32> -> vector<16x64xf32>
    %c0_153 = arith.constant 0 : index
    %c0_154 = arith.constant 0 : index
    %c0_155 = arith.constant 0 : index
    %460 = vector.load %arg15[%c0_153, %c0_154, %c0_155] : memref<1x1x64xf32, #tpu.memory_space<vmem>>, vector<1x1x64xf32>
    %461 = vector.shape_cast %460 : vector<1x1x64xf32> to vector<1x64xf32>
    %462 = vector.broadcast %461 : vector<1x64xf32> to vector<16x64xf32>
    %463 = arith.addf %459, %462 : vector<16x64xf32>
    %cst_156 = arith.constant 0.000000e+00 : f32
    %464 = vector.broadcast %cst_156 : f32 to vector<16x64xf32>
    %465 = arith.maximumf %463, %464 : vector<16x64xf32>
    %466 = arith.truncf %465 : vector<16x64xf32> to vector<16x64xbf16>
    %c0_157 = arith.constant 0 : index
    %c0_158 = arith.constant 0 : index
    %c0_159 = arith.constant 0 : index
    %467 = vector.load %arg14[%c0_157, %c0_158, %c0_159] : memref<1x32x64xbf16, #tpu.memory_space<vmem>>, vector<1x32x64xbf16>
    %468 = vector.shape_cast %467 : vector<1x32x64xbf16> to vector<32x64xbf16>
    %cst_160 = arith.constant dense<0.000000e+00> : vector<16x32xf32>
    %469 = tpu.matmul %466, %468, %cst_160 {dimension_numbers = #tpu.dot_dimension_numbers<[1], [1], [0], [0], [0, 0, 1, 0], [], []>} : vector<16x64xbf16>, vector<32x64xbf16>, vector<16x32xf32> -> vector<16x32xf32>
    %470 = vector.extract_strided_slice %4 {offsets = [12, 0], sizes = [1, 32], strides = [1, 1]} : vector<15x32xf32> to vector<1x32xf32>
    %471 = vector.broadcast %470 : vector<1x32xf32> to vector<16x32xf32>
    %472 = arith.addf %469, %471 : vector<16x32xf32>
    %473 = arith.addf %455, %472 : vector<16x32xf32>
    %474 = vector.extract_strided_slice %4 {offsets = [13, 0], sizes = [1, 32], strides = [1, 1]} : vector<15x32xf32> to vector<1x32xf32>
    %475 = vector.extract_strided_slice %4 {offsets = [14, 0], sizes = [1, 32], strides = [1, 1]} : vector<15x32xf32> to vector<1x32xf32>
    %cst_161 = arith.constant dense<0.000000e+00> : vector<16xf32>
    %476 = vector.multi_reduction <add>, %473, %cst_161 [1] : vector<16x32xf32> to vector<16xf32>
    %477 = vector.shape_cast %476 : vector<16xf32> to vector<16x1xf32>
    %cst_162 = arith.constant 3.200000e+01 : f32
    %478 = vector.broadcast %cst_162 : f32 to vector<16x1xf32>
    %479 = arith.divf %477, %478 : vector<16x1xf32>
    %480 = vector.broadcast %479 : vector<16x1xf32> to vector<16x32xf32>
    %481 = arith.subf %473, %480 : vector<16x32xf32>
    %482 = vector.broadcast %479 : vector<16x1xf32> to vector<16x32xf32>
    %483 = arith.subf %473, %482 : vector<16x32xf32>
    %484 = arith.mulf %481, %483 : vector<16x32xf32>
    %cst_163 = arith.constant dense<0.000000e+00> : vector<16xf32>
    %485 = vector.multi_reduction <add>, %484, %cst_163 [1] : vector<16x32xf32> to vector<16xf32>
    %486 = vector.shape_cast %485 : vector<16xf32> to vector<16x1xf32>
    %cst_164 = arith.constant 3.200000e+01 : f32
    %487 = vector.broadcast %cst_164 : f32 to vector<16x1xf32>
    %488 = arith.divf %486, %487 : vector<16x1xf32>
    %489 = vector.broadcast %479 : vector<16x1xf32> to vector<16x32xf32>
    %490 = arith.subf %473, %489 : vector<16x32xf32>
    %cst_165 = arith.constant 9.99999974E-6 : f32
    %491 = vector.broadcast %cst_165 : f32 to vector<16x1xf32>
    %492 = arith.addf %488, %491 : vector<16x1xf32>
    %493 = math.rsqrt %492 : vector<16x1xf32>
    %494 = vector.broadcast %493 : vector<16x1xf32> to vector<16x32xf32>
    %495 = arith.mulf %490, %494 : vector<16x32xf32>
    %496 = vector.broadcast %474 : vector<1x32xf32> to vector<16x32xf32>
    %497 = arith.mulf %495, %496 : vector<16x32xf32>
    %498 = vector.broadcast %475 : vector<1x32xf32> to vector<16x32xf32>
    %499 = arith.addf %497, %498 : vector<16x32xf32>
    %c0_166 = arith.constant 0 : index
    %c0_167 = arith.constant 0 : index
    %500 = vector.load %arg20[%c0_166, %c0_167] : memref<16x32xf32, #tpu.memory_space<vmem>>, vector<16x32xf32>
    tpu.vector_store %arg20[%c0_166, %c0_167], %499 {strides = array<i32>} : memref<16x32xf32, #tpu.memory_space<vmem>>, vector<16x32xf32>,
    %c0_168 = arith.constant 0 : index
    %c0_169 = arith.constant 0 : index
    %501 = vector.load %arg17[%c0_168, %c0_169] : memref<1x32xf32, #tpu.memory_space<vmem>>, vector<1x32xf32>
    %c0_170 = arith.constant 0 : index
    %c0_171 = arith.constant 0 : index
    %502 = vector.load %arg18[%c0_170, %c0_171] : memref<1x32xf32, #tpu.memory_space<vmem>>, vector<1x32xf32>
    %c1_i32 = arith.constant 1 : i32
    %503 = arith.cmpi eq, %arg0, %c1_i32 : i32
    %504 = arith.extui %503 : i1 to i32
    %c0_i32_172 = arith.constant 0 : i32
    %505 = arith.cmpi ne, %504, %c0_i32_172 : i32
    scf.if %505 {
      %cst_173 = arith.constant dense<0.000000e+00> : vector<16xf32>
      %506 = vector.multi_reduction <add>, %499, %cst_173 [1] : vector<16x32xf32> to vector<16xf32>
      %507 = vector.shape_cast %506 : vector<16xf32> to vector<16x1xf32>
      %cst_174 = arith.constant 3.200000e+01 : f32
      %508 = vector.broadcast %cst_174 : f32 to vector<16x1xf32>
      %509 = arith.divf %507, %508 : vector<16x1xf32>
      %510 = vector.broadcast %509 : vector<16x1xf32> to vector<16x32xf32>
      %511 = arith.subf %499, %510 : vector<16x32xf32>
      %512 = vector.broadcast %509 : vector<16x1xf32> to vector<16x32xf32>
      %513 = arith.subf %499, %512 : vector<16x32xf32>
      %514 = arith.mulf %511, %513 : vector<16x32xf32>
      %cst_175 = arith.constant dense<0.000000e+00> : vector<16xf32>
      %515 = vector.multi_reduction <add>, %514, %cst_175 [1] : vector<16x32xf32> to vector<16xf32>
      %516 = vector.shape_cast %515 : vector<16xf32> to vector<16x1xf32>
      %cst_176 = arith.constant 3.200000e+01 : f32
      %517 = vector.broadcast %cst_176 : f32 to vector<16x1xf32>
      %518 = arith.divf %516, %517 : vector<16x1xf32>
      %519 = vector.broadcast %509 : vector<16x1xf32> to vector<16x32xf32>
      %520 = arith.subf %499, %519 : vector<16x32xf32>
      %cst_177 = arith.constant 9.99999974E-6 : f32
      %521 = vector.broadcast %cst_177 : f32 to vector<16x1xf32>
      %522 = arith.addf %518, %521 : vector<16x1xf32>
      %523 = math.rsqrt %522 : vector<16x1xf32>
      %524 = vector.broadcast %523 : vector<16x1xf32> to vector<16x32xf32>
      %525 = arith.mulf %520, %524 : vector<16x32xf32>
      %526 = vector.broadcast %501 : vector<1x32xf32> to vector<16x32xf32>
      %527 = arith.mulf %525, %526 : vector<16x32xf32>
      %528 = vector.broadcast %502 : vector<1x32xf32> to vector<16x32xf32>
      %529 = arith.addf %527, %528 : vector<16x32xf32>
      %c0_178 = arith.constant 0 : index
      %c0_179 = arith.constant 0 : index
      %530 = vector.load %arg19[%c0_178, %c0_179] : memref<16x32xf32, #tpu.memory_space<vmem>>, vector<16x32xf32>
      tpu.vector_store %arg19[%c0_178, %c0_179], %529 {strides = array<i32>} : memref<16x32xf32, #tpu.memory_space<vmem>>, vector<16x32xf32>,
    } else {
    }
    return
  }
  func.func @transform_0(%arg0: i32) -> (i32, i32) {
    %c0_i32 = arith.constant 0 : i32
    %c0_i32_0 = arith.constant 0 : i32
    %c0_i32_1 = arith.constant 0 : i32
    return %c0_i32, %c0_i32_0 : i32, i32
  }
  func.func @transform_1(%arg0: i32) -> (i32, i32) {
    %c0_i32 = arith.constant 0 : i32
    %c0_i32_0 = arith.constant 0 : i32
    %c0_i32_1 = arith.constant 0 : i32
    return %c0_i32, %c0_i32_0 : i32, i32
  }
  func.func @transform_2(%arg0: i32) -> (i32, i32) {
    %c0_i32 = arith.constant 0 : i32
    %c0_i32_0 = arith.constant 0 : i32
    %c0_i32_1 = arith.constant 0 : i32
    return %c0_i32, %c0_i32_0 : i32, i32
  }
  func.func @transform_3(%arg0: i32) -> (i32, i32) {
    %c0_i32 = arith.constant 0 : i32
    %c0_i32_0 = arith.constant 0 : i32
    %c0_i32_1 = arith.constant 0 : i32
    return %c0_i32, %c0_i32_0 : i32, i32
  }
  func.func @transform_4(%arg0: i32) -> (i32, i32, i32) {
    %c0_i32 = arith.constant 0 : i32
    %c0_i32_0 = arith.constant 0 : i32
    %c0_i32_1 = arith.constant 0 : i32
    return %arg0, %c0_i32, %c0_i32_0 : i32, i32, i32
  }
  func.func @transform_5(%arg0: i32) -> (i32, i32, i32) {
    %c0_i32 = arith.constant 0 : i32
    %c0_i32_0 = arith.constant 0 : i32
    %c0_i32_1 = arith.constant 0 : i32
    return %arg0, %c0_i32, %c0_i32_0 : i32, i32, i32
  }
  func.func @transform_6(%arg0: i32) -> (i32, i32, i32) {
    %c0_i32 = arith.constant 0 : i32
    %c0_i32_0 = arith.constant 0 : i32
    %c0_i32_1 = arith.constant 0 : i32
    return %arg0, %c0_i32, %c0_i32_0 : i32, i32, i32
  }
  func.func @transform_7(%arg0: i32) -> (i32, i32, i32) {
    %c0_i32 = arith.constant 0 : i32
    %c0_i32_0 = arith.constant 0 : i32
    %c0_i32_1 = arith.constant 0 : i32
    return %arg0, %c0_i32, %c0_i32_0 : i32, i32, i32
  }
  func.func @transform_8(%arg0: i32) -> (i32, i32, i32) {
    %c0_i32 = arith.constant 0 : i32
    %c0_i32_0 = arith.constant 0 : i32
    %c0_i32_1 = arith.constant 0 : i32
    return %arg0, %c0_i32, %c0_i32_0 : i32, i32, i32
  }
  func.func @transform_9(%arg0: i32) -> (i32, i32, i32) {
    %c0_i32 = arith.constant 0 : i32
    %c0_i32_0 = arith.constant 0 : i32
    %c0_i32_1 = arith.constant 0 : i32
    return %arg0, %c0_i32, %c0_i32_0 : i32, i32, i32
  }
  func.func @transform_10(%arg0: i32) -> (i32, i32, i32) {
    %c0_i32 = arith.constant 0 : i32
    %c0_i32_0 = arith.constant 0 : i32
    %c0_i32_1 = arith.constant 0 : i32
    return %arg0, %c0_i32, %c0_i32_0 : i32, i32, i32
  }
  func.func @transform_11(%arg0: i32) -> (i32, i32, i32) {
    %c0_i32 = arith.constant 0 : i32
    %c0_i32_0 = arith.constant 0 : i32
    %c0_i32_1 = arith.constant 0 : i32
    return %arg0, %c0_i32, %c0_i32_0 : i32, i32, i32
  }
  func.func @transform_12(%arg0: i32) -> (i32, i32, i32) {
    %c0_i32 = arith.constant 0 : i32
    %c0_i32_0 = arith.constant 0 : i32
    %c0_i32_1 = arith.constant 0 : i32
    return %arg0, %c0_i32, %c0_i32_0 : i32, i32, i32
  }
  func.func @transform_13(%arg0: i32) -> (i32, i32, i32) {
    %c0_i32 = arith.constant 0 : i32
    %c0_i32_0 = arith.constant 0 : i32
    %c0_i32_1 = arith.constant 0 : i32
    return %arg0, %c0_i32, %c0_i32_0 : i32, i32, i32
  }
  func.func @transform_14(%arg0: i32) -> (i32, i32, i32) {
    %c0_i32 = arith.constant 0 : i32
    %c0_i32_0 = arith.constant 0 : i32
    %c0_i32_1 = arith.constant 0 : i32
    return %arg0, %c0_i32, %c0_i32_0 : i32, i32, i32
  }
  func.func @transform_15(%arg0: i32) -> (i32, i32, i32) {
    %c0_i32 = arith.constant 0 : i32
    %c0_i32_0 = arith.constant 0 : i32
    %c0_i32_1 = arith.constant 0 : i32
    return %arg0, %c0_i32, %c0_i32_0 : i32, i32, i32
  }
  func.func @transform_16(%arg0: i32) -> (i32, i32) {
    %c0_i32 = arith.constant 0 : i32
    %c0_i32_0 = arith.constant 0 : i32
    %c0_i32_1 = arith.constant 0 : i32
    return %c0_i32, %c0_i32_0 : i32, i32
  }
  func.func @transform_17(%arg0: i32) -> (i32, i32) {
    %c0_i32 = arith.constant 0 : i32
    %c0_i32_0 = arith.constant 0 : i32
    %c0_i32_1 = arith.constant 0 : i32
    return %c0_i32, %c0_i32_0 : i32, i32
  }
  func.func @transform_18(%arg0: i32) -> (i32, i32) {
    %c0_i32 = arith.constant 0 : i32
    %c0_i32_0 = arith.constant 0 : i32
    %c0_i32_1 = arith.constant 0 : i32
    return %c0_i32, %c0_i32_0 : i32, i32
  }
}

</mosaic_0001>

<llo_original>
// kernel: transformer_decoder_forward.1
$region0: #{transformer_decoder_forward.1}
  #allocation0 [shape = 'u32[]', space=smem, size = 0x4, offset = 0x4, fixed_abs, tag = 'smem constant byte address 0x4 - core index']
  #allocation1 [shape = 'u32[72,128]{1,0:T(1,128)}', space=vmem, size = 0x9000, scoped, tag = 'internal scratch']
  #allocation2 [shape = 'f32[16,32]{1,0:T(8,128)}', space=vmem, size = 0x2000, scoped, tag = 'scratch operand']
  #allocation3 [shape = 'f32[16,32]{1,0:T(8,128)}', space=vmem, size = 0x2000, scoped, tag = 'scratch operand']
  %s0 = inlined_call_operand.vmem [shape: f32[16,32], index: 0, kind: input, shape index: {}]
  %s1 = inlined_call_operand.vmem [shape: f32[16,32], index: 1, kind: input, shape index: {}]
  %s2 = inlined_call_operand.vmem [shape: f32[32,32], index: 2, kind: input, shape index: {}]
  %s3 = inlined_call_operand.vmem [shape: f32[32,32], index: 3, kind: input, shape index: {}]
  %s4 = inlined_call_operand.vmem [shape: bf16[2,32,32], index: 4, kind: input, shape index: {}]
  %s5 = inlined_call_operand.vmem [shape: bf16[2,32,32], index: 5, kind: input, shape index: {}]
  %s6 = inlined_call_operand.vmem [shape: bf16[2,32,32], index: 6, kind: input, shape index: {}]
  %s7 = inlined_call_operand.vmem [shape: bf16[2,32,32], index: 7, kind: input, shape index: {}]
  %s8 = inlined_call_operand.vmem [shape: bf16[2,32,32], index: 8, kind: input, shape index: {}]
  %s9 = inlined_call_operand.vmem [shape: bf16[2,32,32], index: 9, kind: input, shape index: {}]
  %s10 = inlined_call_operand.vmem [shape: bf16[2,32,32], index: 10, kind: input, shape index: {}]
  %s11 = inlined_call_operand.vmem [shape: bf16[2,32,32], index: 11, kind: input, shape index: {}]
  %s12 = inlined_call_operand.vmem [shape: bf16[2,64,32], index: 12, kind: input, shape index: {}]
  %s13 = inlined_call_operand.vmem [shape: bf16[2,32,64], index: 13, kind: input, shape index: {}]
  %s14 = inlined_call_operand.vmem [shape: f32[2,1,64], index: 14, kind: input, shape index: {}]
  %s15 = inlined_call_operand.vmem [shape: f32[2,15,32], index: 15, kind: input, shape index: {}]
  %s16 = inlined_call_operand.vmem [shape: f32[1,32], index: 16, kind: input, shape index: {}]
  %s17 = inlined_call_operand.vmem [shape: f32[1,32], index: 17, kind: input, shape index: {}]
  %s18 = inlined_call_operand.vmem [shape: f32[16,32], index: 18, kind: output, shape index: {}]
  %s19 = sld [smem:[#allocation0]]
  $region113: #{transformer_decoder_forward.1} parent=0
    _
  %s21 = ssub.s32 1, %s19
  %s22 = scalar_select 0, %s21, %s19
  loop: start=0, step=1, limit=4
  $region2: #{transformer_decoder_forward.1} parent=0 // loop_pre_header
    _
  $region3: #{transformer_decoder_forward.1} parent=0 // loop_header
    %s24 = sphi 0, %s28
    %p25 = scmp.ge.s32.totalorder %s24, 4
    %s32 = sphi 0, %s32
    %s34 = sphi 0, %s32
    %s35 = sphi 0, %s34
    %s49 = sphi 0, %s35
    %s53 = sphi 0, %s53
    %s55 = sphi 0, %s53
    %s56 = sphi 0, %s55
    %s70 = sphi 0, %s56
    %s74 = sphi 0, %s74
    %s76 = sphi 0, %s74
    %s77 = sphi 0, %s76
    %s91 = sphi 0, %s77
    %s95 = sphi 0, %s95
    %s97 = sphi 0, %s95
    %s98 = sphi 0, %s97
    %s112 = sphi 0, %s98
    %s118 = sphi 0, %s120
    %s121 = sphi 0, %s118
    %s122 = sphi 0, %s121
    %s138 = sphi 0, %s122
    %s144 = sphi 0, %s146
    %s147 = sphi 0, %s144
    %s148 = sphi 0, %s147
    %s164 = sphi 0, %s148
    %s170 = sphi 0, %s172
    %s173 = sphi 0, %s170
    %s174 = sphi 0, %s173
    %s190 = sphi 0, %s174
    %s196 = sphi 0, %s198
    %s199 = sphi 0, %s196
    %s200 = sphi 0, %s199
    %s216 = sphi 0, %s200
    %s222 = sphi 0, %s224
    %s225 = sphi 0, %s222
    %s226 = sphi 0, %s225
    %s242 = sphi 0, %s226
    %s248 = sphi 0, %s250
    %s251 = sphi 0, %s248
    %s252 = sphi 0, %s251
    %s268 = sphi 0, %s252
    %s274 = sphi 0, %s276
    %s277 = sphi 0, %s274
    %s278 = sphi 0, %s277
    %s294 = sphi 0, %s278
    %s300 = sphi 0, %s302
    %s303 = sphi 0, %s300
    %s304 = sphi 0, %s303
    %s320 = sphi 0, %s304
    %s326 = sphi 0, %s328
    %s329 = sphi 0, %s326
    %s330 = sphi 0, %s329
    %s346 = sphi 0, %s330
    %s352 = sphi 0, %s354
    %s355 = sphi 0, %s352
    %s356 = sphi 0, %s355
    %s372 = sphi 0, %s356
    %s378 = sphi 0, %s380
    %s381 = sphi 0, %s378
    %s382 = sphi 0, %s381
    %s398 = sphi 0, %s382
    %s404 = sphi 0, %s406
    %s407 = sphi 0, %s404
    %s408 = sphi 0, %s407
    %s424 = sphi 0, %s408
    %s428 = sphi 0, %s428
    %s430 = sphi 0, %s428
    %s431 = sphi 0, %s430
    %s445 = sphi 0, %s431
    %s449 = sphi 0, %s449
    %s451 = sphi 0, %s449
    %s452 = sphi 0, %s451
    %s466 = sphi 0, %s452
    %s470 = sphi 0, %s470
    %s472 = sphi 0, %s470
    %s473 = sphi 0, %s472
    %s487 = sphi 0, %s473
  $region4: #{transformer_decoder_forward.1} parent=0 // loop_header_branch
    %27 = sbr.rel (%p25) target = $region8
  $region5: #{transformer_decoder_forward.1} parent=0 // loop_body
    %s29 = ssub.s32 %s24, 1
    %s30 = ssub.s32 %s24, 2
    %s31 = sadd.s32 %s24, 1
    %s33 = sadd.s32 %s32, 1
    %p36 = scmp.eq.s32.totalorder %s24, 1
    %p37 = scmp.ne.s32.totalorder %s32, %s34
    %p38 = scmp.eq.s32.totalorder %s24, 0
    %p39 = por %p37, %p38
    %p40 = scmp.ne.s32.totalorder %s32, %s34
    %p41 = scmp.eq.s32.totalorder %s29, 1
    %p42 = por %p40, %p41
    %p43 = scmp.ne.s32.totalorder %s34, %s35
    %p44 = scmp.eq.s32.totalorder %s29, 0
    %p45 = por %p43, %p44
    %p46 = scmp.ne.s32.totalorder %s34, %s35
    %p47 = scmp.eq.s32.totalorder %s30, 1
    %p48 = por %p46, %p47
    %p50 = scmp.ne.s32.totalorder %s35, %s49
    %p51 = scmp.eq.s32.totalorder %s30, 0
    %p52 = por %p50, %p51
    %s54 = sadd.s32 %s53, 1
    %p57 = scmp.eq.s32.totalorder %s24, 1
    %p58 = scmp.ne.s32.totalorder %s53, %s55
    %p59 = scmp.eq.s32.totalorder %s24, 0
    %p60 = por %p58, %p59
    %p61 = scmp.ne.s32.totalorder %s53, %s55
    %p62 = scmp.eq.s32.totalorder %s29, 1
    %p63 = por %p61, %p62
    %p64 = scmp.ne.s32.totalorder %s55, %s56
    %p65 = scmp.eq.s32.totalorder %s29, 0
    %p66 = por %p64, %p65
    %p67 = scmp.ne.s32.totalorder %s55, %s56
    %p68 = scmp.eq.s32.totalorder %s30, 1
    %p69 = por %p67, %p68
    %p71 = scmp.ne.s32.totalorder %s56, %s70
    %p72 = scmp.eq.s32.totalorder %s30, 0
    %p73 = por %p71, %p72
    %s75 = sadd.s32 %s74, 1
    %p78 = scmp.eq.s32.totalorder %s24, 1
    %p79 = scmp.ne.s32.totalorder %s74, %s76
    %p80 = scmp.eq.s32.totalorder %s24, 0
    %p81 = por %p79, %p80
    %p82 = scmp.ne.s32.totalorder %s74, %s76
    %p83 = scmp.eq.s32.totalorder %s29, 1
    %p84 = por %p82, %p83
    %p85 = scmp.ne.s32.totalorder %s76, %s77
    %p86 = scmp.eq.s32.totalorder %s29, 0
    %p87 = por %p85, %p86
    %p88 = scmp.ne.s32.totalorder %s76, %s77
    %p89 = scmp.eq.s32.totalorder %s30, 1
    %p90 = por %p88, %p89
    %p92 = scmp.ne.s32.totalorder %s77, %s91
    %p93 = scmp.eq.s32.totalorder %s30, 0
    %p94 = por %p92, %p93
    %s96 = sadd.s32 %s95, 1
    %p99 = scmp.eq.s32.totalorder %s24, 1
    %p100 = scmp.ne.s32.totalorder %s95, %s97
    %p101 = scmp.eq.s32.totalorder %s24, 0
    %p102 = por %p100, %p101
    %p103 = scmp.ne.s32.totalorder %s95, %s97
    %p104 = scmp.eq.s32.totalorder %s29, 1
    %p105 = por %p103, %p104
    %p106 = scmp.ne.s32.totalorder %s97, %s98
    %p107 = scmp.eq.s32.totalorder %s29, 0
    %p108 = por %p106, %p107
    %p109 = scmp.ne.s32.totalorder %s97, %s98
    %p110 = scmp.eq.s32.totalorder %s30, 1
    %p111 = por %p109, %p110
    %p113 = scmp.ne.s32.totalorder %s98, %s112
    %p114 = scmp.eq.s32.totalorder %s30, 0
    %p115 = por %p113, %p114
    %s116 = ssub.s32 %s24, %s31
    %p117 = scmp.eq.s32.totalorder %s116, 0
    %s119 = sadd.s32 %s118, 1
    %s120 = scalar_select %p117, %s118, %s119
    %p123 = pneg %p117
    %p124 = scmp.eq.s32.totalorder %s24, 1
    %p125 = por %p123, %p124
    %p126 = scmp.ne.s32.totalorder %s118, %s121
    %p127 = scmp.eq.s32.totalorder %s24, 0
    %p128 = por %p126, %p127
    %p129 = scmp.ne.s32.totalorder %s118, %s121
    %p130 = scmp.eq.s32.totalorder %s29, 1
    %p131 = por %p129, %p130
    %p132 = scmp.ne.s32.totalorder %s121, %s122
    %p133 = scmp.eq.s32.totalorder %s29, 0
    %p134 = por %p132, %p133
    %p135 = scmp.ne.s32.totalorder %s121, %s122
    %p136 = scmp.eq.s32.totalorder %s30, 1
    %p137 = por %p135, %p136
    %p139 = scmp.ne.s32.totalorder %s122, %s138
    %p140 = scmp.eq.s32.totalorder %s30, 0
    %p141 = por %p139, %p140
    %s142 = ssub.s32 %s24, %s31
    %p143 = scmp.eq.s32.totalorder %s142, 0
    %s145 = sadd.s32 %s144, 1
    %s146 = scalar_select %p143, %s144, %s145
    %p149 = pneg %p143
    %p150 = scmp.eq.s32.totalorder %s24, 1
    %p151 = por %p149, %p150
    %p152 = scmp.ne.s32.totalorder %s144, %s147
    %p153 = scmp.eq.s32.totalorder %s24, 0
    %p154 = por %p152, %p153
    %p155 = scmp.ne.s32.totalorder %s144, %s147
    %p156 = scmp.eq.s32.totalorder %s29, 1
    %p157 = por %p155, %p156
    %p158 = scmp.ne.s32.totalorder %s147, %s148
    %p159 = scmp.eq.s32.totalorder %s29, 0
    %p160 = por %p158, %p159
    %p161 = scmp.ne.s32.totalorder %s147, %s148
    %p162 = scmp.eq.s32.totalorder %s30, 1
    %p163 = por %p161, %p162
    %p165 = scmp.ne.s32.totalorder %s148, %s164
    %p166 = scmp.eq.s32.totalorder %s30, 0
    %p167 = por %p165, %p166
    %s168 = ssub.s32 %s24, %s31
    %p169 = scmp.eq.s32.totalorder %s168, 0
    %s171 = sadd.s32 %s170, 1
    %s172 = scalar_select %p169, %s170, %s171
    %p175 = pneg %p169
    %p176 = scmp.eq.s32.totalorder %s24, 1
    %p177 = por %p175, %p176
    %p178 = scmp.ne.s32.totalorder %s170, %s173
    %p179 = scmp.eq.s32.totalorder %s24, 0
    %p180 = por %p178, %p179
    %p181 = scmp.ne.s32.totalorder %s170, %s173
    %p182 = scmp.eq.s32.totalorder %s29, 1
    %p183 = por %p181, %p182
    %p184 = scmp.ne.s32.totalorder %s173, %s174
    %p185 = scmp.eq.s32.totalorder %s29, 0
    %p186 = por %p184, %p185
    %p187 = scmp.ne.s32.totalorder %s173, %s174
    %p188 = scmp.eq.s32.totalorder %s30, 1
    %p189 = por %p187, %p188
    %p191 = scmp.ne.s32.totalorder %s174, %s190
    %p192 = scmp.eq.s32.totalorder %s30, 0
    %p193 = por %p191, %p192
    %s194 = ssub.s32 %s24, %s31
    %p195 = scmp.eq.s32.totalorder %s194, 0
    %s197 = sadd.s32 %s196, 1
    %s198 = scalar_select %p195, %s196, %s197
    %p201 = pneg %p195
    %p202 = scmp.eq.s32.totalorder %s24, 1
    %p203 = por %p201, %p202
    %p204 = scmp.ne.s32.totalorder %s196, %s199
    %p205 = scmp.eq.s32.totalorder %s24, 0
    %p206 = por %p204, %p205
    %p207 = scmp.ne.s32.totalorder %s196, %s199
    %p208 = scmp.eq.s32.totalorder %s29, 1
    %p209 = por %p207, %p208
    %p210 = scmp.ne.s32.totalorder %s199, %s200
    %p211 = scmp.eq.s32.totalorder %s29, 0
    %p212 = por %p210, %p211
    %p213 = scmp.ne.s32.totalorder %s199, %s200
    %p214 = scmp.eq.s32.totalorder %s30, 1
    %p215 = por %p213, %p214
    %p217 = scmp.ne.s32.totalorder %s200, %s216
    %p218 = scmp.eq.s32.totalorder %s30, 0
    %p219 = por %p217, %p218
    %s220 = ssub.s32 %s24, %s31
    %p221 = scmp.eq.s32.totalorder %s220, 0
    %s223 = sadd.s32 %s222, 1
    %s224 = scalar_select %p221, %s222, %s223
    %p227 = pneg %p221
    %p228 = scmp.eq.s32.totalorder %s24, 1
    %p229 = por %p227, %p228
    %p230 = scmp.ne.s32.totalorder %s222, %s225
    %p231 = scmp.eq.s32.totalorder %s24, 0
    %p232 = por %p230, %p231
    %p233 = scmp.ne.s32.totalorder %s222, %s225
    %p234 = scmp.eq.s32.totalorder %s29, 1
    %p235 = por %p233, %p234
    %p236 = scmp.ne.s32.totalorder %s225, %s226
    %p237 = scmp.eq.s32.totalorder %s29, 0
    %p238 = por %p236, %p237
    %p239 = scmp.ne.s32.totalorder %s225, %s226
    %p240 = scmp.eq.s32.totalorder %s30, 1
    %p241 = por %p239, %p240
    %p243 = scmp.ne.s32.totalorder %s226, %s242
    %p244 = scmp.eq.s32.totalorder %s30, 0
    %p245 = por %p243, %p244
    %s246 = ssub.s32 %s24, %s31
    %p247 = scmp.eq.s32.totalorder %s246, 0
    %s249 = sadd.s32 %s248, 1
    %s250 = scalar_select %p247, %s248, %s249
    %p253 = pneg %p247
    %p254 = scmp.eq.s32.totalorder %s24, 1
    %p255 = por %p253, %p254
    %p256 = scmp.ne.s32.totalorder %s248, %s251
    %p257 = scmp.eq.s32.totalorder %s24, 0
    %p258 = por %p256, %p257
    %p259 = scmp.ne.s32.totalorder %s248, %s251
    %p260 = scmp.eq.s32.totalorder %s29, 1
    %p261 = por %p259, %p260
    %p262 = scmp.ne.s32.totalorder %s251, %s252
    %p263 = scmp.eq.s32.totalorder %s29, 0
    %p264 = por %p262, %p263
    %p265 = scmp.ne.s32.totalorder %s251, %s252
    %p266 = scmp.eq.s32.totalorder %s30, 1
    %p267 = por %p265, %p266
    %p269 = scmp.ne.s32.totalorder %s252, %s268
    %p270 = scmp.eq.s32.totalorder %s30, 0
    %p271 = por %p269, %p270
    %s272 = ssub.s32 %s24, %s31
    %p273 = scmp.eq.s32.totalorder %s272, 0
    %s275 = sadd.s32 %s274, 1
    %s276 = scalar_select %p273, %s274, %s275
    %p279 = pneg %p273
    %p280 = scmp.eq.s32.totalorder %s24, 1
    %p281 = por %p279, %p280
    %p282 = scmp.ne.s32.totalorder %s274, %s277
    %p283 = scmp.eq.s32.totalorder %s24, 0
    %p284 = por %p282, %p283
    %p285 = scmp.ne.s32.totalorder %s274, %s277
    %p286 = scmp.eq.s32.totalorder %s29, 1
    %p287 = por %p285, %p286
    %p288 = scmp.ne.s32.totalorder %s277, %s278
    %p289 = scmp.eq.s32.totalorder %s29, 0
    %p290 = por %p288, %p289
    %p291 = scmp.ne.s32.totalorder %s277, %s278
    %p292 = scmp.eq.s32.totalorder %s30, 1
    %p293 = por %p291, %p292
    %p295 = scmp.ne.s32.totalorder %s278, %s294
    %p296 = scmp.eq.s32.totalorder %s30, 0
    %p297 = por %p295, %p296
    %s298 = ssub.s32 %s24, %s31
    %p299 = scmp.eq.s32.totalorder %s298, 0
    %s301 = sadd.s32 %s300, 1
    %s302 = scalar_select %p299, %s300, %s301
    %p305 = pneg %p299
    %p306 = scmp.eq.s32.totalorder %s24, 1
    %p307 = por %p305, %p306
    %p308 = scmp.ne.s32.totalorder %s300, %s303
    %p309 = scmp.eq.s32.totalorder %s24, 0
    %p310 = por %p308, %p309
    %p311 = scmp.ne.s32.totalorder %s300, %s303
    %p312 = scmp.eq.s32.totalorder %s29, 1
    %p313 = por %p311, %p312
    %p314 = scmp.ne.s32.totalorder %s303, %s304
    %p315 = scmp.eq.s32.totalorder %s29, 0
    %p316 = por %p314, %p315
    %p317 = scmp.ne.s32.totalorder %s303, %s304
    %p318 = scmp.eq.s32.totalorder %s30, 1
    %p319 = por %p317, %p318
    %p321 = scmp.ne.s32.totalorder %s304, %s320
    %p322 = scmp.eq.s32.totalorder %s30, 0
    %p323 = por %p321, %p322
    %s324 = ssub.s32 %s24, %s31
    %p325 = scmp.eq.s32.totalorder %s324, 0
    %s327 = sadd.s32 %s326, 1
    %s328 = scalar_select %p325, %s326, %s327
    %p331 = pneg %p325
    %p332 = scmp.eq.s32.totalorder %s24, 1
    %p333 = por %p331, %p332
    %p334 = scmp.ne.s32.totalorder %s326, %s329
    %p335 = scmp.eq.s32.totalorder %s24, 0
    %p336 = por %p334, %p335
    %p337 = scmp.ne.s32.totalorder %s326, %s329
    %p338 = scmp.eq.s32.totalorder %s29, 1
    %p339 = por %p337, %p338
    %p340 = scmp.ne.s32.totalorder %s329, %s330
    %p341 = scmp.eq.s32.totalorder %s29, 0
    %p342 = por %p340, %p341
    %p343 = scmp.ne.s32.totalorder %s329, %s330
    %p344 = scmp.eq.s32.totalorder %s30, 1
    %p345 = por %p343, %p344
    %p347 = scmp.ne.s32.totalorder %s330, %s346
    %p348 = scmp.eq.s32.totalorder %s30, 0
    %p349 = por %p347, %p348
    %s350 = ssub.s32 %s24, %s31
    %p351 = scmp.eq.s32.totalorder %s350, 0
    %s353 = sadd.s32 %s352, 1
    %s354 = scalar_select %p351, %s352, %s353
    %p357 = pneg %p351
    %p358 = scmp.eq.s32.totalorder %s24, 1
    %p359 = por %p357, %p358
    %p360 = scmp.ne.s32.totalorder %s352, %s355
    %p361 = scmp.eq.s32.totalorder %s24, 0
    %p362 = por %p360, %p361
    %p363 = scmp.ne.s32.totalorder %s352, %s355
    %p364 = scmp.eq.s32.totalorder %s29, 1
    %p365 = por %p363, %p364
    %p366 = scmp.ne.s32.totalorder %s355, %s356
    %p367 = scmp.eq.s32.totalorder %s29, 0
    %p368 = por %p366, %p367
    %p369 = scmp.ne.s32.totalorder %s355, %s356
    %p370 = scmp.eq.s32.totalorder %s30, 1
    %p371 = por %p369, %p370
    %p373 = scmp.ne.s32.totalorder %s356, %s372
    %p374 = scmp.eq.s32.totalorder %s30, 0
    %p375 = por %p373, %p374
    %s376 = ssub.s32 %s24, %s31
    %p377 = scmp.eq.s32.totalorder %s376, 0
    %s379 = sadd.s32 %s378, 1
    %s380 = scalar_select %p377, %s378, %s379
    %p383 = pneg %p377
    %p384 = scmp.eq.s32.totalorder %s24, 1
    %p385 = por %p383, %p384
    %p386 = scmp.ne.s32.totalorder %s378, %s381
    %p387 = scmp.eq.s32.totalorder %s24, 0
    %p388 = por %p386, %p387
    %p389 = scmp.ne.s32.totalorder %s378, %s381
    %p390 = scmp.eq.s32.totalorder %s29, 1
    %p391 = por %p389, %p390
    %p392 = scmp.ne.s32.totalorder %s381, %s382
    %p393 = scmp.eq.s32.totalorder %s29, 0
    %p394 = por %p392, %p393
    %p395 = scmp.ne.s32.totalorder %s381, %s382
    %p396 = scmp.eq.s32.totalorder %s30, 1
    %p397 = por %p395, %p396
    %p399 = scmp.ne.s32.totalorder %s382, %s398
    %p400 = scmp.eq.s32.totalorder %s30, 0
    %p401 = por %p399, %p400
    %s402 = ssub.s32 %s24, %s31
    %p403 = scmp.eq.s32.totalorder %s402, 0
    %s405 = sadd.s32 %s404, 1
    %s406 = scalar_select %p403, %s404, %s405
    %p409 = pneg %p403
    %p410 = scmp.eq.s32.totalorder %s24, 1
    %p411 = por %p409, %p410
    %p412 = scmp.ne.s32.totalorder %s404, %s407
    %p413 = scmp.eq.s32.totalorder %s24, 0
    %p414 = por %p412, %p413
    %p415 = scmp.ne.s32.totalorder %s404, %s407
    %p416 = scmp.eq.s32.totalorder %s29, 1
    %p417 = por %p415, %p416
    %p418 = scmp.ne.s32.totalorder %s407, %s408
    %p419 = scmp.eq.s32.totalorder %s29, 0
    %p420 = por %p418, %p419
    %p421 = scmp.ne.s32.totalorder %s407, %s408
    %p422 = scmp.eq.s32.totalorder %s30, 1
    %p423 = por %p421, %p422
    %p425 = scmp.ne.s32.totalorder %s408, %s424
    %p426 = scmp.eq.s32.totalorder %s30, 0
    %p427 = por %p425, %p426
    %s429 = sadd.s32 %s428, 1
    %p432 = scmp.eq.s32.totalorder %s24, 1
    %p433 = scmp.ne.s32.totalorder %s428, %s430
    %p434 = scmp.eq.s32.totalorder %s24, 0
    %p435 = por %p433, %p434
    %p436 = scmp.ne.s32.totalorder %s428, %s430
    %p437 = scmp.eq.s32.totalorder %s29, 1
    %p438 = por %p436, %p437
    %p439 = scmp.ne.s32.totalorder %s430, %s431
    %p440 = scmp.eq.s32.totalorder %s29, 0
    %p441 = por %p439, %p440
    %p442 = scmp.ne.s32.totalorder %s430, %s431
    %p443 = scmp.eq.s32.totalorder %s30, 1
    %p444 = por %p442, %p443
    %p446 = scmp.ne.s32.totalorder %s431, %s445
    %p447 = scmp.eq.s32.totalorder %s30, 0
    %p448 = por %p446, %p447
    %s450 = sadd.s32 %s449, 1
    %p453 = scmp.eq.s32.totalorder %s24, 1
    %p454 = scmp.ne.s32.totalorder %s449, %s451
    %p455 = scmp.eq.s32.totalorder %s24, 0
    %p456 = por %p454, %p455
    %p457 = scmp.ne.s32.totalorder %s449, %s451
    %p458 = scmp.eq.s32.totalorder %s29, 1
    %p459 = por %p457, %p458
    %p460 = scmp.ne.s32.totalorder %s451, %s452
    %p461 = scmp.eq.s32.totalorder %s29, 0
    %p462 = por %p460, %p461
    %p463 = scmp.ne.s32.totalorder %s451, %s452
    %p464 = scmp.eq.s32.totalorder %s30, 1
    %p465 = por %p463, %p464
    %p467 = scmp.ne.s32.totalorder %s452, %s466
    %p468 = scmp.eq.s32.totalorder %s30, 0
    %p469 = por %p467, %p468
    %s471 = sadd.s32 %s470, 1
    %p474 = scmp.eq.s32.totalorder %s24, 1
    %p475 = scmp.ne.s32.totalorder %s470, %s472
    %p476 = scmp.eq.s32.totalorder %s24, 0
    %p477 = por %p475, %p476
    %p478 = scmp.ne.s32.totalorder %s470, %s472
    %p479 = scmp.eq.s32.totalorder %s29, 1
    %p480 = por %p478, %p479
    %p481 = scmp.ne.s32.totalorder %s472, %s473
    %p482 = scmp.eq.s32.totalorder %s29, 0
    %p483 = por %p481, %p482
    %p484 = scmp.ne.s32.totalorder %s472, %s473
    %p485 = scmp.eq.s32.totalorder %s30, 1
    %p486 = por %p484, %p485
    %p488 = scmp.ne.s32.totalorder %s473, %s487
    %p489 = scmp.eq.s32.totalorder %s30, 0
    %p490 = por %p488, %p489
    %p491 = scmp.le.s32.totalorder 1, %s24
    %p492 = scmp.lt.s32.totalorder %s24, 3
    %p493 = pnand %p491, %p492
    %p494 = pneg %p493
    // Predicated region
    $region9: #{transformer_decoder_forward.1} parent=5 // pred_check
      _
    $region10: #{transformer_decoder_forward.1} parent=5 // pred_check_branch
      %496 = sbr.rel (%p493) target = $region12
    $region11: #{transformer_decoder_forward.1} parent=5 // pred_region
      %s497 = ssub.s32 %s24, 1
      // Predicated region
      $region13: #{transformer_decoder_forward.1} parent=11 // pred_check
        %p498 = pneg %p45
      $region14: #{transformer_decoder_forward.1} parent=11 // pred_check_branch
        %500 = sbr.rel (%p498) target = $region16
      $region15: #{transformer_decoder_forward.1} parent=11 // pred_region
        _
      $region16: #{transformer_decoder_forward.1} parent=11 // pred_fallthru
        _
      // Predicated region
      $region17: #{transformer_decoder_forward.1} parent=11 // pred_check
        %p501 = pneg %p66
      $region18: #{transformer_decoder_forward.1} parent=11 // pred_check_branch
        %503 = sbr.rel (%p501) target = $region20
      $region19: #{transformer_decoder_forward.1} parent=11 // pred_region
        _
      $region20: #{transformer_decoder_forward.1} parent=11 // pred_fallthru
        _
      // Predicated region
      $region21: #{transformer_decoder_forward.1} parent=11 // pred_check
        %p504 = pneg %p87
      $region22: #{transformer_decoder_forward.1} parent=11 // pred_check_branch
        %506 = sbr.rel (%p504) target = $region24
      $region23: #{transformer_decoder_forward.1} parent=11 // pred_region
        _
      $region24: #{transformer_decoder_forward.1} parent=11 // pred_fallthru
        _
      // Predicated region
      $region25: #{transformer_decoder_forward.1} parent=11 // pred_check
        %p507 = pneg %p108
      $region26: #{transformer_decoder_forward.1} parent=11 // pred_check_branch
        %509 = sbr.rel (%p507) target = $region28
      $region27: #{transformer_decoder_forward.1} parent=11 // pred_region
        _
      $region28: #{transformer_decoder_forward.1} parent=11 // pred_fallthru
        _
      // Predicated region
      $region29: #{transformer_decoder_forward.1} parent=11 // pred_check
        %p510 = pneg %p441
      $region30: #{transformer_decoder_forward.1} parent=11 // pred_check_branch
        %512 = sbr.rel (%p510) target = $region32
      $region31: #{transformer_decoder_forward.1} parent=11 // pred_region
        _
      $region32: #{transformer_decoder_forward.1} parent=11 // pred_fallthru
        _
      // Predicated region
      $region33: #{transformer_decoder_forward.1} parent=11 // pred_check
        %p513 = pneg %p462
      $region34: #{transformer_decoder_forward.1} parent=11 // pred_check_branch
        %515 = sbr.rel (%p513) target = $region36
      $region35: #{transformer_decoder_forward.1} parent=11 // pred_region
        _
      $region36: #{transformer_decoder_forward.1} parent=11 // pred_fallthru
        _
    $region12: #{transformer_decoder_forward.1} parent=5 // pred_fallthru
      _
    %p516 = scmp.lt.s32.totalorder %s24, 2
    // Predicated region
    $region37: #{transformer_decoder_forward.1} parent=5 // pred_check
      %p517 = pneg %p516
    $region38: #{transformer_decoder_forward.1} parent=5 // pred_check_branch
      %519 = sbr.rel (%p517) target = $region40
    $region39: #{transformer_decoder_forward.1} parent=5 // pred_region
      // Predicated region
      $region41: #{transformer_decoder_forward.1} parent=39 // pred_check
        %p520 = pneg %p128
      $region42: #{transformer_decoder_forward.1} parent=39 // pred_check_branch
        %522 = sbr.rel (%p520) target = $region44
      $region43: #{transformer_decoder_forward.1} parent=39 // pred_region
        %p523 = scmp.lt.s32.totalorder %s24, 1
        %s524 = scalar_select %p523, %s24, 1
        %s525 = smul.addr %s524, 4
        %s526 = smul.addr %s525, 4
        %s527 = scalar_lea.vmem %s4, %s526
      $region44: #{transformer_decoder_forward.1} parent=39 // pred_fallthru
        _
      // Predicated region
      $region45: #{transformer_decoder_forward.1} parent=39 // pred_check
        %p528 = pneg %p154
      $region46: #{transformer_decoder_forward.1} parent=39 // pred_check_branch
        %530 = sbr.rel (%p528) target = $region48
      $region47: #{transformer_decoder_forward.1} parent=39 // pred_region
        %p531 = scmp.lt.s32.totalorder %s24, 1
        %s532 = scalar_select %p531, %s24, 1
        %s533 = smul.addr %s532, 4
        %s534 = smul.addr %s533, 4
        %s535 = scalar_lea.vmem %s5, %s534
      $region48: #{transformer_decoder_forward.1} parent=39 // pred_fallthru
        _
      // Predicated region
      $region49: #{transformer_decoder_forward.1} parent=39 // pred_check
        %p536 = pneg %p180
      $region50: #{transformer_decoder_forward.1} parent=39 // pred_check_branch
        %538 = sbr.rel (%p536) target = $region52
      $region51: #{transformer_decoder_forward.1} parent=39 // pred_region
        %p539 = scmp.lt.s32.totalorder %s24, 1
        %s540 = scalar_select %p539, %s24, 1
        %s541 = smul.addr %s540, 4
        %s542 = smul.addr %s541, 4
        %s543 = scalar_lea.vmem %s6, %s542
      $region52: #{transformer_decoder_forward.1} parent=39 // pred_fallthru
        _
      // Predicated region
      $region53: #{transformer_decoder_forward.1} parent=39 // pred_check
        %p544 = pneg %p206
      $region54: #{transformer_decoder_forward.1} parent=39 // pred_check_branch
        %546 = sbr.rel (%p544) target = $region56
      $region55: #{transformer_decoder_forward.1} parent=39 // pred_region
        %p547 = scmp.lt.s32.totalorder %s24, 1
        %s548 = scalar_select %p547, %s24, 1
        %s549 = smul.addr %s548, 4
        %s550 = smul.addr %s549, 4
        %s551 = scalar_lea.vmem %s7, %s550
      $region56: #{transformer_decoder_forward.1} parent=39 // pred_fallthru
        _
      // Predicated region
      $region57: #{transformer_decoder_forward.1} parent=39 // pred_check
        %p552 = pneg %p232
      $region58: #{transformer_decoder_forward.1} parent=39 // pred_check_branch
        %554 = sbr.rel (%p552) target = $region60
      $region59: #{transformer_decoder_forward.1} parent=39 // pred_region
        %p555 = scmp.lt.s32.totalorder %s24, 1
        %s556 = scalar_select %p555, %s24, 1
        %s557 = smul.addr %s556, 4
        %s558 = smul.addr %s557, 4
        %s559 = scalar_lea.vmem %s8, %s558
      $region60: #{transformer_decoder_forward.1} parent=39 // pred_fallthru
        _
      // Predicated region
      $region61: #{transformer_decoder_forward.1} parent=39 // pred_check
        %p560 = pneg %p258
      $region62: #{transformer_decoder_forward.1} parent=39 // pred_check_branch
        %562 = sbr.rel (%p560) target = $region64
      $region63: #{transformer_decoder_forward.1} parent=39 // pred_region
        %p563 = scmp.lt.s32.totalorder %s24, 1
        %s564 = scalar_select %p563, %s24, 1
        %s565 = smul.addr %s564, 4
        %s566 = smul.addr %s565, 4
        %s567 = scalar_lea.vmem %s9, %s566
      $region64: #{transformer_decoder_forward.1} parent=39 // pred_fallthru
        _
      // Predicated region
      $region65: #{transformer_decoder_forward.1} parent=39 // pred_check
        %p568 = pneg %p284
      $region66: #{transformer_decoder_forward.1} parent=39 // pred_check_branch
        %570 = sbr.rel (%p568) target = $region68
      $region67: #{transformer_decoder_forward.1} parent=39 // pred_region
        %p571 = scmp.lt.s32.totalorder %s24, 1
        %s572 = scalar_select %p571, %s24, 1
        %s573 = smul.addr %s572, 4
        %s574 = smul.addr %s573, 4
        %s575 = scalar_lea.vmem %s10, %s574
      $region68: #{transformer_decoder_forward.1} parent=39 // pred_fallthru
        _
      // Predicated region
      $region69: #{transformer_decoder_forward.1} parent=39 // pred_check
        %p576 = pneg %p310
      $region70: #{transformer_decoder_forward.1} parent=39 // pred_check_branch
        %578 = sbr.rel (%p576) target = $region72
      $region71: #{transformer_decoder_forward.1} parent=39 // pred_region
        %p579 = scmp.lt.s32.totalorder %s24, 1
        %s580 = scalar_select %p579, %s24, 1
        %s581 = smul.addr %s580, 4
        %s582 = smul.addr %s581, 4
        %s583 = scalar_lea.vmem %s11, %s582
      $region72: #{transformer_decoder_forward.1} parent=39 // pred_fallthru
        _
      // Predicated region
      $region73: #{transformer_decoder_forward.1} parent=39 // pred_check
        %p584 = pneg %p336
      $region74: #{transformer_decoder_forward.1} parent=39 // pred_check_branch
        %586 = sbr.rel (%p584) target = $region76
      $region75: #{transformer_decoder_forward.1} parent=39 // pred_region
        %p587 = scmp.lt.s32.totalorder %s24, 1
        %s588 = scalar_select %p587, %s24, 1
        %s589 = smul.addr %s588, 8
        %s590 = smul.addr %s589, 4
        %s591 = scalar_lea.vmem %s12, %s590
      $region76: #{transformer_decoder_forward.1} parent=39 // pred_fallthru
        _
      // Predicated region
      $region77: #{transformer_decoder_forward.1} parent=39 // pred_check
        %p592 = pneg %p362
      $region78: #{transformer_decoder_forward.1} parent=39 // pred_check_branch
        %594 = sbr.rel (%p592) target = $region80
      $region79: #{transformer_decoder_forward.1} parent=39 // pred_region
        %p595 = scmp.lt.s32.totalorder %s24, 1
        %s596 = scalar_select %p595, %s24, 1
        %s597 = smul.addr %s596, 4
        %s598 = smul.addr %s597, 4
        %s599 = scalar_lea.vmem %s13, %s598
      $region80: #{transformer_decoder_forward.1} parent=39 // pred_fallthru
        _
      // Predicated region
      $region81: #{transformer_decoder_forward.1} parent=39 // pred_check
        %p600 = pneg %p388
      $region82: #{transformer_decoder_forward.1} parent=39 // pred_check_branch
        %602 = sbr.rel (%p600) target = $region84
      $region83: #{transformer_decoder_forward.1} parent=39 // pred_region
        %p603 = scmp.lt.s32.totalorder %s24, 1
        %s604 = scalar_select %p603, %s24, 1
        %s605 = scalar_lea.vmem %s14, %s604
      $region84: #{transformer_decoder_forward.1} parent=39 // pred_fallthru
        _
      // Predicated region
      $region85: #{transformer_decoder_forward.1} parent=39 // pred_check
        %p606 = pneg %p414
      $region86: #{transformer_decoder_forward.1} parent=39 // pred_check_branch
        %608 = sbr.rel (%p606) target = $region88
      $region87: #{transformer_decoder_forward.1} parent=39 // pred_region
        %p609 = scmp.lt.s32.totalorder %s24, 1
        %s610 = scalar_select %p609, %s24, 1
        %s611 = smul.addr %s610, 2
        %s612 = smul.addr %s611, 8
        %s613 = scalar_lea.vmem %s15, %s612
      $region88: #{transformer_decoder_forward.1} parent=39 // pred_fallthru
        _
    $region40: #{transformer_decoder_forward.1} parent=5 // pred_fallthru
      _
    %p614 = scmp.le.s32.totalorder 1, %s24
    %p615 = scmp.lt.s32.totalorder %s24, 3
    %p616 = pnand %p614, %p615
    %p617 = pneg %p616
    // Predicated region
    $region89: #{transformer_decoder_forward.1} parent=5 // pred_check
      _
    $region90: #{transformer_decoder_forward.1} parent=5 // pred_check_branch
      %619 = sbr.rel (%p616) target = $region92
    $region91: #{transformer_decoder_forward.1} parent=5 // pred_region
      %s620 = ssub.s32 %s24, 1
      %p621 = pneg %p45
      %p622 = pneg %p42
      %p623 = pneg %p66
      %p624 = pneg %p63
      %p625 = pneg %p87
      %p626 = pneg %p84
      %p627 = pneg %p108
      %p628 = pneg %p105
      %p629 = scmp.lt.s32.totalorder %s29, 1
      %s630 = scalar_select %p629, %s29, 1
      %s631 = smul.addr %s630, 4
      %s632 = smul.addr %s631, 4
      %s633 = scalar_lea.vmem %s4, %s632
      %p634 = pneg %p134
      %p635 = pneg %p131
      %p636 = scmp.lt.s32.totalorder %s29, 1
      %s637 = scalar_select %p636, %s29, 1
      %s638 = smul.addr %s637, 4
      %s639 = smul.addr %s638, 4
      %s640 = scalar_lea.vmem %s5, %s639
      %p641 = pneg %p160
      %p642 = pneg %p157
      %p643 = scmp.lt.s32.totalorder %s29, 1
      %s644 = scalar_select %p643, %s29, 1
      %s645 = smul.addr %s644, 4
      %s646 = smul.addr %s645, 4
      %s647 = scalar_lea.vmem %s6, %s646
      %p648 = pneg %p186
      %p649 = pneg %p183
      %p650 = scmp.lt.s32.totalorder %s29, 1
      %s651 = scalar_select %p650, %s29, 1
      %s652 = smul.addr %s651, 4
      %s653 = smul.addr %s652, 4
      %s654 = scalar_lea.vmem %s7, %s653
      %p655 = pneg %p212
      %p656 = pneg %p209
      %p657 = scmp.lt.s32.totalorder %s29, 1
      %s658 = scalar_select %p657, %s29, 1
      %s659 = smul.addr %s658, 4
      %s660 = smul.addr %s659, 4
      %s661 = scalar_lea.vmem %s8, %s660
      %p662 = pneg %p238
      %p663 = pneg %p235
      %p664 = scmp.lt.s32.totalorder %s29, 1
      %s665 = scalar_select %p664, %s29, 1
      %s666 = smul.addr %s665, 4
      %s667 = smul.addr %s666, 4
      %s668 = scalar_lea.vmem %s9, %s667
      %p669 = pneg %p264
      %p670 = pneg %p261
      %p671 = scmp.lt.s32.totalorder %s29, 1
      %s672 = scalar_select %p671, %s29, 1
      %s673 = smul.addr %s672, 4
      %s674 = smul.addr %s673, 4
      %s675 = scalar_lea.vmem %s10, %s674
      %p676 = pneg %p290
      %p677 = pneg %p287
      %p678 = scmp.lt.s32.totalorder %s29, 1
      %s679 = scalar_select %p678, %s29, 1
      %s680 = smul.addr %s679, 4
      %s681 = smul.addr %s680, 4
      %s682 = scalar_lea.vmem %s11, %s681
      %p683 = pneg %p316
      %p684 = pneg %p313
      %p685 = scmp.lt.s32.totalorder %s29, 1
      %s686 = scalar_select %p685, %s29, 1
      %s687 = smul.addr %s686, 8
      %s688 = smul.addr %s687, 4
      %s689 = scalar_lea.vmem %s12, %s688
      %p690 = pneg %p342
      %p691 = pneg %p339
      %p692 = scmp.lt.s32.totalorder %s29, 1
      %s693 = scalar_select %p692, %s29, 1
      %s694 = smul.addr %s693, 4
      %s695 = smul.addr %s694, 4
      %s696 = scalar_lea.vmem %s13, %s695
      %p697 = pneg %p368
      %p698 = pneg %p365
      %p699 = scmp.lt.s32.totalorder %s29, 1
      %s700 = scalar_select %p699, %s29, 1
      %s701 = scalar_lea.vmem %s14, %s700
      %p702 = pneg %p394
      %p703 = pneg %p391
      %p704 = scmp.lt.s32.totalorder %s29, 1
      %s705 = scalar_select %p704, %s29, 1
      %s706 = smul.addr %s705, 2
      %s707 = smul.addr %s706, 8
      %s708 = scalar_lea.vmem %s15, %s707
      %p709 = pneg %p420
      %p710 = pneg %p417
      %p711 = pneg %p441
      %p712 = pneg %p438
      %p713 = pneg %p462
      %p714 = pneg %p459
      %p715 = pneg %p483
      %p716 = pneg %p480
      %p717 = scmp.lt.s32.totalorder %s29, 1
      %s718 = scalar_select %p717, %s29, 1
      %s719 = smul.addr %s718, 4
      %s720 = smul.addr %s719, 4
      %s721 = scalar_lea.vmem %s4, %s720
      %p722 = scmp.lt.s32.totalorder %s29, 1
      %s723 = scalar_select %p722, %s29, 1
      %s724 = smul.addr %s723, 4
      %s725 = smul.addr %s724, 4
      %s726 = scalar_lea.vmem %s5, %s725
      %p727 = scmp.lt.s32.totalorder %s29, 1
      %s728 = scalar_select %p727, %s29, 1
      %s729 = smul.addr %s728, 4
      %s730 = smul.addr %s729, 4
      %s731 = scalar_lea.vmem %s6, %s730
      %p732 = scmp.lt.s32.totalorder %s29, 1
      %s733 = scalar_select %p732, %s29, 1
      %s734 = smul.addr %s733, 4
      %s735 = smul.addr %s734, 4
      %s736 = scalar_lea.vmem %s7, %s735
      %p737 = scmp.lt.s32.totalorder %s29, 1
      %s738 = scalar_select %p737, %s29, 1
      %s739 = smul.addr %s738, 4
      %s740 = smul.addr %s739, 4
      %s741 = scalar_lea.vmem %s8, %s740
      %p742 = scmp.lt.s32.totalorder %s29, 1
      %s743 = scalar_select %p742, %s29, 1
      %s744 = smul.addr %s743, 4
      %s745 = smul.addr %s744, 4
      %s746 = scalar_lea.vmem %s9, %s745
      %p747 = scmp.lt.s32.totalorder %s29, 1
      %s748 = scalar_select %p747, %s29, 1
      %s749 = smul.addr %s748, 4
      %s750 = smul.addr %s749, 4
      %s751 = scalar_lea.vmem %s10, %s750
      %p752 = scmp.lt.s32.totalorder %s29, 1
      %s753 = scalar_select %p752, %s29, 1
      %s754 = smul.addr %s753, 4
      %s755 = smul.addr %s754, 4
      %s756 = scalar_lea.vmem %s11, %s755
      %p757 = scmp.lt.s32.totalorder %s29, 1
      %s758 = scalar_select %p757, %s29, 1
      %s759 = smul.addr %s758, 8
      %s760 = smul.addr %s759, 4
      %s761 = scalar_lea.vmem %s12, %s760
      %p762 = scmp.lt.s32.totalorder %s29, 1
      %s763 = scalar_select %p762, %s29, 1
      %s764 = smul.addr %s763, 4
      %s765 = smul.addr %s764, 4
      %s766 = scalar_lea.vmem %s13, %s765
      %p767 = scmp.lt.s32.totalorder %s29, 1
      %s768 = scalar_select %p767, %s29, 1
      %s769 = scalar_lea.vmem %s14, %s768
      %p770 = scmp.lt.s32.totalorder %s29, 1
      %s771 = scalar_select %p770, %s29, 1
      %s772 = smul.addr %s771, 2
      %s773 = smul.addr %s772, 8
      %s774 = scalar_lea.vmem %s15, %s773
      %p776 = scmp.eq.s32.totalorder %s29, 0
      // Predicated region
      $region93: #{transformer_decoder_forward.1} parent=91 // pred_check
        %p777 = pneg %p776
      $region94: #{transformer_decoder_forward.1} parent=91 // pred_check_branch
        %779 = sbr.rel (%p777) target = $region96
      $region95: #{transformer_decoder_forward.1} parent=91 // pred_region
        %v780 = vld [vmem:[%s0] sm:$0xff]
        %v781 = vld [vmem:[%s0 + $0x8] sm:$0xff]
        %vm782 = vcmask 261120
        %783 = vst.msk [vmem:[#allocation2] sm:$0xff] %vm782, %v780
        %784 = vst.msk [vmem:[#allocation2 + $0x8] sm:$0xff] %vm782, %v781
      $region96: #{transformer_decoder_forward.1} parent=91 // pred_fallthru
        _
      %v785 = vld [vmem:[%s774] sm:$0xff]
      %v786 = vld [vmem:[%s774 + $0x8] sm:$0x7f]
      %v787 = vld [vmem:[#allocation2] sm:$0xff]
      %v788 = vld [vmem:[#allocation2 + $0x8] sm:$0xff]
      %v789 = vld [vmem:[%s1] sm:$0xff]
      %v790 = vld [vmem:[%s1 + $0x8] sm:$0xff]
      %v791 = vadd.f32 %v787, %v789
      %v792 = vadd.f32 %v788, %v790
      %v793 = vld [vmem:[%s721] sm:$0xf]
      %v794 = vld [vmem:[%s721 + $0x4] sm:$0xf]
      %v795 = vld [vmem:[%s721 + $0x8] sm:$0xf]
      %v796 = vld [vmem:[%s721 + $0xc] sm:$0xf]
      %v797 = vld [vmem:[%s726] sm:$0xf]
      %v798 = vld [vmem:[%s726 + $0x4] sm:$0xf]
      %v799 = vld [vmem:[%s726 + $0x8] sm:$0xf]
      %v800 = vld [vmem:[%s726 + $0xc] sm:$0xf]
      %v801 = vld [vmem:[%s731] sm:$0xf]
      %v802 = vld [vmem:[%s731 + $0x4] sm:$0xf]
      %v803 = vld [vmem:[%s731 + $0x8] sm:$0xf]
      %v804 = vld [vmem:[%s731 + $0xc] sm:$0xf]
      %v805 = vld [vmem:[%s736] sm:$0xf]
      %v806 = vld [vmem:[%s736 + $0x4] sm:$0xf]
      %v807 = vld [vmem:[%s736 + $0x8] sm:$0xf]
      %v808 = vld [vmem:[%s736 + $0xc] sm:$0xf]
      %v809 = vpack.c.bf16 %v792, %v791
      %v810 = vperm.slane %v785, 0
      %v815 = vunpack.c.l.b16 %v793
      %v816 = vunpack.c.l.b16 %v794
      %v817 = vunpack.c.l.b16 %v795
      %v818 = vunpack.c.l.b16 %v796
      %v819 = vpack.c.b16 %v816, %v815
      %v820 = vpack.c.b16 %v818, %v817
      %vm821 = vcmask 261120
      %v823 = vsel %vm821, %v809, 0
      %v826 = vsel %vm821, %v819, 0
      %v829 = vsel %vm821, %v820, 0
      %831 = vmatpush.bf16.xpose.msra.mxu0 0
      %832 = vmatpush.bf16.xpose.msra.mxu0 0
      %833 = vmatpush.bf16.xpose.msra.mxu0 0
      %834 = vmatpush.bf16.xpose.msra.mxu0 0
      %835 = vmatpush.bf16.xpose.msra.mxu0 0
      %836 = vmatpush.bf16.xpose.msra.mxu0 0
      %837 = vmatpush.bf16.xpose.msra.mxu0 %v829
      %838 = vmatpush.bf16.xpose.msra.mxu0 %v826
      %839 = vmatmul.bf16.gmra.mxu0 %v823
      %v840 = vpop.f32.mrf.mxu0
      %v841 = vadd.f32 %v810, %v840
      %v842 = vpop.f32.mrf.mxu0
      %v843 = vadd.f32 %v810, %v842
      %844 = vdwg.mxu0
      %v845 = vperm.slane %v785, 1
      %v850 = vunpack.c.l.b16 %v797
      %v851 = vunpack.c.l.b16 %v798
      %v852 = vunpack.c.l.b16 %v799
      %v853 = vunpack.c.l.b16 %v800
      %v854 = vpack.c.b16 %v851, %v850
      %v855 = vpack.c.b16 %v853, %v852
      %v857 = vsel %vm821, %v854, 0
      %v860 = vsel %vm821, %v855, 0
      %862 = vmatpush.bf16.xpose.msra.mxu0 0
      %863 = vmatpush.bf16.xpose.msra.mxu0 0
      %864 = vmatpush.bf16.xpose.msra.mxu0 0
      %865 = vmatpush.bf16.xpose.msra.mxu0 0
      %866 = vmatpush.bf16.xpose.msra.mxu0 0
      %867 = vmatpush.bf16.xpose.msra.mxu0 0
      %868 = vmatpush.bf16.xpose.msra.mxu0 %v860
      %869 = vmatpush.bf16.xpose.msra.mxu0 %v857
      %870 = vmatmul.bf16.gmra.mxu0 %v823
      %v871 = vpop.f32.mrf.mxu0
      %v872 = vadd.f32 %v845, %v871
      %v873 = vpop.f32.mrf.mxu0
      %v874 = vadd.f32 %v845, %v873
      %875 = vdwg.mxu0
      %v876 = vpack.c.bf16 %v788, %v787
      %v877 = vperm.slane %v785, 2
      %v882 = vunpack.c.l.b16 %v801
      %v883 = vunpack.c.l.b16 %v802
      %v884 = vunpack.c.l.b16 %v803
      %v885 = vunpack.c.l.b16 %v804
      %v886 = vpack.c.b16 %v883, %v882
      %v887 = vpack.c.b16 %v885, %v884
      %v889 = vsel %vm821, %v876, 0
      %v892 = vsel %vm821, %v886, 0
      %v895 = vsel %vm821, %v887, 0
      %897 = vmatpush.bf16.xpose.msra.mxu0 0
      %898 = vmatpush.bf16.xpose.msra.mxu0 0
      %899 = vmatpush.bf16.xpose.msra.mxu0 0
      %900 = vmatpush.bf16.xpose.msra.mxu0 0
      %901 = vmatpush.bf16.xpose.msra.mxu0 0
      %902 = vmatpush.bf16.xpose.msra.mxu0 0
      %903 = vmatpush.bf16.xpose.msra.mxu0 %v895
      %904 = vmatpush.bf16.xpose.msra.mxu0 %v892
      %905 = vmatmul.bf16.gmra.mxu0 %v889
      %v906 = vpop.f32.mrf.mxu0
      %v907 = vadd.f32 %v877, %v906
      %v908 = vpop.f32.mrf.mxu0
      %v909 = vadd.f32 %v877, %v908
      %910 = vdwg.mxu0
      %v911 = vpack.c.bf16 %v841, %v841
      %v912 = vpack.c.bf16 %v872, %v872
      %vm913 = vcmask 64512
      %v915 = vsel %vm913, %v911, 0
      %v918 = vsel %vm913, %v912, 0
      %920 = vmatpush.bf16.xpose.msra.mxu0 0
      %921 = vmatpush.bf16.xpose.msra.mxu0 0
      %922 = vmatpush.bf16.xpose.msra.mxu0 0
      %923 = vmatpush.bf16.xpose.msra.mxu0 0
      %924 = vmatpush.bf16.xpose.msra.mxu0 0
      %925 = vmatpush.bf16.xpose.msra.mxu0 0
      %926 = vmatpush.bf16.xpose.msra.mxu0 0
      %927 = vmatpush.bf16.xpose.msra.mxu0 %v918
      %928 = vmatmul.bf16.gmra.mxu0 %v915
      %v929 = vpop.f32.mrf.mxu0
      %v930 = vadd.f32 0.0, %v929
      %v931 = vpop.f32.mrf.mxu0
      %932 = vdwg.mxu0
      %v933 = vsel %vm913, %v930, -inf
      %934 = vmax.xlane.f32.xlu0 %v933
      %v935 = vpop.xlane.xlu0 %934
      %v936 = vsub.f32 %v930, %v935
      %v937 = vmul.f32 %v936, 1.442695
      %v938 = vpow.pop %v937
      %v939 = vsel %vm913, %v938, 0.0
      %940 = vadd.xlane.f32.xlu0 %v939
      %v941 = vpop.xlane.xlu0 %940
      %v942 = vrcp.pop %v941
      %v943 = vmul.f32 %v938, %v942
      %v944 = vpack.c.bf16 %v943, %v943
      %v945 = vpack.c.bf16 %v907, %v907
      %v947 = vsel %vm913, %v944, 0
      %vm949 = vcmask 1043456
      %v951 = vsel %vm949, %v945, 0
      %953 = vmatpush.bf16.msra.mxu0 0
      %954 = vmatpush.bf16.msra.mxu0 0
      %955 = vmatpush.bf16.msra.mxu0 0
      %956 = vmatpush.bf16.msra.mxu0 0
      %957 = vmatpush.bf16.msra.mxu0 0
      %958 = vmatpush.bf16.msra.mxu0 0
      %959 = vmatpush.bf16.msra.mxu0 0
      %960 = vmatpush.bf16.msra.mxu0 %v951
      %961 = vmatmul.bf16.gmra.mxu0 %v947
      %v962 = vpop.f32.mrf.mxu0
      %v963 = vadd.f32 0.0, %v962
      %v964 = vpop.f32.mrf.mxu0
      %965 = vdwg.mxu0
      %966 = vst.msk [vmem:[#allocation3] sm:$0xff] %vm913, %v963
      %968 = vrot.lane.b32.xlu0 %v911, 120
      %v969 = vpop.permute.xlu0 %968
      %971 = vrot.lane.b32.xlu0 %v912, 120
      %v972 = vpop.permute.xlu0 %971
      %v974 = vsel %vm913, %v969, 0
      %v977 = vsel %vm913, %v972, 0
      %979 = vmatpush.bf16.xpose.msra.mxu0 0
      %980 = vmatpush.bf16.xpose.msra.mxu0 0
      %981 = vmatpush.bf16.xpose.msra.mxu0 0
      %982 = vmatpush.bf16.xpose.msra.mxu0 0
      %983 = vmatpush.bf16.xpose.msra.mxu0 0
      %984 = vmatpush.bf16.xpose.msra.mxu0 0
      %985 = vmatpush.bf16.xpose.msra.mxu0 0
      %986 = vmatpush.bf16.xpose.msra.mxu0 %v977
      %987 = vmatmul.bf16.gmra.mxu0 %v974
      %v988 = vpop.f32.mrf.mxu0
      %v989 = vadd.f32 0.0, %v988
      %v990 = vpop.f32.mrf.mxu0
      %991 = vdwg.mxu0
      %v992 = vsel %vm913, %v989, -inf
      %993 = vmax.xlane.f32.xlu0 %v992
      %v994 = vpop.xlane.xlu0 %993
      %v995 = vsub.f32 %v989, %v994
      %v996 = vmul.f32 %v995, 1.442695
      %v997 = vpow.pop %v996
      %v998 = vsel %vm913, %v997, 0.0
      %999 = vadd.xlane.f32.xlu0 %v998
      %v1000 = vpop.xlane.xlu0 %999
      %v1001 = vrcp.pop %v1000
      %v1002 = vmul.f32 %v997, %v1001
      %v1003 = vpack.c.bf16 %v1002, %v1002
      %1005 = vrot.lane.b32.xlu0 %v945, 120
      %v1006 = vpop.permute.xlu0 %1005
      %v1008 = vsel %vm913, %v1003, 0
      %v1011 = vsel %vm949, %v1006, 0
      %1013 = vmatpush.bf16.msra.mxu0 0
      %1014 = vmatpush.bf16.msra.mxu0 0
      %1015 = vmatpush.bf16.msra.mxu0 0
      %1016 = vmatpush.bf16.msra.mxu0 0
      %1017 = vmatpush.bf16.msra.mxu0 0
      %1018 = vmatpush.bf16.msra.mxu0 0
      %1019 = vmatpush.bf16.msra.mxu0 0
      %1020 = vmatpush.bf16.msra.mxu0 %v1011
      %1021 = vmatmul.bf16.gmra.mxu0 %v1008
      %v1022 = vpop.f32.mrf.mxu0
      %v1023 = vadd.f32 0.0, %v1022
      %v1024 = vpop.f32.mrf.mxu0
      %1025 = vdwg.mxu0
      %1027 = vrot.lane.b32.xlu0 %v1023, 8
      %v1028 = vpop.permute.xlu0 %1027
      %vm1030 = vcmask 130112
      %1031 = vst.msk [vmem:[#allocation3] sm:$0xff] %vm1030, %v1028
      %1032 = vrot.lane.b32.xlu0 %v911, 112
      %v1033 = vpop.permute.xlu0 %1032
      %1034 = vrot.lane.b32.xlu0 %v912, 112
      %v1035 = vpop.permute.xlu0 %1034
      %v1037 = vsel %vm913, %v1033, 0
      %v1040 = vsel %vm913, %v1035, 0
      %1042 = vmatpush.bf16.xpose.msra.mxu0 0
      %1043 = vmatpush.bf16.xpose.msra.mxu0 0
      %1044 = vmatpush.bf16.xpose.msra.mxu0 0
      %1045 = vmatpush.bf16.xpose.msra.mxu0 0
      %1046 = vmatpush.bf16.xpose.msra.mxu0 0
      %1047 = vmatpush.bf16.xpose.msra.mxu0 0
      %1048 = vmatpush.bf16.xpose.msra.mxu0 0
      %1049 = vmatpush.bf16.xpose.msra.mxu0 %v1040
      %1050 = vmatmul.bf16.gmra.mxu0 %v1037
      %v1051 = vpop.f32.mrf.mxu0
      %v1052 = vadd.f32 0.0, %v1051
      %v1053 = vpop.f32.mrf.mxu0
      %1054 = vdwg.mxu0
      %v1055 = vsel %vm913, %v1052, -inf
      %1056 = vmax.xlane.f32.xlu0 %v1055
      %v1057 = vpop.xlane.xlu0 %1056
      %v1058 = vsub.f32 %v1052, %v1057
      %v1059 = vmul.f32 %v1058, 1.442695
      %v1060 = vpow.pop %v1059
      %v1061 = vsel %vm913, %v1060, 0.0
      %1062 = vadd.xlane.f32.xlu0 %v1061
      %v1063 = vpop.xlane.xlu0 %1062
      %v1064 = vrcp.pop %v1063
      %v1065 = vmul.f32 %v1060, %v1064
      %v1066 = vpack.c.bf16 %v1065, %v1065
      %1067 = vrot.lane.b32.xlu0 %v945, 112
      %v1068 = vpop.permute.xlu0 %1067
      %v1070 = vsel %vm913, %v1066, 0
      %v1073 = vsel %vm949, %v1068, 0
      %1075 = vmatpush.bf16.msra.mxu0 0
      %1076 = vmatpush.bf16.msra.mxu0 0
      %1077 = vmatpush.bf16.msra.mxu0 0
      %1078 = vmatpush.bf16.msra.mxu0 0
      %1079 = vmatpush.bf16.msra.mxu0 0
      %1080 = vmatpush.bf16.msra.mxu0 0
      %1081 = vmatpush.bf16.msra.mxu0 0
      %1082 = vmatpush.bf16.msra.mxu0 %v1073
      %1083 = vmatmul.bf16.gmra.mxu0 %v1070
      %v1084 = vpop.f32.mrf.mxu0
      %v1085 = vadd.f32 0.0, %v1084
      %v1086 = vpop.f32.mrf.mxu0
      %1087 = vdwg.mxu0
      %1089 = vrot.lane.b32.xlu0 %v1085, 16
      %v1090 = vpop.permute.xlu0 %1089
      %vm1092 = vcmask 195712
      %1093 = vst.msk [vmem:[#allocation3] sm:$0xff] %vm1092, %v1090
      %1094 = vrot.lane.b32.xlu0 %v911, 104
      %v1095 = vpop.permute.xlu0 %1094
      %1096 = vrot.lane.b32.xlu0 %v912, 104
      %v1097 = vpop.permute.xlu0 %1096
      %v1099 = vsel %vm913, %v1095, 0
      %v1102 = vsel %vm913, %v1097, 0
      %1104 = vmatpush.bf16.xpose.msra.mxu0 0
      %1105 = vmatpush.bf16.xpose.msra.mxu0 0
      %1106 = vmatpush.bf16.xpose.msra.mxu0 0
      %1107 = vmatpush.bf16.xpose.msra.mxu0 0
      %1108 = vmatpush.bf16.xpose.msra.mxu0 0
      %1109 = vmatpush.bf16.xpose.msra.mxu0 0
      %1110 = vmatpush.bf16.xpose.msra.mxu0 0
      %1111 = vmatpush.bf16.xpose.msra.mxu0 %v1102
      %1112 = vmatmul.bf16.gmra.mxu0 %v1099
      %v1113 = vpop.f32.mrf.mxu0
      %v1114 = vadd.f32 0.0, %v1113
      %v1115 = vpop.f32.mrf.mxu0
      %1116 = vdwg.mxu0
      %v1117 = vsel %vm913, %v1114, -inf
      %1118 = vmax.xlane.f32.xlu0 %v1117
      %v1119 = vpop.xlane.xlu0 %1118
      %v1120 = vsub.f32 %v1114, %v1119
      %v1121 = vmul.f32 %v1120, 1.442695
      %v1122 = vpow.pop %v1121
      %v1123 = vsel %vm913, %v1122, 0.0
      %1124 = vadd.xlane.f32.xlu0 %v1123
      %v1125 = vpop.xlane.xlu0 %1124
      %v1126 = vrcp.pop %v1125
      %v1127 = vmul.f32 %v1122, %v1126
      %v1128 = vpack.c.bf16 %v1127, %v1127
      %1129 = vrot.lane.b32.xlu0 %v945, 104
      %v1130 = vpop.permute.xlu0 %1129
      %v1132 = vsel %vm913, %v1128, 0
      %v1135 = vsel %vm949, %v1130, 0
      %1137 = vmatpush.bf16.msra.mxu0 0
      %1138 = vmatpush.bf16.msra.mxu0 0
      %1139 = vmatpush.bf16.msra.mxu0 0
      %1140 = vmatpush.bf16.msra.mxu0 0
      %1141 = vmatpush.bf16.msra.mxu0 0
      %1142 = vmatpush.bf16.msra.mxu0 0
      %1143 = vmatpush.bf16.msra.mxu0 0
      %1144 = vmatpush.bf16.msra.mxu0 %v1135
      %1145 = vmatmul.bf16.gmra.mxu0 %v1132
      %v1146 = vpop.f32.mrf.mxu0
      %v1147 = vadd.f32 0.0, %v1146
      %v1148 = vpop.f32.mrf.mxu0
      %1149 = vdwg.mxu0
      %1151 = vrot.lane.b32.xlu0 %v1147, 24
      %v1152 = vpop.permute.xlu0 %1151
      %vm1154 = vcmask 261312
      %1155 = vst.msk [vmem:[#allocation3] sm:$0xff] %vm1154, %v1152
      %v1156 = vpack.c.bf16 %v843, %v843
      %v1157 = vpack.c.bf16 %v874, %v874
      %v1159 = vsel %vm913, %v1156, 0
      %v1162 = vsel %vm913, %v1157, 0
      %1164 = vmatpush.bf16.xpose.msra.mxu0 0
      %1165 = vmatpush.bf16.xpose.msra.mxu0 0
      %1166 = vmatpush.bf16.xpose.msra.mxu0 0
      %1167 = vmatpush.bf16.xpose.msra.mxu0 0
      %1168 = vmatpush.bf16.xpose.msra.mxu0 0
      %1169 = vmatpush.bf16.xpose.msra.mxu0 0
      %1170 = vmatpush.bf16.xpose.msra.mxu0 0
      %1171 = vmatpush.bf16.xpose.msra.mxu0 %v1162
      %1172 = vmatmul.bf16.gmra.mxu0 %v1159
      %v1173 = vpop.f32.mrf.mxu0
      %v1174 = vadd.f32 0.0, %v1173
      %v1175 = vpop.f32.mrf.mxu0
      %1176 = vdwg.mxu0
      %v1177 = vsel %vm913, %v1174, -inf
      %1178 = vmax.xlane.f32.xlu0 %v1177
      %v1179 = vpop.xlane.xlu0 %1178
      %v1180 = vsub.f32 %v1174, %v1179
      %v1181 = vmul.f32 %v1180, 1.442695
      %v1182 = vpow.pop %v1181
      %v1183 = vsel %vm913, %v1182, 0.0
      %1184 = vadd.xlane.f32.xlu0 %v1183
      %v1185 = vpop.xlane.xlu0 %1184
      %v1186 = vrcp.pop %v1185
      %v1187 = vmul.f32 %v1182, %v1186
      %v1188 = vpack.c.bf16 %v1187, %v1187
      %v1189 = vpack.c.bf16 %v909, %v909
      %v1191 = vsel %vm913, %v1188, 0
      %v1194 = vsel %vm949, %v1189, 0
      %1196 = vmatpush.bf16.msra.mxu0 0
      %1197 = vmatpush.bf16.msra.mxu0 0
      %1198 = vmatpush.bf16.msra.mxu0 0
      %1199 = vmatpush.bf16.msra.mxu0 0
      %1200 = vmatpush.bf16.msra.mxu0 0
      %1201 = vmatpush.bf16.msra.mxu0 0
      %1202 = vmatpush.bf16.msra.mxu0 0
      %1203 = vmatpush.bf16.msra.mxu0 %v1194
      %1204 = vmatmul.bf16.gmra.mxu0 %v1191
      %v1205 = vpop.f32.mrf.mxu0
      %v1206 = vadd.f32 0.0, %v1205
      %v1207 = vpop.f32.mrf.mxu0
      %1208 = vdwg.mxu0
      %1209 = vst.msk [vmem:[#allocation3 + $0x8] sm:$0xff] %vm913, %v1206
      %1211 = vrot.lane.b32.xlu0 %v1156, 120
      %v1212 = vpop.permute.xlu0 %1211
      %1214 = vrot.lane.b32.xlu0 %v1157, 120
      %v1215 = vpop.permute.xlu0 %1214
      %v1217 = vsel %vm913, %v1212, 0
      %v1220 = vsel %vm913, %v1215, 0
      %1222 = vmatpush.bf16.xpose.msra.mxu0 0
      %1223 = vmatpush.bf16.xpose.msra.mxu0 0
      %1224 = vmatpush.bf16.xpose.msra.mxu0 0
      %1225 = vmatpush.bf16.xpose.msra.mxu0 0
      %1226 = vmatpush.bf16.xpose.msra.mxu0 0
      %1227 = vmatpush.bf16.xpose.msra.mxu0 0
      %1228 = vmatpush.bf16.xpose.msra.mxu0 0
      %1229 = vmatpush.bf16.xpose.msra.mxu0 %v1220
      %1230 = vmatmul.bf16.gmra.mxu0 %v1217
      %v1231 = vpop.f32.mrf.mxu0
      %v1232 = vadd.f32 0.0, %v1231
      %v1233 = vpop.f32.mrf.mxu0
      %1234 = vdwg.mxu0
      %v1235 = vsel %vm913, %v1232, -inf
      %1236 = vmax.xlane.f32.xlu0 %v1235
      %v1237 = vpop.xlane.xlu0 %1236
      %v1238 = vsub.f32 %v1232, %v1237
      %v1239 = vmul.f32 %v1238, 1.442695
      %v1240 = vpow.pop %v1239
      %v1241 = vsel %vm913, %v1240, 0.0
      %1242 = vadd.xlane.f32.xlu0 %v1241
      %v1243 = vpop.xlane.xlu0 %1242
      %v1244 = vrcp.pop %v1243
      %v1245 = vmul.f32 %v1240, %v1244
      %v1246 = vpack.c.bf16 %v1245, %v1245
      %1248 = vrot.lane.b32.xlu0 %v1189, 120
      %v1249 = vpop.permute.xlu0 %1248
      %v1251 = vsel %vm913, %v1246, 0
      %v1254 = vsel %vm949, %v1249, 0
      %1256 = vmatpush.bf16.msra.mxu0 0
      %1257 = vmatpush.bf16.msra.mxu0 0
      %1258 = vmatpush.bf16.msra.mxu0 0
      %1259 = vmatpush.bf16.msra.mxu0 0
      %1260 = vmatpush.bf16.msra.mxu0 0
      %1261 = vmatpush.bf16.msra.mxu0 0
      %1262 = vmatpush.bf16.msra.mxu0 0
      %1263 = vmatpush.bf16.msra.mxu0 %v1254
      %1264 = vmatmul.bf16.gmra.mxu0 %v1251
      %v1265 = vpop.f32.mrf.mxu0
      %v1266 = vadd.f32 0.0, %v1265
      %v1267 = vpop.f32.mrf.mxu0
      %1268 = vdwg.mxu0
      %1270 = vrot.lane.b32.xlu0 %v1266, 8
      %v1271 = vpop.permute.xlu0 %1270
      %1273 = vst.msk [vmem:[#allocation3 + $0x8] sm:$0xff] %vm1030, %v1271
      %1274 = vrot.lane.b32.xlu0 %v1156, 112
      %v1275 = vpop.permute.xlu0 %1274
      %1276 = vrot.lane.b32.xlu0 %v1157, 112
      %v1277 = vpop.permute.xlu0 %1276
      %v1279 = vsel %vm913, %v1275, 0
      %v1282 = vsel %vm913, %v1277, 0
      %1284 = vmatpush.bf16.xpose.msra.mxu0 0
      %1285 = vmatpush.bf16.xpose.msra.mxu0 0
      %1286 = vmatpush.bf16.xpose.msra.mxu0 0
      %1287 = vmatpush.bf16.xpose.msra.mxu0 0
      %1288 = vmatpush.bf16.xpose.msra.mxu0 0
      %1289 = vmatpush.bf16.xpose.msra.mxu0 0
      %1290 = vmatpush.bf16.xpose.msra.mxu0 0
      %1291 = vmatpush.bf16.xpose.msra.mxu0 %v1282
      %1292 = vmatmul.bf16.gmra.mxu0 %v1279
      %v1293 = vpop.f32.mrf.mxu0
      %v1294 = vadd.f32 0.0, %v1293
      %v1295 = vpop.f32.mrf.mxu0
      %1296 = vdwg.mxu0
      %v1297 = vsel %vm913, %v1294, -inf
      %1298 = vmax.xlane.f32.xlu0 %v1297
      %v1299 = vpop.xlane.xlu0 %1298
      %v1300 = vsub.f32 %v1294, %v1299
      %v1301 = vmul.f32 %v1300, 1.442695
      %v1302 = vpow.pop %v1301
      %v1303 = vsel %vm913, %v1302, 0.0
      %1304 = vadd.xlane.f32.xlu0 %v1303
      %v1305 = vpop.xlane.xlu0 %1304
      %v1306 = vrcp.pop %v1305
      %v1307 = vmul.f32 %v1302, %v1306
      %v1308 = vpack.c.bf16 %v1307, %v1307
      %1309 = vrot.lane.b32.xlu0 %v1189, 112
      %v1310 = vpop.permute.xlu0 %1309
      %v1312 = vsel %vm913, %v1308, 0
      %v1315 = vsel %vm949, %v1310, 0
      %1317 = vmatpush.bf16.msra.mxu0 0
      %1318 = vmatpush.bf16.msra.mxu0 0
      %1319 = vmatpush.bf16.msra.mxu0 0
      %1320 = vmatpush.bf16.msra.mxu0 0
      %1321 = vmatpush.bf16.msra.mxu0 0
      %1322 = vmatpush.bf16.msra.mxu0 0
      %1323 = vmatpush.bf16.msra.mxu0 0
      %1324 = vmatpush.bf16.msra.mxu0 %v1315
      %1325 = vmatmul.bf16.gmra.mxu0 %v1312
      %v1326 = vpop.f32.mrf.mxu0
      %v1327 = vadd.f32 0.0, %v1326
      %v1328 = vpop.f32.mrf.mxu0
      %1329 = vdwg.mxu0
      %1331 = vrot.lane.b32.xlu0 %v1327, 16
      %v1332 = vpop.permute.xlu0 %1331
      %1334 = vst.msk [vmem:[#allocation3 + $0x8] sm:$0xff] %vm1092, %v1332
      %1335 = vrot.lane.b32.xlu0 %v1156, 104
      %v1336 = vpop.permute.xlu0 %1335
      %1337 = vrot.lane.b32.xlu0 %v1157, 104
      %v1338 = vpop.permute.xlu0 %1337
      %v1340 = vsel %vm913, %v1336, 0
      %v1343 = vsel %vm913, %v1338, 0
      %1345 = vmatpush.bf16.xpose.msra.mxu0 0
      %1346 = vmatpush.bf16.xpose.msra.mxu0 0
      %1347 = vmatpush.bf16.xpose.msra.mxu0 0
      %1348 = vmatpush.bf16.xpose.msra.mxu0 0
      %1349 = vmatpush.bf16.xpose.msra.mxu0 0
      %1350 = vmatpush.bf16.xpose.msra.mxu0 0
      %1351 = vmatpush.bf16.xpose.msra.mxu0 0
      %1352 = vmatpush.bf16.xpose.msra.mxu0 %v1343
      %1353 = vmatmul.bf16.gmra.mxu0 %v1340
      %v1354 = vpop.f32.mrf.mxu0
      %v1355 = vadd.f32 0.0, %v1354
      %v1356 = vpop.f32.mrf.mxu0
      %1357 = vdwg.mxu0
      %v1358 = vsel %vm913, %v1355, -inf
      %1359 = vmax.xlane.f32.xlu0 %v1358
      %v1360 = vpop.xlane.xlu0 %1359
      %v1361 = vsub.f32 %v1355, %v1360
      %v1362 = vmul.f32 %v1361, 1.442695
      %v1363 = vpow.pop %v1362
      %v1364 = vsel %vm913, %v1363, 0.0
      %1365 = vadd.xlane.f32.xlu0 %v1364
      %v1366 = vpop.xlane.xlu0 %1365
      %v1367 = vrcp.pop %v1366
      %v1368 = vmul.f32 %v1363, %v1367
      %v1369 = vpack.c.bf16 %v1368, %v1368
      %1370 = vrot.lane.b32.xlu0 %v1189, 104
      %v1371 = vpop.permute.xlu0 %1370
      %v1373 = vsel %vm913, %v1369, 0
      %v1376 = vsel %vm949, %v1371, 0
      %1378 = vmatpush.bf16.msra.mxu0 0
      %1379 = vmatpush.bf16.msra.mxu0 0
      %1380 = vmatpush.bf16.msra.mxu0 0
      %1381 = vmatpush.bf16.msra.mxu0 0
      %1382 = vmatpush.bf16.msra.mxu0 0
      %1383 = vmatpush.bf16.msra.mxu0 0
      %1384 = vmatpush.bf16.msra.mxu0 0
      %1385 = vmatpush.bf16.msra.mxu0 %v1376
      %1386 = vmatmul.bf16.gmra.mxu0 %v1373
      %v1387 = vpop.f32.mrf.mxu0
      %v1388 = vadd.f32 0.0, %v1387
      %v1389 = vpop.f32.mrf.mxu0
      %1390 = vdwg.mxu0
      %1392 = vrot.lane.b32.xlu0 %v1388, 24
      %v1393 = vpop.permute.xlu0 %1392
      %1395 = vst.msk [vmem:[#allocation3 + $0x8] sm:$0xff] %vm1154, %v1393
      %v1396 = vld [vmem:[#allocation3] sm:$0xff]
      %v1397 = vld [vmem:[#allocation3 + $0x8] sm:$0xff]
      %v1398 = vpack.c.bf16 %v1397, %v1396
      %v1399 = vperm.slane %v785, 3
      %v1404 = vunpack.c.l.b16 %v805
      %v1405 = vunpack.c.l.b16 %v806
      %v1406 = vunpack.c.l.b16 %v807
      %v1407 = vunpack.c.l.b16 %v808
      %v1408 = vpack.c.b16 %v1405, %v1404
      %v1409 = vpack.c.b16 %v1407, %v1406
      %v1411 = vsel %vm821, %v1398, 0
      %v1414 = vsel %vm821, %v1408, 0
      %v1417 = vsel %vm821, %v1409, 0
      %1419 = vmatpush.bf16.xpose.msra.mxu0 0
      %1420 = vmatpush.bf16.xpose.msra.mxu0 0
      %1421 = vmatpush.bf16.xpose.msra.mxu0 0
      %1422 = vmatpush.bf16.xpose.msra.mxu0 0
      %1423 = vmatpush.bf16.xpose.msra.mxu0 0
      %1424 = vmatpush.bf16.xpose.msra.mxu0 0
      %1425 = vmatpush.bf16.xpose.msra.mxu0 %v1417
      %1426 = vmatpush.bf16.xpose.msra.mxu0 %v1414
      %1427 = vmatmul.bf16.gmra.mxu0 %v1411
      %v1428 = vpop.f32.mrf.mxu0
      %v1429 = vadd.f32 %v1399, %v1428
      %v1430 = vpop.f32.mrf.mxu0
      %v1431 = vadd.f32 %v1399, %v1430
      %1432 = vdwg.mxu0
      %v1433 = vadd.f32 %v787, %v1429
      %v1434 = vadd.f32 %v788, %v1431
      %v1435 = vsel %vm821, %v1433, 0.0
      %1436 = vadd.xlane.f32.xlu0 %v1435
      %v1437 = vpop.xlane.xlu0 %1436
      %v1438 = vsel %vm821, %v1434, 0.0
      %1439 = vadd.xlane.f32.xlu0 %v1438
      %v1440 = vpop.xlane.xlu0 %1439
      %v1441 = vrcp.pop 32.0
      %v1442 = vmul.f32 32.0, %v1441
      %v1443 = vsub.f32 1.0, %v1442
      %v1444 = vmul.f32 %v1441, %v1443
      %v1445 = vadd.f32 %v1441, %v1444
      %vm1446 = vweird.f32 %v1441
      %v1447 = vsel %vm1446, %v1441, %v1445
      %v1448 = vmul.f32 %v1437, %v1447
      %v1449 = vmul.f32 %v1440, %v1447
      %v1450 = vsub.f32 %v1433, %v1448
      %v1451 = vsub.f32 %v1434, %v1449
      %v1452 = vmul.f32 %v1450, %v1450
      %v1453 = vmul.f32 %v1451, %v1451
      %v1454 = vsel %vm821, %v1452, 0.0
      %1455 = vadd.xlane.f32.xlu0 %v1454
      %v1456 = vpop.xlane.xlu0 %1455
      %v1457 = vsel %vm821, %v1453, 0.0
      %1458 = vadd.xlane.f32.xlu0 %v1457
      %v1459 = vpop.xlane.xlu0 %1458
      %v1460 = vmul.f32 %v1456, %v1447
      %v1461 = vmul.f32 %v1459, %v1447
      %v1462 = vadd.f32 %v1460, 1e-05
      %v1463 = vadd.f32 %v1461, 1e-05
      %v1464 = vrsqrt.pop %v1462
      %v1465 = vmul.f32 %v1464, %v1462
      %v1466 = vmul.f32 %v1465, %v1464
      %v1467 = vmul.f32 0.5, %v1466
      %v1468 = vsub.f32 1.5, %v1467
      %v1469 = vmul.f32 %v1464, %v1468
      %vm1470 = vweird.f32 %v1462
      %vm1471 = vweird.f32 %v1464
      %vm1472 = vmor %vm1470, %vm1471
      %v1473 = vsel %vm1472, %v1464, %v1469
      %v1474 = vrsqrt.pop %v1463
      %v1475 = vmul.f32 %v1474, %v1463
      %v1476 = vmul.f32 %v1475, %v1474
      %v1477 = vmul.f32 0.5, %v1476
      %v1478 = vsub.f32 1.5, %v1477
      %v1479 = vmul.f32 %v1474, %v1478
      %vm1480 = vweird.f32 %v1463
      %vm1481 = vweird.f32 %v1474
      %vm1482 = vmor %vm1480, %vm1481
      %v1483 = vsel %vm1482, %v1474, %v1479
      %v1484 = vmul.f32 %v1450, %v1473
      %v1485 = vmul.f32 %v1451, %v1483
      %v1486 = vperm.slane %v785, 4
      %v1487 = vmul.f32 %v1484, %v1486
      %v1488 = vmul.f32 %v1485, %v1486
      %v1489 = vperm.slane %v785, 5
      %v1490 = vadd.f32 %v1487, %v1489
      %v1491 = vadd.f32 %v1488, %v1489
      %v1492 = vld [vmem:[%s2] sm:$0xff]
      %v1493 = vld [vmem:[%s2 + $0x8] sm:$0xff]
      %v1494 = vld [vmem:[%s2 + $0x10] sm:$0xff]
      %v1495 = vld [vmem:[%s2 + $0x18] sm:$0xff]
      %v1496 = vld [vmem:[%s3] sm:$0xff]
      %v1497 = vld [vmem:[%s3 + $0x8] sm:$0xff]
      %v1498 = vld [vmem:[%s3 + $0x10] sm:$0xff]
      %v1499 = vld [vmem:[%s3 + $0x18] sm:$0xff]
      %v1500 = vadd.f32 %v1492, %v1496
      %v1501 = vadd.f32 %v1493, %v1497
      %v1502 = vadd.f32 %v1494, %v1498
      %v1503 = vadd.f32 %v1495, %v1499
      %v1504 = vadd.f32 %v1490, %v789
      %v1505 = vadd.f32 %v1491, %v790
      %v1506 = vld [vmem:[%s741] sm:$0xf]
      %v1507 = vld [vmem:[%s741 + $0x4] sm:$0xf]
      %v1508 = vld [vmem:[%s741 + $0x8] sm:$0xf]
      %v1509 = vld [vmem:[%s741 + $0xc] sm:$0xf]
      %v1510 = vld [vmem:[%s746] sm:$0xf]
      %v1511 = vld [vmem:[%s746 + $0x4] sm:$0xf]
      %v1512 = vld [vmem:[%s746 + $0x8] sm:$0xf]
      %v1513 = vld [vmem:[%s746 + $0xc] sm:$0xf]
      %v1514 = vld [vmem:[%s751] sm:$0xf]
      %v1515 = vld [vmem:[%s751 + $0x4] sm:$0xf]
      %v1516 = vld [vmem:[%s751 + $0x8] sm:$0xf]
      %v1517 = vld [vmem:[%s751 + $0xc] sm:$0xf]
      %v1518 = vld [vmem:[%s756] sm:$0xf]
      %v1519 = vld [vmem:[%s756 + $0x4] sm:$0xf]
      %v1520 = vld [vmem:[%s756 + $0x8] sm:$0xf]
      %v1521 = vld [vmem:[%s756 + $0xc] sm:$0xf]
      %v1522 = vpack.c.bf16 %v1505, %v1504
      %v1523 = vperm.slane %v785, 6
      %v1528 = vunpack.c.l.b16 %v1506
      %v1529 = vunpack.c.l.b16 %v1507
      %v1530 = vunpack.c.l.b16 %v1508
      %v1531 = vunpack.c.l.b16 %v1509
      %v1532 = vpack.c.b16 %v1529, %v1528
      %v1533 = vpack.c.b16 %v1531, %v1530
      %v1535 = vsel %vm821, %v1522, 0
      %v1538 = vsel %vm821, %v1532, 0
      %v1541 = vsel %vm821, %v1533, 0
      %1543 = vmatpush.bf16.xpose.msra.mxu0 0
      %1544 = vmatpush.bf16.xpose.msra.mxu0 0
      %1545 = vmatpush.bf16.xpose.msra.mxu0 0
      %1546 = vmatpush.bf16.xpose.msra.mxu0 0
      %1547 = vmatpush.bf16.xpose.msra.mxu0 0
      %1548 = vmatpush.bf16.xpose.msra.mxu0 0
      %1549 = vmatpush.bf16.xpose.msra.mxu0 %v1541
      %1550 = vmatpush.bf16.xpose.msra.mxu0 %v1538
      %1551 = vmatmul.bf16.gmra.mxu0 %v1535
      %v1552 = vpop.f32.mrf.mxu0
      %v1553 = vadd.f32 %v1523, %v1552
      %v1554 = vpop.f32.mrf.mxu0
      %v1555 = vadd.f32 %v1523, %v1554
      %1556 = vdwg.mxu0
      %v1557 = vpack.c.bf16 %v1501, %v1500
      %v1558 = vpack.c.bf16 %v1503, %v1502
      %v1559 = vperm.slane %v785, 7
      %v1564 = vunpack.c.l.b16 %v1510
      %v1565 = vunpack.c.l.b16 %v1511
      %v1566 = vunpack.c.l.b16 %v1512
      %v1567 = vunpack.c.l.b16 %v1513
      %v1568 = vpack.c.b16 %v1565, %v1564
      %v1569 = vpack.c.b16 %v1567, %v1566
      %v1571 = vsel %vm821, %v1557, 0
      %v1574 = vsel %vm821, %v1558, 0
      %v1577 = vsel %vm821, %v1568, 0
      %v1580 = vsel %vm821, %v1569, 0
      %1582 = vmatpush.bf16.xpose.msra.mxu0 0
      %1583 = vmatpush.bf16.xpose.msra.mxu0 0
      %1584 = vmatpush.bf16.xpose.msra.mxu0 0
      %1585 = vmatpush.bf16.xpose.msra.mxu0 0
      %1586 = vmatpush.bf16.xpose.msra.mxu0 0
      %1587 = vmatpush.bf16.xpose.msra.mxu0 0
      %1588 = vmatpush.bf16.xpose.msra.mxu0 %v1580
      %1589 = vmatpush.bf16.xpose.msra.mxu0 %v1577
      %1590 = vmatmul.bf16.gmra.mxu0 %v1571
      %v1591 = vpop.f32.mrf.mxu0
      %v1592 = vadd.f32 %v1559, %v1591
      %v1593 = vpop.f32.mrf.mxu0
      %v1594 = vadd.f32 %v1559, %v1593
      %1595 = vmatmul.bf16.gmra.mxu0 %v1574
      %v1596 = vpop.f32.mrf.mxu0
      %v1597 = vadd.f32 %v1559, %v1596
      %v1598 = vpop.f32.mrf.mxu0
      %v1599 = vadd.f32 %v1559, %v1598
      %1600 = vdwg.mxu0
      %v1601 = vpack.c.bf16 %v1493, %v1492
      %v1602 = vpack.c.bf16 %v1495, %v1494
      %v1603 = vperm.slane %v786, 0
      %v1608 = vunpack.c.l.b16 %v1514
      %v1609 = vunpack.c.l.b16 %v1515
      %v1610 = vunpack.c.l.b16 %v1516
      %v1611 = vunpack.c.l.b16 %v1517
      %v1612 = vpack.c.b16 %v1609, %v1608
      %v1613 = vpack.c.b16 %v1611, %v1610
      %v1615 = vsel %vm821, %v1601, 0
      %v1618 = vsel %vm821, %v1602, 0
      %v1621 = vsel %vm821, %v1612, 0
      %v1624 = vsel %vm821, %v1613, 0
      %1626 = vmatpush.bf16.xpose.msra.mxu0 0
      %1627 = vmatpush.bf16.xpose.msra.mxu0 0
      %1628 = vmatpush.bf16.xpose.msra.mxu0 0
      %1629 = vmatpush.bf16.xpose.msra.mxu0 0
      %1630 = vmatpush.bf16.xpose.msra.mxu0 0
      %1631 = vmatpush.bf16.xpose.msra.mxu0 0
      %1632 = vmatpush.bf16.xpose.msra.mxu0 %v1624
      %1633 = vmatpush.bf16.xpose.msra.mxu0 %v1621
      %1634 = vmatmul.bf16.gmra.mxu0 %v1615
      %v1635 = vpop.f32.mrf.mxu0
      %v1636 = vadd.f32 %v1603, %v1635
      %v1637 = vpop.f32.mrf.mxu0
      %v1638 = vadd.f32 %v1603, %v1637
      %1639 = vmatmul.bf16.gmra.mxu0 %v1618
      %v1640 = vpop.f32.mrf.mxu0
      %v1641 = vadd.f32 %v1603, %v1640
      %v1642 = vpop.f32.mrf.mxu0
      %v1643 = vadd.f32 %v1603, %v1642
      %1644 = vdwg.mxu0
      %v1645 = vpack.c.bf16 %v1553, %v1553
      %v1646 = vpack.c.bf16 %v1594, %v1592
      %v1648 = vsel %vm913, %v1645, 0
      %v1651 = vsel %vm913, %v1646, 0
      %1653 = vmatpush.bf16.xpose.msra.mxu0 0
      %1654 = vmatpush.bf16.xpose.msra.mxu0 0
      %1655 = vmatpush.bf16.xpose.msra.mxu0 0
      %1656 = vmatpush.bf16.xpose.msra.mxu0 0
      %1657 = vmatpush.bf16.xpose.msra.mxu0 0
      %1658 = vmatpush.bf16.xpose.msra.mxu0 0
      %1659 = vmatpush.bf16.xpose.msra.mxu0 0
      %1660 = vmatpush.bf16.xpose.msra.mxu0 %v1651
      %1661 = vmatmul.bf16.gmra.mxu0 %v1648
      %v1662 = vpop.f32.mrf.mxu0
      %v1663 = vadd.f32 0.0, %v1662
      %v1664 = vpop.f32.mrf.mxu0
      %1665 = vdwg.mxu0
      %vm1666 = vcmask 130048
      %v1667 = vsel %vm1666, %v1663, -inf
      %1668 = vmax.xlane.f32.xlu0 %v1667
      %v1669 = vpop.xlane.xlu0 %1668
      %v1670 = vsub.f32 %v1663, %v1669
      %v1671 = vmul.f32 %v1670, 1.442695
      %v1672 = vpow.pop %v1671
      %v1673 = vsel %vm1666, %v1672, 0.0
      %1674 = vadd.xlane.f32.xlu0 %v1673
      %v1675 = vpop.xlane.xlu0 %1674
      %v1676 = vrcp.pop %v1675
      %v1677 = vmul.f32 %v1672, %v1676
      %v1678 = vpack.c.bf16 %v1677, %v1677
      %v1679 = vpack.c.bf16 %v1638, %v1636
      %v1681 = vsel %vm1666, %v1678, 0
      %1683 = vmatpush.bf16.msra.mxu0 0
      %1684 = vmatpush.bf16.msra.mxu0 0
      %1685 = vmatpush.bf16.msra.mxu0 0
      %1686 = vmatpush.bf16.msra.mxu0 0
      %1687 = vmatpush.bf16.msra.mxu0 0
      %1688 = vmatpush.bf16.msra.mxu0 0
      %1689 = vmatpush.bf16.msra.mxu0 0
      %1690 = vmatpush.bf16.msra.mxu0 %v1679
      %1691 = vmatmul.bf16.gmra.mxu0 %v1681
      %v1692 = vpop.f32.mrf.mxu0
      %v1693 = vadd.f32 0.0, %v1692
      %v1694 = vpop.f32.mrf.mxu0
      %1695 = vdwg.mxu0
      %1696 = vst.msk [vmem:[#allocation3] sm:$0xff] %vm913, %v1693
      %1698 = vrot.lane.b32.xlu0 %v1645, 120
      %v1699 = vpop.permute.xlu0 %1698
      %1701 = vrot.lane.b32.xlu0 %v1646, 120
      %v1702 = vpop.permute.xlu0 %1701
      %v1704 = vsel %vm913, %v1699, 0
      %v1707 = vsel %vm913, %v1702, 0
      %1709 = vmatpush.bf16.xpose.msra.mxu0 0
      %1710 = vmatpush.bf16.xpose.msra.mxu0 0
      %1711 = vmatpush.bf16.xpose.msra.mxu0 0
      %1712 = vmatpush.bf16.xpose.msra.mxu0 0
      %1713 = vmatpush.bf16.xpose.msra.mxu0 0
      %1714 = vmatpush.bf16.xpose.msra.mxu0 0
      %1715 = vmatpush.bf16.xpose.msra.mxu0 0
      %1716 = vmatpush.bf16.xpose.msra.mxu0 %v1707
      %1717 = vmatmul.bf16.gmra.mxu0 %v1704
      %v1718 = vpop.f32.mrf.mxu0
      %v1719 = vadd.f32 0.0, %v1718
      %v1720 = vpop.f32.mrf.mxu0
      %1721 = vdwg.mxu0
      %v1722 = vsel %vm1666, %v1719, -inf
      %1723 = vmax.xlane.f32.xlu0 %v1722
      %v1724 = vpop.xlane.xlu0 %1723
      %v1725 = vsub.f32 %v1719, %v1724
      %v1726 = vmul.f32 %v1725, 1.442695
      %v1727 = vpow.pop %v1726
      %v1728 = vsel %vm1666, %v1727, 0.0
      %1729 = vadd.xlane.f32.xlu0 %v1728
      %v1730 = vpop.xlane.xlu0 %1729
      %v1731 = vrcp.pop %v1730
      %v1732 = vmul.f32 %v1727, %v1731
      %v1733 = vpack.c.bf16 %v1732, %v1732
      %1735 = vrot.lane.b32.xlu0 %v1679, 120
      %v1736 = vpop.permute.xlu0 %1735
      %v1739 = vsel %vm1666, %v1733, 0
      %1741 = vmatpush.bf16.msra.mxu0 0
      %1742 = vmatpush.bf16.msra.mxu0 0
      %1743 = vmatpush.bf16.msra.mxu0 0
      %1744 = vmatpush.bf16.msra.mxu0 0
      %1745 = vmatpush.bf16.msra.mxu0 0
      %1746 = vmatpush.bf16.msra.mxu0 0
      %1747 = vmatpush.bf16.msra.mxu0 0
      %1748 = vmatpush.bf16.msra.mxu0 %v1736
      %1749 = vmatmul.bf16.gmra.mxu0 %v1739
      %v1750 = vpop.f32.mrf.mxu0
      %v1751 = vadd.f32 0.0, %v1750
      %v1752 = vpop.f32.mrf.mxu0
      %1753 = vdwg.mxu0
      %1755 = vrot.lane.b32.xlu0 %v1751, 8
      %v1756 = vpop.permute.xlu0 %1755
      %1758 = vst.msk [vmem:[#allocation3] sm:$0xff] %vm1030, %v1756
      %1759 = vrot.lane.b32.xlu0 %v1645, 112
      %v1760 = vpop.permute.xlu0 %1759
      %1761 = vrot.lane.b32.xlu0 %v1646, 112
      %v1762 = vpop.permute.xlu0 %1761
      %v1764 = vsel %vm913, %v1760, 0
      %v1767 = vsel %vm913, %v1762, 0
      %1769 = vmatpush.bf16.xpose.msra.mxu0 0
      %1770 = vmatpush.bf16.xpose.msra.mxu0 0
      %1771 = vmatpush.bf16.xpose.msra.mxu0 0
      %1772 = vmatpush.bf16.xpose.msra.mxu0 0
      %1773 = vmatpush.bf16.xpose.msra.mxu0 0
      %1774 = vmatpush.bf16.xpose.msra.mxu0 0
      %1775 = vmatpush.bf16.xpose.msra.mxu0 0
      %1776 = vmatpush.bf16.xpose.msra.mxu0 %v1767
      %1777 = vmatmul.bf16.gmra.mxu0 %v1764
      %v1778 = vpop.f32.mrf.mxu0
      %v1779 = vadd.f32 0.0, %v1778
      %v1780 = vpop.f32.mrf.mxu0
      %1781 = vdwg.mxu0
      %v1782 = vsel %vm1666, %v1779, -inf
      %1783 = vmax.xlane.f32.xlu0 %v1782
      %v1784 = vpop.xlane.xlu0 %1783
      %v1785 = vsub.f32 %v1779, %v1784
      %v1786 = vmul.f32 %v1785, 1.442695
      %v1787 = vpow.pop %v1786
      %v1788 = vsel %vm1666, %v1787, 0.0
      %1789 = vadd.xlane.f32.xlu0 %v1788
      %v1790 = vpop.xlane.xlu0 %1789
      %v1791 = vrcp.pop %v1790
      %v1792 = vmul.f32 %v1787, %v1791
      %v1793 = vpack.c.bf16 %v1792, %v1792
      %1794 = vrot.lane.b32.xlu0 %v1679, 112
      %v1795 = vpop.permute.xlu0 %1794
      %v1798 = vsel %vm1666, %v1793, 0
      %1800 = vmatpush.bf16.msra.mxu0 0
      %1801 = vmatpush.bf16.msra.mxu0 0
      %1802 = vmatpush.bf16.msra.mxu0 0
      %1803 = vmatpush.bf16.msra.mxu0 0
      %1804 = vmatpush.bf16.msra.mxu0 0
      %1805 = vmatpush.bf16.msra.mxu0 0
      %1806 = vmatpush.bf16.msra.mxu0 0
      %1807 = vmatpush.bf16.msra.mxu0 %v1795
      %1808 = vmatmul.bf16.gmra.mxu0 %v1798
      %v1809 = vpop.f32.mrf.mxu0
      %v1810 = vadd.f32 0.0, %v1809
      %v1811 = vpop.f32.mrf.mxu0
      %1812 = vdwg.mxu0
      %1814 = vrot.lane.b32.xlu0 %v1810, 16
      %v1815 = vpop.permute.xlu0 %1814
      %1817 = vst.msk [vmem:[#allocation3] sm:$0xff] %vm1092, %v1815
      %1818 = vrot.lane.b32.xlu0 %v1645, 104
      %v1819 = vpop.permute.xlu0 %1818
      %1820 = vrot.lane.b32.xlu0 %v1646, 104
      %v1821 = vpop.permute.xlu0 %1820
      %v1823 = vsel %vm913, %v1819, 0
      %v1826 = vsel %vm913, %v1821, 0
      %1828 = vmatpush.bf16.xpose.msra.mxu0 0
      %1829 = vmatpush.bf16.xpose.msra.mxu0 0
      %1830 = vmatpush.bf16.xpose.msra.mxu0 0
      %1831 = vmatpush.bf16.xpose.msra.mxu0 0
      %1832 = vmatpush.bf16.xpose.msra.mxu0 0
      %1833 = vmatpush.bf16.xpose.msra.mxu0 0
      %1834 = vmatpush.bf16.xpose.msra.mxu0 0
      %1835 = vmatpush.bf16.xpose.msra.mxu0 %v1826
      %1836 = vmatmul.bf16.gmra.mxu0 %v1823
      %v1837 = vpop.f32.mrf.mxu0
      %v1838 = vadd.f32 0.0, %v1837
      %v1839 = vpop.f32.mrf.mxu0
      %1840 = vdwg.mxu0
      %v1841 = vsel %vm1666, %v1838, -inf
      %1842 = vmax.xlane.f32.xlu0 %v1841
      %v1843 = vpop.xlane.xlu0 %1842
      %v1844 = vsub.f32 %v1838, %v1843
      %v1845 = vmul.f32 %v1844, 1.442695
      %v1846 = vpow.pop %v1845
      %v1847 = vsel %vm1666, %v1846, 0.0
      %1848 = vadd.xlane.f32.xlu0 %v1847
      %v1849 = vpop.xlane.xlu0 %1848
      %v1850 = vrcp.pop %v1849
      %v1851 = vmul.f32 %v1846, %v1850
      %v1852 = vpack.c.bf16 %v1851, %v1851
      %1853 = vrot.lane.b32.xlu0 %v1679, 104
      %v1854 = vpop.permute.xlu0 %1853
      %v1857 = vsel %vm1666, %v1852, 0
      %1859 = vmatpush.bf16.msra.mxu0 0
      %1860 = vmatpush.bf16.msra.mxu0 0
      %1861 = vmatpush.bf16.msra.mxu0 0
      %1862 = vmatpush.bf16.msra.mxu0 0
      %1863 = vmatpush.bf16.msra.mxu0 0
      %1864 = vmatpush.bf16.msra.mxu0 0
      %1865 = vmatpush.bf16.msra.mxu0 0
      %1866 = vmatpush.bf16.msra.mxu0 %v1854
      %1867 = vmatmul.bf16.gmra.mxu0 %v1857
      %v1868 = vpop.f32.mrf.mxu0
      %v1869 = vadd.f32 0.0, %v1868
      %v1870 = vpop.f32.mrf.mxu0
      %1871 = vdwg.mxu0
      %1873 = vrot.lane.b32.xlu0 %v1869, 24
      %v1874 = vpop.permute.xlu0 %1873
      %1876 = vst.msk [vmem:[#allocation3] sm:$0xff] %vm1154, %v1874
      %v1877 = vpack.c.bf16 %v1555, %v1555
      %v1878 = vpack.c.bf16 %v1599, %v1597
      %v1880 = vsel %vm913, %v1877, 0
      %v1883 = vsel %vm913, %v1878, 0
      %1885 = vmatpush.bf16.xpose.msra.mxu0 0
      %1886 = vmatpush.bf16.xpose.msra.mxu0 0
      %1887 = vmatpush.bf16.xpose.msra.mxu0 0
      %1888 = vmatpush.bf16.xpose.msra.mxu0 0
      %1889 = vmatpush.bf16.xpose.msra.mxu0 0
      %1890 = vmatpush.bf16.xpose.msra.mxu0 0
      %1891 = vmatpush.bf16.xpose.msra.mxu0 0
      %1892 = vmatpush.bf16.xpose.msra.mxu0 %v1883
      %1893 = vmatmul.bf16.gmra.mxu0 %v1880
      %v1894 = vpop.f32.mrf.mxu0
      %v1895 = vadd.f32 0.0, %v1894
      %v1896 = vpop.f32.mrf.mxu0
      %1897 = vdwg.mxu0
      %v1898 = vsel %vm1666, %v1895, -inf
      %1899 = vmax.xlane.f32.xlu0 %v1898
      %v1900 = vpop.xlane.xlu0 %1899
      %v1901 = vsub.f32 %v1895, %v1900
      %v1902 = vmul.f32 %v1901, 1.442695
      %v1903 = vpow.pop %v1902
      %v1904 = vsel %vm1666, %v1903, 0.0
      %1905 = vadd.xlane.f32.xlu0 %v1904
      %v1906 = vpop.xlane.xlu0 %1905
      %v1907 = vrcp.pop %v1906
      %v1908 = vmul.f32 %v1903, %v1907
      %v1909 = vpack.c.bf16 %v1908, %v1908
      %v1910 = vpack.c.bf16 %v1643, %v1641
      %v1912 = vsel %vm1666, %v1909, 0
      %1914 = vmatpush.bf16.msra.mxu0 0
      %1915 = vmatpush.bf16.msra.mxu0 0
      %1916 = vmatpush.bf16.msra.mxu0 0
      %1917 = vmatpush.bf16.msra.mxu0 0
      %1918 = vmatpush.bf16.msra.mxu0 0
      %1919 = vmatpush.bf16.msra.mxu0 0
      %1920 = vmatpush.bf16.msra.mxu0 0
      %1921 = vmatpush.bf16.msra.mxu0 %v1910
      %1922 = vmatmul.bf16.gmra.mxu0 %v1912
      %v1923 = vpop.f32.mrf.mxu0
      %v1924 = vadd.f32 0.0, %v1923
      %v1925 = vpop.f32.mrf.mxu0
      %1926 = vdwg.mxu0
      %1927 = vst.msk [vmem:[#allocation3 + $0x8] sm:$0xff] %vm913, %v1924
      %1929 = vrot.lane.b32.xlu0 %v1877, 120
      %v1930 = vpop.permute.xlu0 %1929
      %1932 = vrot.lane.b32.xlu0 %v1878, 120
      %v1933 = vpop.permute.xlu0 %1932
      %v1935 = vsel %vm913, %v1930, 0
      %v1938 = vsel %vm913, %v1933, 0
      %1940 = vmatpush.bf16.xpose.msra.mxu0 0
      %1941 = vmatpush.bf16.xpose.msra.mxu0 0
      %1942 = vmatpush.bf16.xpose.msra.mxu0 0
      %1943 = vmatpush.bf16.xpose.msra.mxu0 0
      %1944 = vmatpush.bf16.xpose.msra.mxu0 0
      %1945 = vmatpush.bf16.xpose.msra.mxu0 0
      %1946 = vmatpush.bf16.xpose.msra.mxu0 0
      %1947 = vmatpush.bf16.xpose.msra.mxu0 %v1938
      %1948 = vmatmul.bf16.gmra.mxu0 %v1935
      %v1949 = vpop.f32.mrf.mxu0
      %v1950 = vadd.f32 0.0, %v1949
      %v1951 = vpop.f32.mrf.mxu0
      %1952 = vdwg.mxu0
      %v1953 = vsel %vm1666, %v1950, -inf
      %1954 = vmax.xlane.f32.xlu0 %v1953
      %v1955 = vpop.xlane.xlu0 %1954
      %v1956 = vsub.f32 %v1950, %v1955
      %v1957 = vmul.f32 %v1956, 1.442695
      %v1958 = vpow.pop %v1957
      %v1959 = vsel %vm1666, %v1958, 0.0
      %1960 = vadd.xlane.f32.xlu0 %v1959
      %v1961 = vpop.xlane.xlu0 %1960
      %v1962 = vrcp.pop %v1961
      %v1963 = vmul.f32 %v1958, %v1962
      %v1964 = vpack.c.bf16 %v1963, %v1963
      %1966 = vrot.lane.b32.xlu0 %v1910, 120
      %v1967 = vpop.permute.xlu0 %1966
      %v1970 = vsel %vm1666, %v1964, 0
      %1972 = vmatpush.bf16.msra.mxu0 0
      %1973 = vmatpush.bf16.msra.mxu0 0
      %1974 = vmatpush.bf16.msra.mxu0 0
      %1975 = vmatpush.bf16.msra.mxu0 0
      %1976 = vmatpush.bf16.msra.mxu0 0
      %1977 = vmatpush.bf16.msra.mxu0 0
      %1978 = vmatpush.bf16.msra.mxu0 0
      %1979 = vmatpush.bf16.msra.mxu0 %v1967
      %1980 = vmatmul.bf16.gmra.mxu0 %v1970
      %v1981 = vpop.f32.mrf.mxu0
      %v1982 = vadd.f32 0.0, %v1981
      %v1983 = vpop.f32.mrf.mxu0
      %1984 = vdwg.mxu0
      %1986 = vrot.lane.b32.xlu0 %v1982, 8
      %v1987 = vpop.permute.xlu0 %1986
      %1989 = vst.msk [vmem:[#allocation3 + $0x8] sm:$0xff] %vm1030, %v1987
      %1990 = vrot.lane.b32.xlu0 %v1877, 112
      %v1991 = vpop.permute.xlu0 %1990
      %1992 = vrot.lane.b32.xlu0 %v1878, 112
      %v1993 = vpop.permute.xlu0 %1992
      %v1995 = vsel %vm913, %v1991, 0
      %v1998 = vsel %vm913, %v1993, 0
      %2000 = vmatpush.bf16.xpose.msra.mxu0 0
      %2001 = vmatpush.bf16.xpose.msra.mxu0 0
      %2002 = vmatpush.bf16.xpose.msra.mxu0 0
      %2003 = vmatpush.bf16.xpose.msra.mxu0 0
      %2004 = vmatpush.bf16.xpose.msra.mxu0 0
      %2005 = vmatpush.bf16.xpose.msra.mxu0 0
      %2006 = vmatpush.bf16.xpose.msra.mxu0 0
      %2007 = vmatpush.bf16.xpose.msra.mxu0 %v1998
      %2008 = vmatmul.bf16.gmra.mxu0 %v1995
      %v2009 = vpop.f32.mrf.mxu0
      %v2010 = vadd.f32 0.0, %v2009
      %v2011 = vpop.f32.mrf.mxu0
      %2012 = vdwg.mxu0
      %v2013 = vsel %vm1666, %v2010, -inf
      %2014 = vmax.xlane.f32.xlu0 %v2013
      %v2015 = vpop.xlane.xlu0 %2014
      %v2016 = vsub.f32 %v2010, %v2015
      %v2017 = vmul.f32 %v2016, 1.442695
      %v2018 = vpow.pop %v2017
      %v2019 = vsel %vm1666, %v2018, 0.0
      %2020 = vadd.xlane.f32.xlu0 %v2019
      %v2021 = vpop.xlane.xlu0 %2020
      %v2022 = vrcp.pop %v2021
      %v2023 = vmul.f32 %v2018, %v2022
      %v2024 = vpack.c.bf16 %v2023, %v2023
      %2025 = vrot.lane.b32.xlu0 %v1910, 112
      %v2026 = vpop.permute.xlu0 %2025
      %v2029 = vsel %vm1666, %v2024, 0
      %2031 = vmatpush.bf16.msra.mxu0 0
      %2032 = vmatpush.bf16.msra.mxu0 0
      %2033 = vmatpush.bf16.msra.mxu0 0
      %2034 = vmatpush.bf16.msra.mxu0 0
      %2035 = vmatpush.bf16.msra.mxu0 0
      %2036 = vmatpush.bf16.msra.mxu0 0
      %2037 = vmatpush.bf16.msra.mxu0 0
      %2038 = vmatpush.bf16.msra.mxu0 %v2026
      %2039 = vmatmul.bf16.gmra.mxu0 %v2029
      %v2040 = vpop.f32.mrf.mxu0
      %v2041 = vadd.f32 0.0, %v2040
      %v2042 = vpop.f32.mrf.mxu0
      %2043 = vdwg.mxu0
      %2045 = vrot.lane.b32.xlu0 %v2041, 16
      %v2046 = vpop.permute.xlu0 %2045
      %2048 = vst.msk [vmem:[#allocation3 + $0x8] sm:$0xff] %vm1092, %v2046
      %2049 = vrot.lane.b32.xlu0 %v1877, 104
      %v2050 = vpop.permute.xlu0 %2049
      %2051 = vrot.lane.b32.xlu0 %v1878, 104
      %v2052 = vpop.permute.xlu0 %2051
      %v2054 = vsel %vm913, %v2050, 0
      %v2057 = vsel %vm913, %v2052, 0
      %2059 = vmatpush.bf16.xpose.msra.mxu0 0
      %2060 = vmatpush.bf16.xpose.msra.mxu0 0
      %2061 = vmatpush.bf16.xpose.msra.mxu0 0
      %2062 = vmatpush.bf16.xpose.msra.mxu0 0
      %2063 = vmatpush.bf16.xpose.msra.mxu0 0
      %2064 = vmatpush.bf16.xpose.msra.mxu0 0
      %2065 = vmatpush.bf16.xpose.msra.mxu0 0
      %2066 = vmatpush.bf16.xpose.msra.mxu0 %v2057
      %2067 = vmatmul.bf16.gmra.mxu0 %v2054
      %v2068 = vpop.f32.mrf.mxu0
      %v2069 = vadd.f32 0.0, %v2068
      %v2070 = vpop.f32.mrf.mxu0
      %2071 = vdwg.mxu0
      %v2072 = vsel %vm1666, %v2069, -inf
      %2073 = vmax.xlane.f32.xlu0 %v2072
      %v2074 = vpop.xlane.xlu0 %2073
      %v2075 = vsub.f32 %v2069, %v2074
      %v2076 = vmul.f32 %v2075, 1.442695
      %v2077 = vpow.pop %v2076
      %v2078 = vsel %vm1666, %v2077, 0.0
      %2079 = vadd.xlane.f32.xlu0 %v2078
      %v2080 = vpop.xlane.xlu0 %2079
      %v2081 = vrcp.pop %v2080
      %v2082 = vmul.f32 %v2077, %v2081
      %v2083 = vpack.c.bf16 %v2082, %v2082
      %2084 = vrot.lane.b32.xlu0 %v1910, 104
      %v2085 = vpop.permute.xlu0 %2084
      %v2088 = vsel %vm1666, %v2083, 0
      %2090 = vmatpush.bf16.msra.mxu0 0
      %2091 = vmatpush.bf16.msra.mxu0 0
      %2092 = vmatpush.bf16.msra.mxu0 0
      %2093 = vmatpush.bf16.msra.mxu0 0
      %2094 = vmatpush.bf16.msra.mxu0 0
      %2095 = vmatpush.bf16.msra.mxu0 0
      %2096 = vmatpush.bf16.msra.mxu0 0
      %2097 = vmatpush.bf16.msra.mxu0 %v2085
      %2098 = vmatmul.bf16.gmra.mxu0 %v2088
      %v2099 = vpop.f32.mrf.mxu0
      %v2100 = vadd.f32 0.0, %v2099
      %v2101 = vpop.f32.mrf.mxu0
      %2102 = vdwg.mxu0
      %2104 = vrot.lane.b32.xlu0 %v2100, 24
      %v2105 = vpop.permute.xlu0 %2104
      %2107 = vst.msk [vmem:[#allocation3 + $0x8] sm:$0xff] %vm1154, %v2105
      %v2108 = vld [vmem:[#allocation3] sm:$0xff]
      %v2109 = vld [vmem:[#allocation3 + $0x8] sm:$0xff]
      %v2110 = vpack.c.bf16 %v2109, %v2108
      %v2111 = vperm.slane %v786, 1
      %v2116 = vunpack.c.l.b16 %v1518
      %v2117 = vunpack.c.l.b16 %v1519
      %v2118 = vunpack.c.l.b16 %v1520
      %v2119 = vunpack.c.l.b16 %v1521
      %v2120 = vpack.c.b16 %v2117, %v2116
      %v2121 = vpack.c.b16 %v2119, %v2118
      %v2123 = vsel %vm821, %v2110, 0
      %v2126 = vsel %vm821, %v2120, 0
      %v2129 = vsel %vm821, %v2121, 0
      %2131 = vmatpush.bf16.xpose.msra.mxu0 0
      %2132 = vmatpush.bf16.xpose.msra.mxu0 0
      %2133 = vmatpush.bf16.xpose.msra.mxu0 0
      %2134 = vmatpush.bf16.xpose.msra.mxu0 0
      %2135 = vmatpush.bf16.xpose.msra.mxu0 0
      %2136 = vmatpush.bf16.xpose.msra.mxu0 0
      %2137 = vmatpush.bf16.xpose.msra.mxu0 %v2129
      %2138 = vmatpush.bf16.xpose.msra.mxu0 %v2126
      %2139 = vmatmul.bf16.gmra.mxu0 %v2123
      %v2140 = vpop.f32.mrf.mxu0
      %v2141 = vadd.f32 %v2111, %v2140
      %v2142 = vpop.f32.mrf.mxu0
      %v2143 = vadd.f32 %v2111, %v2142
      %2144 = vdwg.mxu0
      %v2145 = vadd.f32 %v1490, %v2141
      %v2146 = vadd.f32 %v1491, %v2143
      %v2147 = vsel %vm821, %v2145, 0.0
      %2148 = vadd.xlane.f32.xlu0 %v2147
      %v2149 = vpop.xlane.xlu0 %2148
      %v2150 = vsel %vm821, %v2146, 0.0
      %2151 = vadd.xlane.f32.xlu0 %v2150
      %v2152 = vpop.xlane.xlu0 %2151
      %v2153 = vmul.f32 %v2149, %v1447
      %v2154 = vmul.f32 %v2152, %v1447
      %v2155 = vsub.f32 %v2145, %v2153
      %v2156 = vsub.f32 %v2146, %v2154
      %v2157 = vmul.f32 %v2155, %v2155
      %v2158 = vmul.f32 %v2156, %v2156
      %v2159 = vsel %vm821, %v2157, 0.0
      %2160 = vadd.xlane.f32.xlu0 %v2159
      %v2161 = vpop.xlane.xlu0 %2160
      %v2162 = vsel %vm821, %v2158, 0.0
      %2163 = vadd.xlane.f32.xlu0 %v2162
      %v2164 = vpop.xlane.xlu0 %2163
      %v2165 = vmul.f32 %v2161, %v1447
      %v2166 = vmul.f32 %v2164, %v1447
      %v2167 = vadd.f32 %v2165, 1e-05
      %v2168 = vadd.f32 %v2166, 1e-05
      %v2169 = vrsqrt.pop %v2167
      %v2170 = vmul.f32 %v2169, %v2167
      %v2171 = vmul.f32 %v2170, %v2169
      %v2172 = vmul.f32 0.5, %v2171
      %v2173 = vsub.f32 1.5, %v2172
      %v2174 = vmul.f32 %v2169, %v2173
      %vm2175 = vweird.f32 %v2167
      %vm2176 = vweird.f32 %v2169
      %vm2177 = vmor %vm2175, %vm2176
      %v2178 = vsel %vm2177, %v2169, %v2174
      %v2179 = vrsqrt.pop %v2168
      %v2180 = vmul.f32 %v2179, %v2168
      %v2181 = vmul.f32 %v2180, %v2179
      %v2182 = vmul.f32 0.5, %v2181
      %v2183 = vsub.f32 1.5, %v2182
      %v2184 = vmul.f32 %v2179, %v2183
      %vm2185 = vweird.f32 %v2168
      %vm2186 = vweird.f32 %v2179
      %vm2187 = vmor %vm2185, %vm2186
      %v2188 = vsel %vm2187, %v2179, %v2184
      %v2189 = vmul.f32 %v2155, %v2178
      %v2190 = vmul.f32 %v2156, %v2188
      %v2191 = vperm.slane %v786, 2
      %v2192 = vmul.f32 %v2189, %v2191
      %v2193 = vmul.f32 %v2190, %v2191
      %v2194 = vperm.slane %v786, 3
      %v2195 = vadd.f32 %v2192, %v2194
      %v2196 = vadd.f32 %v2193, %v2194
      %v2197 = vpack.c.bf16 %v2196, %v2195
      %v2198 = vld [vmem:[%s761] sm:$0xf]
      %v2199 = vld [vmem:[%s761 + $0x4] sm:$0xf]
      %v2200 = vld [vmem:[%s761 + $0x8] sm:$0xf]
      %v2201 = vld [vmem:[%s761 + $0xc] sm:$0xf]
      %v2202 = vld [vmem:[%s761 + $0x10] sm:$0xf]
      %v2203 = vld [vmem:[%s761 + $0x14] sm:$0xf]
      %v2204 = vld [vmem:[%s761 + $0x18] sm:$0xf]
      %v2205 = vld [vmem:[%s761 + $0x1c] sm:$0xf]
      %v2206 = vld [vmem:[%s769] sm:$0x1]
      %v2208 = vperm.slane %v2206, 0
      %v2218 = vunpack.c.l.b16 %v2198
      %v2219 = vunpack.c.l.b16 %v2199
      %v2220 = vunpack.c.l.b16 %v2200
      %v2221 = vunpack.c.l.b16 %v2201
      %v2222 = vunpack.c.l.b16 %v2202
      %v2223 = vunpack.c.l.b16 %v2203
      %v2224 = vunpack.c.l.b16 %v2204
      %v2225 = vunpack.c.l.b16 %v2205
      %v2226 = vpack.c.b16 %v2219, %v2218
      %v2227 = vpack.c.b16 %v2221, %v2220
      %v2228 = vpack.c.b16 %v2223, %v2222
      %v2229 = vpack.c.b16 %v2225, %v2224
      %v2231 = vsel %vm821, %v2197, 0
      %v2234 = vsel %vm821, %v2226, 0
      %v2237 = vsel %vm821, %v2227, 0
      %v2240 = vsel %vm821, %v2228, 0
      %v2243 = vsel %vm821, %v2229, 0
      %2245 = vmatpush.bf16.xpose.msra.mxu0 0
      %2246 = vmatpush.bf16.xpose.msra.mxu0 0
      %2247 = vmatpush.bf16.xpose.msra.mxu0 0
      %2248 = vmatpush.bf16.xpose.msra.mxu0 0
      %2249 = vmatpush.bf16.xpose.msra.mxu0 %v2243
      %2250 = vmatpush.bf16.xpose.msra.mxu0 %v2240
      %2251 = vmatpush.bf16.xpose.msra.mxu0 %v2237
      %2252 = vmatpush.bf16.xpose.msra.mxu0 %v2234
      %2253 = vmatmul.bf16.gmra.mxu0 %v2231
      %v2254 = vpop.f32.mrf.mxu0
      %v2255 = vadd.f32 %v2208, %v2254
      %v2256 = vpop.f32.mrf.mxu0
      %v2257 = vadd.f32 %v2208, %v2256
      %2258 = vdwg.mxu0
      %v2259 = vmax.f32 %v2255, 0.0
      %v2260 = vmax.f32 %v2257, 0.0
      %v2261 = vpack.c.bf16 %v2260, %v2259
      %v2262 = vld [vmem:[%s766] sm:$0xf]
      %v2263 = vld [vmem:[%s766 + $0x4] sm:$0xf]
      %v2264 = vld [vmem:[%s766 + $0x8] sm:$0xf]
      %v2265 = vld [vmem:[%s766 + $0xc] sm:$0xf]
      %v2266 = vperm.slane %v786, 4
      %v2271 = vunpack.c.l.b16 %v2262
      %v2272 = vunpack.c.l.b16 %v2263
      %v2273 = vunpack.c.l.b16 %v2264
      %v2274 = vunpack.c.l.b16 %v2265
      %v2275 = vpack.c.b16 %v2272, %v2271
      %v2276 = vpack.c.b16 %v2274, %v2273
      %vm2277 = vcmask 523264
      %v2279 = vsel %vm2277, %v2261, 0
      %v2282 = vsel %vm2277, %v2275, 0
      %v2285 = vsel %vm2277, %v2276, 0
      %2287 = vmatpush.bf16.xpose.msra.mxu0 0
      %2288 = vmatpush.bf16.xpose.msra.mxu0 0
      %2289 = vmatpush.bf16.xpose.msra.mxu0 0
      %2290 = vmatpush.bf16.xpose.msra.mxu0 0
      %2291 = vmatpush.bf16.xpose.msra.mxu0 0
      %2292 = vmatpush.bf16.xpose.msra.mxu0 0
      %2293 = vmatpush.bf16.xpose.msra.mxu0 %v2285
      %2294 = vmatpush.bf16.xpose.msra.mxu0 %v2282
      %2295 = vmatmul.bf16.gmra.mxu0 %v2279
      %v2296 = vpop.f32.mrf.mxu0
      %v2297 = vadd.f32 %v2266, %v2296
      %v2298 = vpop.f32.mrf.mxu0
      %v2299 = vadd.f32 %v2266, %v2298
      %2300 = vdwg.mxu0
      %v2301 = vadd.f32 %v2195, %v2297
      %v2302 = vadd.f32 %v2196, %v2299
      %v2303 = vsel %vm821, %v2301, 0.0
      %2304 = vadd.xlane.f32.xlu0 %v2303
      %v2305 = vpop.xlane.xlu0 %2304
      %v2306 = vsel %vm821, %v2302, 0.0
      %2307 = vadd.xlane.f32.xlu0 %v2306
      %v2308 = vpop.xlane.xlu0 %2307
      %v2309 = vmul.f32 %v2305, %v1447
      %v2310 = vmul.f32 %v2308, %v1447
      %v2311 = vsub.f32 %v2301, %v2309
      %v2312 = vsub.f32 %v2302, %v2310
      %v2313 = vmul.f32 %v2311, %v2311
      %v2314 = vmul.f32 %v2312, %v2312
      %v2315 = vsel %vm821, %v2313, 0.0
      %2316 = vadd.xlane.f32.xlu0 %v2315
      %v2317 = vpop.xlane.xlu0 %2316
      %v2318 = vsel %vm821, %v2314, 0.0
      %2319 = vadd.xlane.f32.xlu0 %v2318
      %v2320 = vpop.xlane.xlu0 %2319
      %v2321 = vmul.f32 %v2317, %v1447
      %v2322 = vmul.f32 %v2320, %v1447
      %v2323 = vadd.f32 %v2321, 1e-05
      %v2324 = vadd.f32 %v2322, 1e-05
      %v2325 = vrsqrt.pop %v2323
      %v2326 = vmul.f32 %v2325, %v2323
      %v2327 = vmul.f32 %v2326, %v2325
      %v2328 = vmul.f32 0.5, %v2327
      %v2329 = vsub.f32 1.5, %v2328
      %v2330 = vmul.f32 %v2325, %v2329
      %vm2331 = vweird.f32 %v2323
      %vm2332 = vweird.f32 %v2325
      %vm2333 = vmor %vm2331, %vm2332
      %v2334 = vsel %vm2333, %v2325, %v2330
      %v2335 = vrsqrt.pop %v2324
      %v2336 = vmul.f32 %v2335, %v2324
      %v2337 = vmul.f32 %v2336, %v2335
      %v2338 = vmul.f32 0.5, %v2337
      %v2339 = vsub.f32 1.5, %v2338
      %v2340 = vmul.f32 %v2335, %v2339
      %vm2341 = vweird.f32 %v2324
      %vm2342 = vweird.f32 %v2335
      %vm2343 = vmor %vm2341, %vm2342
      %v2344 = vsel %vm2343, %v2335, %v2340
      %v2345 = vmul.f32 %v2311, %v2334
      %v2346 = vmul.f32 %v2312, %v2344
      %v2347 = vperm.slane %v786, 5
      %v2348 = vmul.f32 %v2345, %v2347
      %v2349 = vmul.f32 %v2346, %v2347
      %v2350 = vperm.slane %v786, 6
      %v2351 = vadd.f32 %v2348, %v2350
      %v2352 = vadd.f32 %v2349, %v2350
      %2353 = vst.msk [vmem:[#allocation2] sm:$0xff] %vm821, %v2351
      %2354 = vst.msk [vmem:[#allocation2 + $0x8] sm:$0xff] %vm821, %v2352
      %v2355 = vld [vmem:[%s16] sm:$0x1]
      %v2356 = vld [vmem:[%s17] sm:$0x1]
      %p2357 = scmp.eq.s32.totalorder %s29, 1
      // Predicated region
      $region97: #{transformer_decoder_forward.1} parent=91 // pred_check
        %p2358 = pneg %p2357
      $region98: #{transformer_decoder_forward.1} parent=91 // pred_check_branch
        %2360 = sbr.rel (%p2358) target = $region100
      $region99: #{transformer_decoder_forward.1} parent=91 // pred_region
        %v2361 = vsel %vm821, %v2351, 0.0
        %2362 = vadd.xlane.f32.xlu0 %v2361
        %v2363 = vpop.xlane.xlu0 %2362
        %v2364 = vsel %vm821, %v2352, 0.0
        %2365 = vadd.xlane.f32.xlu0 %v2364
        %v2366 = vpop.xlane.xlu0 %2365
        %v2367 = vmul.f32 %v2363, %v1447
        %v2368 = vmul.f32 %v2366, %v1447
        %v2369 = vsub.f32 %v2351, %v2367
        %v2370 = vsub.f32 %v2352, %v2368
        %v2371 = vmul.f32 %v2369, %v2369
        %v2372 = vmul.f32 %v2370, %v2370
        %v2373 = vsel %vm821, %v2371, 0.0
        %2374 = vadd.xlane.f32.xlu0 %v2373
        %v2375 = vpop.xlane.xlu0 %2374
        %v2376 = vsel %vm821, %v2372, 0.0
        %2377 = vadd.xlane.f32.xlu0 %v2376
        %v2378 = vpop.xlane.xlu0 %2377
        %v2379 = vmul.f32 %v2375, %v1447
        %v2380 = vmul.f32 %v2378, %v1447
        %v2381 = vadd.f32 %v2379, 1e-05
        %v2382 = vadd.f32 %v2380, 1e-05
        %v2383 = vrsqrt.pop %v2381
        %v2384 = vmul.f32 %v2383, %v2381
        %v2385 = vmul.f32 %v2384, %v2383
        %v2386 = vmul.f32 0.5, %v2385
        %v2387 = vsub.f32 1.5, %v2386
        %v2388 = vmul.f32 %v2383, %v2387
        %vm2389 = vweird.f32 %v2381
        %vm2390 = vweird.f32 %v2383
        %vm2391 = vmor %vm2389, %vm2390
        %v2392 = vsel %vm2391, %v2383, %v2388
        %v2393 = vrsqrt.pop %v2382
        %v2394 = vmul.f32 %v2393, %v2382
        %v2395 = vmul.f32 %v2394, %v2393
        %v2396 = vmul.f32 0.5, %v2395
        %v2397 = vsub.f32 1.5, %v2396
        %v2398 = vmul.f32 %v2393, %v2397
        %vm2399 = vweird.f32 %v2382
        %vm2400 = vweird.f32 %v2393
        %vm2401 = vmor %vm2399, %vm2400
        %v2402 = vsel %vm2401, %v2393, %v2398
        %v2403 = vmul.f32 %v2369, %v2392
        %v2404 = vmul.f32 %v2370, %v2402
        %v2406 = vperm.slane %v2355, 0
        %v2408 = vmul.f32 %v2403, %v2406
        %v2409 = vmul.f32 %v2404, %v2406
        %v2411 = vperm.slane %v2356, 0
        %v2413 = vadd.f32 %v2408, %v2411
        %v2414 = vadd.f32 %v2409, %v2411
        %2415 = vst.msk [vmem:[%s18] sm:$0xff] %vm821, %v2413
        %2416 = vst.msk [vmem:[%s18 + $0x8] sm:$0xff] %vm821, %v2414
      $region100: #{transformer_decoder_forward.1} parent=91 // pred_fallthru
        _
      // Predicated region
      $region101: #{transformer_decoder_forward.1} parent=91 // pred_check
        %p2417 = pneg %p480
      $region102: #{transformer_decoder_forward.1} parent=91 // pred_check_branch
        %2419 = sbr.rel (%p2417) target = $region104
      $region103: #{transformer_decoder_forward.1} parent=91 // pred_region
        _
      $region104: #{transformer_decoder_forward.1} parent=91 // pred_fallthru
        _
      // Predicated region
      $region105: #{transformer_decoder_forward.1} parent=91 // pred_check
        %p2420 = pneg %p480
      $region106: #{transformer_decoder_forward.1} parent=91 // pred_check_branch
        %2422 = sbr.rel (%p2420) target = $region108
      $region107: #{transformer_decoder_forward.1} parent=91 // pred_region
        _
      $region108: #{transformer_decoder_forward.1} parent=91 // pred_fallthru
        _
    $region92: #{transformer_decoder_forward.1} parent=5 // pred_fallthru
      _
    %p2423 = scmp.le.s32.totalorder 2, %s24
    // Predicated region
    $region109: #{transformer_decoder_forward.1} parent=5 // pred_check
      %p2424 = pneg %p2423
    $region110: #{transformer_decoder_forward.1} parent=5 // pred_check_branch
      %2426 = sbr.rel (%p2424) target = $region112
    $region111: #{transformer_decoder_forward.1} parent=5 // pred_region
      %s2427 = ssub.s32 %s24, 2
    $region112: #{transformer_decoder_forward.1} parent=5 // pred_fallthru
      _
  $region6: #{transformer_decoder_forward.1} parent=0 // loop_footer
    %s28 = sadd.s32 1, %s24
  $region7: #{transformer_decoder_forward.1} parent=0 // loop_footer_branch
    %23 = sbr.rel target = $region3
  $region8: #{transformer_decoder_forward.1} parent=0 // loop_exit
    _

</llo_original>
